<compile_context>
chip_gen: v5e
topology: v5e:2x2
jax: 0.10.0
libtpu: 0.0.40
codegen_flags: <defaults>
</compile_context>

<pallas_src>
import jax
import jax.numpy as jnp
from jax import lax
from jax.experimental import pallas as pl
from jax.experimental.pallas import tpu as pltpu

K = 4  # kernel size
S = 2  # stride
P = 1  # padding


def _upsample_phase_kernel(x_ref, w_ref, b_ref, o_ref, xp_ref):
    """One batch element of ConvTranspose2d(C, C, 4, 2, 1) via 4 sub-pixel phases.

    x_ref : (1, H, W, Cin)          NHWC input tile (compute dtype, e.g. bf16)
    w_ref : (4, 4*Cin, Cout)        phase p=2r+s; K axis = 4 fused taps * Cin
    b_ref : (1, Cout)               f32 bias
    o_ref : (1, H, 2, W, 2*Cout)    o[0, h, r, w, s*Cout:(s+1)*Cout] = y[2h+r, 2w+s, :]
    xp_ref: (H+2, W+2, Cin)         VMEM scratch: zero-padded input (compute dtype)
    """
    Hp, Wp, cin = xp_ref.shape
    H, W = Hp - 2, Wp - 2
    cout = b_ref.shape[-1]

    # Zero only the 1-pixel border (4 thin slabs); interior is fully overwritten below.
    zrow = jnp.zeros((1, Wp, cin), xp_ref.dtype)
    zcol = jnp.zeros((Hp, 1, cin), xp_ref.dtype)
    xp_ref[0:1, :, :] = zrow
    xp_ref[Hp - 1:Hp, :, :] = zrow
    xp_ref[:, 0:1, :] = zcol
    xp_ref[:, Wp - 1:Wp, :] = zcol
    xp_ref[1:H + 1, 1:W + 1, :] = x_ref[0]

    bias = b_ref[...].reshape(1, 1, cout).astype(jnp.float32)

    # Phase (r, s):  y[2m+r, 2n+s, co] =
    #   sum_{dh,dw,ci} xpad[m+r+dh, n+s+dw, ci] * W_pt[ci, co, 3-r-2dh, 3-s-2dw]
    # The 4 taps are fused into a single K=4*Cin matmul per phase.
    for r in range(2):
        for s in range(2):
            p = 2 * r + s
            patch = jnp.concatenate(
                [xp_ref[r + dh:r + dh + H, s + dw:s + dw + W, :]
                 for dh in range(2) for dw in range(2)],
                axis=-1)                                          # (H, W, 4*Cin)
            # spatial -> M (flattened lhs free dims), 4*Cin -> K, Cout -> N (MXU path)
            acc = lax.dot_general(
                patch, w_ref[p],
                dimension_numbers=(((2,), (0,)), ((), ())),
                preferred_element_type=jnp.float32)               # (H, W, Cout) f32
            val = (acc + bias).astype(o_ref.dtype)
            o_ref[:, :, r:r + 1, :, s * cout:(s + 1) * cout] = (
                val.reshape(1, H, 1, W, cout))


def upsample_conv_transpose2d(x_nchw, weight_pt, bias, *, compute_dtype=jnp.bfloat16):
    """ConvTranspose2d(C, C, 4, 2, 1) forward.

    x_nchw:    (N, Cin, H, W)       float32
    weight_pt: (Cin, Cout, K, K)    PyTorch ConvTranspose2d weight layout
    bias:      (Cout,)
    returns    (N, Cout, 2H, 2W)    in x_nchw.dtype
    """
    N, Cin, H, W = x_nchw.shape
    Cout = weight_pt.shape[1]
    out_dtype = x_nchw.dtype

    # NCHW -> NHWC (channels on lane / contraction axis) + cast to the MXU dtype.
    x_nhwc = jnp.transpose(x_nchw, (0, 2, 3, 1)).astype(compute_dtype)

    # Fused sub-pixel weights:
    #   w_sub[2r+s, t*Cin:(t+1)*Cin, co] = W_pt[:, co, 3-r-2dh, 3-s-2dw], t = 2dh+dw
    phases = []
    for r in range(2):
        for s in range(2):
            taps = [weight_pt[:, :, 3 - r - 2 * dh, 3 - s - 2 * dw]
                    for dh in range(2) for dw in range(2)]        # each (Cin, Cout)
            phases.append(jnp.concatenate(taps, axis=0))          # (4*Cin, Cout)
    w_sub = jnp.stack(phases, axis=0).astype(compute_dtype)       # (4, 4*Cin, Cout)
    b2d = bias.reshape(1, Cout).astype(jnp.float32)

    out5 = pl.pallas_call(
        _upsample_phase_kernel,
        out_shape=jax.ShapeDtypeStruct((N, H, 2, W, 2 * Cout), out_dtype),
        grid=(N,),
        in_specs=[
            pl.BlockSpec((1, H, W, Cin), lambda n: (n, 0, 0, 0)),
            pl.BlockSpec((4, 4 * Cin, Cout), lambda n: (0, 0, 0)),   # fetched once
            pl.BlockSpec((1, Cout), lambda n: (0, 0)),               # fetched once
        ],
        out_specs=pl.BlockSpec((1, H, 2, W, 2 * Cout), lambda n: (n, 0, 0, 0, 0)),
        scratch_shapes=[pltpu.VMEM((H + 2, W + 2, Cin), compute_dtype)],
        compiler_params=pltpu.CompilerParams(
            dimension_semantics=("parallel",),       # batch across v7x's 2 TensorCores
            vmem_limit_bytes=48 * 1024 * 1024,       # > default scoped, < physical on all gens
        ),
    )(x_nhwc, w_sub, b2d)

    # FREE reshape (pure row-major merge): (N, H, 2, W, 2, Cout) -> (N, 2H, 2W, Cout).
    out_nhwc = out5.reshape(N, S * H, S * W, Cout)

    # NHWC -> NCHW only to match the PyTorch module's returned layout.
    # TODO(synk): drop this transpose if the surrounding UNet is kept NHWC.
    return jnp.transpose(out_nhwc, (0, 3, 1, 2))


@jax.jit
def upsample_forward(x, t, weight, bias):
    """Mirror of Upsample.forward(x, t): t is ignored."""
    del t
    return upsample_conv_transpose2d(x, weight, bias)


def _reference(x_nchw, weight_pt, bias):
    # Reference ConvTranspose2d via XLA (f32): dilated stride-1 conv with flipped kernel.
    w_oihw = jnp.transpose(weight_pt[:, :, ::-1, ::-1], (1, 0, 2, 3))
    out = lax.conv_general_dilated(
        x_nchw, w_oihw,
        window_strides=(1, 1),
        padding=((K - 1 - P, K - 1 - P), (K - 1 - P, K - 1 - P)),
        lhs_dilation=(S, S),
        dimension_numbers=("NCHW", "OIHW", "NCHW"),
    )
    return out + bias.reshape(1, -1, 1, 1)


if __name__ == "__main__":
    n_channels = 4
    N, H, W = 2, 16, 16

    key = jax.random.PRNGKey(0)
    kx, kw, kb = jax.random.split(key, 3)

    x = jax.random.normal(kx, (N, n_channels, H, W), dtype=jnp.float32)
    weight = jax.random.normal(kw, (n_channels, n_channels, K, K), dtype=jnp.float32) * 0.1
    bias = jax.random.normal(kb, (n_channels,), dtype=jnp.float32) * 0.1
    t = jnp.zeros((N,), dtype=jnp.float32)   # unused time embedding, as in Upsample.forward

    out = jax.block_until_ready(upsample_forward(x, t, weight, bias))
    ref = jax.block_until_ready(_reference(x, weight, bias))

    assert out.shape == (N, n_channels, S * H, S * W), out.shape
    # bf16 MXU operands -> loosened tolerance vs the pure-f32 XLA reference.
    assert jnp.allclose(out, ref, atol=2e-2, rtol=2e-2), "mismatch vs reference"

    print("KERNEL_OK")
</pallas_src>

<mosaic_0001>
module attributes {stable_mosaic.version = 11 : i64} {
  func.func @_upsample_phase_kernel(%arg0: i32, %arg1: memref<1x16x16x4xbf16, #tpu.memory_space<vmem>>, %arg2: memref<4x16x4xbf16, #tpu.memory_space<vmem>>, %arg3: memref<1x4xf32, #tpu.memory_space<vmem>>, %arg4: memref<1x16x2x16x8xf32, #tpu.memory_space<vmem>>, %arg5: memref<18x18x4xbf16, #tpu.memory_space<vmem>>) attributes {dimension_semantics = [#tpu.dimension_semantics<parallel>], iteration_bounds = array<i64: 2>, scalar_prefetch = 0 : i64, scratch_operands = 1 : i64, tpu.core_type = #tpu.core_type<tc>, window_params = [{transform_indices = @transform_0, window_bounds = array<i64: 1, 16, 16, 4>}, {pipeline_mode = #tpu.pipeline_mode<synchronous>, transform_indices = @transform_1, window_bounds = array<i64: 4, 16, 4>}, {pipeline_mode = #tpu.pipeline_mode<synchronous>, transform_indices = @transform_2, window_bounds = array<i64: 1, 4>}, {transform_indices = @transform_3, window_bounds = array<i64: 1, 16, 2, 16, 8>}]} {
    %cst = arith.constant 0.000000e+00 : bf16
    %0 = vector.broadcast %cst : bf16 to vector<1x18x4xbf16>
    %cst_0 = arith.constant 0.000000e+00 : bf16
    %1 = vector.broadcast %cst_0 : bf16 to vector<18x1x4xbf16>
    %c0 = arith.constant 0 : index
    %c0_1 = arith.constant 0 : index
    %c0_2 = arith.constant 0 : index
    %2 = vector.load %arg5[%c0, %c0_1, %c0_2] : memref<18x18x4xbf16, #tpu.memory_space<vmem>>, vector<1x18x4xbf16>
    tpu.vector_store %arg5[%c0, %c0_1, %c0_2], %0 {strides = array<i32>} : memref<18x18x4xbf16, #tpu.memory_space<vmem>>, vector<1x18x4xbf16>,
    %c17 = arith.constant 17 : index
    %c0_3 = arith.constant 0 : index
    %c0_4 = arith.constant 0 : index
    %3 = vector.load %arg5[%c17, %c0_3, %c0_4] : memref<18x18x4xbf16, #tpu.memory_space<vmem>>, vector<1x18x4xbf16>
    tpu.vector_store %arg5[%c17, %c0_3, %c0_4], %0 {strides = array<i32>} : memref<18x18x4xbf16, #tpu.memory_space<vmem>>, vector<1x18x4xbf16>,
    %c0_5 = arith.constant 0 : index
    %c0_6 = arith.constant 0 : index
    %c0_7 = arith.constant 0 : index
    %4 = vector.load %arg5[%c0_5, %c0_6, %c0_7] : memref<18x18x4xbf16, #tpu.memory_space<vmem>>, vector<18x1x4xbf16>
    tpu.vector_store %arg5[%c0_5, %c0_6, %c0_7], %1 {strides = array<i32>} : memref<18x18x4xbf16, #tpu.memory_space<vmem>>, vector<18x1x4xbf16>,
    %c0_8 = arith.constant 0 : index
    %c17_9 = arith.constant 17 : index
    %c0_10 = arith.constant 0 : index
    %5 = vector.load %arg5[%c0_8, %c17_9, %c0_10] : memref<18x18x4xbf16, #tpu.memory_space<vmem>>, vector<18x1x4xbf16>
    tpu.vector_store %arg5[%c0_8, %c17_9, %c0_10], %1 {strides = array<i32>} : memref<18x18x4xbf16, #tpu.memory_space<vmem>>, vector<18x1x4xbf16>,
    %c0_11 = arith.constant 0 : index
    %c0_12 = arith.constant 0 : index
    %c0_13 = arith.constant 0 : index
    %c0_14 = arith.constant 0 : index
    %6 = vector.load %arg1[%c0_11, %c0_12, %c0_13, %c0_14] : memref<1x16x16x4xbf16, #tpu.memory_space<vmem>>, vector<1x16x16x4xbf16>
    %7 = vector.shape_cast %6 : vector<1x16x16x4xbf16> to vector<16x16x4xbf16>
    %c1 = arith.constant 1 : index
    %c1_15 = arith.constant 1 : index
    %c0_16 = arith.constant 0 : index
    %8 = vector.load %arg5[%c1, %c1_15, %c0_16] : memref<18x18x4xbf16, #tpu.memory_space<vmem>>, vector<16x16x4xbf16>
    tpu.vector_store %arg5[%c1, %c1_15, %c0_16], %7 {strides = array<i32>} : memref<18x18x4xbf16, #tpu.memory_space<vmem>>, vector<16x16x4xbf16>,
    %c0_17 = arith.constant 0 : index
    %c0_18 = arith.constant 0 : index
    %9 = vector.load %arg3[%c0_17, %c0_18] : memref<1x4xf32, #tpu.memory_space<vmem>>, vector<1x4xf32>
    %10 = vector.shape_cast %9 : vector<1x4xf32> to vector<1x1x4xf32>
    %c0_19 = arith.constant 0 : index
    %c0_20 = arith.constant 0 : index
    %c0_21 = arith.constant 0 : index
    %11 = vector.load %arg5[%c0_19, %c0_20, %c0_21] : memref<18x18x4xbf16, #tpu.memory_space<vmem>>, vector<16x16x4xbf16>
    %c0_22 = arith.constant 0 : index
    %c1_23 = arith.constant 1 : index
    %c0_24 = arith.constant 0 : index
    %12 = vector.load %arg5[%c0_22, %c1_23, %c0_24] : memref<18x18x4xbf16, #tpu.memory_space<vmem>>, vector<16x16x4xbf16>
    %c1_25 = arith.constant 1 : index
    %c0_26 = arith.constant 0 : index
    %c0_27 = arith.constant 0 : index
    %13 = vector.load %arg5[%c1_25, %c0_26, %c0_27] : memref<18x18x4xbf16, #tpu.memory_space<vmem>>, vector<16x16x4xbf16>
    %c1_28 = arith.constant 1 : index
    %c1_29 = arith.constant 1 : index
    %c0_30 = arith.constant 0 : index
    %14 = vector.load %arg5[%c1_28, %c1_29, %c0_30] : memref<18x18x4xbf16, #tpu.memory_space<vmem>>, vector<16x16x4xbf16>
    %15 = tpu.concatenate %11, %12, %13, %14 in 2 : vector<16x16x4xbf16>, vector<16x16x4xbf16>, vector<16x16x4xbf16>, vector<16x16x4xbf16> -> vector<16x16x16xbf16>
    %c0_31 = arith.constant 0 : index
    %c0_32 = arith.constant 0 : index
    %c0_33 = arith.constant 0 : index
    %16 = vector.load %arg2[%c0_31, %c0_32, %c0_33] : memref<4x16x4xbf16, #tpu.memory_space<vmem>>, vector<1x16x4xbf16>
    %17 = vector.shape_cast %16 : vector<1x16x4xbf16> to vector<16x4xbf16>
    %cst_34 = arith.constant dense<0.000000e+00> : vector<16x16x4xf32>
    %18 = tpu.matmul %15, %17, %cst_34 {dimension_numbers = #tpu.dot_dimension_numbers<[2], [0], [0, 1], [1], [0, 0, 0, 1, 1, 1], [], []>} : vector<16x16x16xbf16>, vector<16x4xbf16>, vector<16x16x4xf32> -> vector<16x16x4xf32>
    %19 = vector.broadcast %10 : vector<1x1x4xf32> to vector<16x16x4xf32>
    %20 = arith.addf %18, %19 : vector<16x16x4xf32>
    %21 = vector.shape_cast %20 : vector<16x16x4xf32> to vector<1x16x1x16x4xf32>
    %c0_35 = arith.constant 0 : index
    %c0_36 = arith.constant 0 : index
    %c0_37 = arith.constant 0 : index
    %c0_38 = arith.constant 0 : index
    %c0_39 = arith.constant 0 : index
    %22 = vector.load %arg4[%c0_35, %c0_36, %c0_37, %c0_38, %c0_39] : memref<1x16x2x16x8xf32, #tpu.memory_space<vmem>>, vector<1x16x1x16x4xf32>
    tpu.vector_store %arg4[%c0_35, %c0_36, %c0_37, %c0_38, %c0_39], %21 {strides = array<i32>} : memref<1x16x2x16x8xf32, #tpu.memory_space<vmem>>, vector<1x16x1x16x4xf32>,
    %c0_40 = arith.constant 0 : index
    %c1_41 = arith.constant 1 : index
    %c0_42 = arith.constant 0 : index
    %23 = vector.load %arg5[%c0_40, %c1_41, %c0_42] : memref<18x18x4xbf16, #tpu.memory_space<vmem>>, vector<16x16x4xbf16>
    %c0_43 = arith.constant 0 : index
    %c2 = arith.constant 2 : index
    %c0_44 = arith.constant 0 : index
    %24 = vector.load %arg5[%c0_43, %c2, %c0_44] : memref<18x18x4xbf16, #tpu.memory_space<vmem>>, vector<16x16x4xbf16>
    %c1_45 = arith.constant 1 : index
    %c1_46 = arith.constant 1 : index
    %c0_47 = arith.constant 0 : index
    %25 = vector.load %arg5[%c1_45, %c1_46, %c0_47] : memref<18x18x4xbf16, #tpu.memory_space<vmem>>, vector<16x16x4xbf16>
    %c1_48 = arith.constant 1 : index
    %c2_49 = arith.constant 2 : index
    %c0_50 = arith.constant 0 : index
    %26 = vector.load %arg5[%c1_48, %c2_49, %c0_50] : memref<18x18x4xbf16, #tpu.memory_space<vmem>>, vector<16x16x4xbf16>
    %27 = tpu.concatenate %23, %24, %25, %26 in 2 : vector<16x16x4xbf16>, vector<16x16x4xbf16>, vector<16x16x4xbf16>, vector<16x16x4xbf16> -> vector<16x16x16xbf16>
    %c1_51 = arith.constant 1 : index
    %c0_52 = arith.constant 0 : index
    %c0_53 = arith.constant 0 : index
    %28 = vector.load %arg2[%c1_51, %c0_52, %c0_53] : memref<4x16x4xbf16, #tpu.memory_space<vmem>>, vector<1x16x4xbf16>
    %29 = vector.shape_cast %28 : vector<1x16x4xbf16> to vector<16x4xbf16>
    %cst_54 = arith.constant dense<0.000000e+00> : vector<16x16x4xf32>
    %30 = tpu.matmul %27, %29, %cst_54 {dimension_numbers = #tpu.dot_dimension_numbers<[2], [0], [0, 1], [1], [0, 0, 0, 1, 1, 1], [], []>} : vector<16x16x16xbf16>, vector<16x4xbf16>, vector<16x16x4xf32> -> vector<16x16x4xf32>
    %31 = vector.broadcast %10 : vector<1x1x4xf32> to vector<16x16x4xf32>
    %32 = arith.addf %30, %31 : vector<16x16x4xf32>
    %33 = vector.shape_cast %32 : vector<16x16x4xf32> to vector<1x16x1x16x4xf32>
    %c0_55 = arith.constant 0 : index
    %c0_56 = arith.constant 0 : index
    %c0_57 = arith.constant 0 : index
    %c0_58 = arith.constant 0 : index
    %c4 = arith.constant 4 : index
    %34 = vector.load %arg4[%c0_55, %c0_56, %c0_57, %c0_58, %c4] : memref<1x16x2x16x8xf32, #tpu.memory_space<vmem>>, vector<1x16x1x16x4xf32>
    tpu.vector_store %arg4[%c0_55, %c0_56, %c0_57, %c0_58, %c4], %33 {strides = array<i32>} : memref<1x16x2x16x8xf32, #tpu.memory_space<vmem>>, vector<1x16x1x16x4xf32>,
    %c1_59 = arith.constant 1 : index
    %c0_60 = arith.constant 0 : index
    %c0_61 = arith.constant 0 : index
    %35 = vector.load %arg5[%c1_59, %c0_60, %c0_61] : memref<18x18x4xbf16, #tpu.memory_space<vmem>>, vector<16x16x4xbf16>
    %c1_62 = arith.constant 1 : index
    %c1_63 = arith.constant 1 : index
    %c0_64 = arith.constant 0 : index
    %36 = vector.load %arg5[%c1_62, %c1_63, %c0_64] : memref<18x18x4xbf16, #tpu.memory_space<vmem>>, vector<16x16x4xbf16>
    %c2_65 = arith.constant 2 : index
    %c0_66 = arith.constant 0 : index
    %c0_67 = arith.constant 0 : index
    %37 = vector.load %arg5[%c2_65, %c0_66, %c0_67] : memref<18x18x4xbf16, #tpu.memory_space<vmem>>, vector<16x16x4xbf16>
    %c2_68 = arith.constant 2 : index
    %c1_69 = arith.constant 1 : index
    %c0_70 = arith.constant 0 : index
    %38 = vector.load %arg5[%c2_68, %c1_69, %c0_70] : memref<18x18x4xbf16, #tpu.memory_space<vmem>>, vector<16x16x4xbf16>
    %39 = tpu.concatenate %35, %36, %37, %38 in 2 : vector<16x16x4xbf16>, vector<16x16x4xbf16>, vector<16x16x4xbf16>, vector<16x16x4xbf16> -> vector<16x16x16xbf16>
    %c2_71 = arith.constant 2 : index
    %c0_72 = arith.constant 0 : index
    %c0_73 = arith.constant 0 : index
    %40 = vector.load %arg2[%c2_71, %c0_72, %c0_73] : memref<4x16x4xbf16, #tpu.memory_space<vmem>>, vector<1x16x4xbf16>
    %41 = vector.shape_cast %40 : vector<1x16x4xbf16> to vector<16x4xbf16>
    %cst_74 = arith.constant dense<0.000000e+00> : vector<16x16x4xf32>
    %42 = tpu.matmul %39, %41, %cst_74 {dimension_numbers = #tpu.dot_dimension_numbers<[2], [0], [0, 1], [1], [0, 0, 0, 1, 1, 1], [], []>} : vector<16x16x16xbf16>, vector<16x4xbf16>, vector<16x16x4xf32> -> vector<16x16x4xf32>
    %43 = vector.broadcast %10 : vector<1x1x4xf32> to vector<16x16x4xf32>
    %44 = arith.addf %42, %43 : vector<16x16x4xf32>
    %45 = vector.shape_cast %44 : vector<16x16x4xf32> to vector<1x16x1x16x4xf32>
    %c0_75 = arith.constant 0 : index
    %c0_76 = arith.constant 0 : index
    %c1_77 = arith.constant 1 : index
    %c0_78 = arith.constant 0 : index
    %c0_79 = arith.constant 0 : index
    %46 = vector.load %arg4[%c0_75, %c0_76, %c1_77, %c0_78, %c0_79] : memref<1x16x2x16x8xf32, #tpu.memory_space<vmem>>, vector<1x16x1x16x4xf32>
    tpu.vector_store %arg4[%c0_75, %c0_76, %c1_77, %c0_78, %c0_79], %45 {strides = array<i32>} : memref<1x16x2x16x8xf32, #tpu.memory_space<vmem>>, vector<1x16x1x16x4xf32>,
    %c1_80 = arith.constant 1 : index
    %c1_81 = arith.constant 1 : index
    %c0_82 = arith.constant 0 : index
    %47 = vector.load %arg5[%c1_80, %c1_81, %c0_82] : memref<18x18x4xbf16, #tpu.memory_space<vmem>>, vector<16x16x4xbf16>
    %c1_83 = arith.constant 1 : index
    %c2_84 = arith.constant 2 : index
    %c0_85 = arith.constant 0 : index
    %48 = vector.load %arg5[%c1_83, %c2_84, %c0_85] : memref<18x18x4xbf16, #tpu.memory_space<vmem>>, vector<16x16x4xbf16>
    %c2_86 = arith.constant 2 : index
    %c1_87 = arith.constant 1 : index
    %c0_88 = arith.constant 0 : index
    %49 = vector.load %arg5[%c2_86, %c1_87, %c0_88] : memref<18x18x4xbf16, #tpu.memory_space<vmem>>, vector<16x16x4xbf16>
    %c2_89 = arith.constant 2 : index
    %c2_90 = arith.constant 2 : index
    %c0_91 = arith.constant 0 : index
    %50 = vector.load %arg5[%c2_89, %c2_90, %c0_91] : memref<18x18x4xbf16, #tpu.memory_space<vmem>>, vector<16x16x4xbf16>
    %51 = tpu.concatenate %47, %48, %49, %50 in 2 : vector<16x16x4xbf16>, vector<16x16x4xbf16>, vector<16x16x4xbf16>, vector<16x16x4xbf16> -> vector<16x16x16xbf16>
    %c3 = arith.constant 3 : index
    %c0_92 = arith.constant 0 : index
    %c0_93 = arith.constant 0 : index
    %52 = vector.load %arg2[%c3, %c0_92, %c0_93] : memref<4x16x4xbf16, #tpu.memory_space<vmem>>, vector<1x16x4xbf16>
    %53 = vector.shape_cast %52 : vector<1x16x4xbf16> to vector<16x4xbf16>
    %cst_94 = arith.constant dense<0.000000e+00> : vector<16x16x4xf32>
    %54 = tpu.matmul %51, %53, %cst_94 {dimension_numbers = #tpu.dot_dimension_numbers<[2], [0], [0, 1], [1], [0, 0, 0, 1, 1, 1], [], []>} : vector<16x16x16xbf16>, vector<16x4xbf16>, vector<16x16x4xf32> -> vector<16x16x4xf32>
    %55 = vector.broadcast %10 : vector<1x1x4xf32> to vector<16x16x4xf32>
    %56 = arith.addf %54, %55 : vector<16x16x4xf32>
    %57 = vector.shape_cast %56 : vector<16x16x4xf32> to vector<1x16x1x16x4xf32>
    %c0_95 = arith.constant 0 : index
    %c0_96 = arith.constant 0 : index
    %c1_97 = arith.constant 1 : index
    %c0_98 = arith.constant 0 : index
    %c4_99 = arith.constant 4 : index
    %58 = vector.load %arg4[%c0_95, %c0_96, %c1_97, %c0_98, %c4_99] : memref<1x16x2x16x8xf32, #tpu.memory_space<vmem>>, vector<1x16x1x16x4xf32>
    tpu.vector_store %arg4[%c0_95, %c0_96, %c1_97, %c0_98, %c4_99], %57 {strides = array<i32>} : memref<1x16x2x16x8xf32, #tpu.memory_space<vmem>>, vector<1x16x1x16x4xf32>,
    return
  }
  func.func @transform_0(%arg0: i32) -> (i32, i32, i32, i32) {
    %c0_i32 = arith.constant 0 : i32
    %c0_i32_0 = arith.constant 0 : i32
    %c0_i32_1 = arith.constant 0 : i32
    %c0_i32_2 = arith.constant 0 : i32
    return %arg0, %c0_i32, %c0_i32_0, %c0_i32_1 : i32, i32, i32, i32
  }
  func.func @transform_1(%arg0: i32) -> (i32, i32, i32) {
    %c0_i32 = arith.constant 0 : i32
    %c0_i32_0 = arith.constant 0 : i32
    %c0_i32_1 = arith.constant 0 : i32
    %c0_i32_2 = arith.constant 0 : i32
    return %c0_i32, %c0_i32_0, %c0_i32_1 : i32, i32, i32
  }
  func.func @transform_2(%arg0: i32) -> (i32, i32) {
    %c0_i32 = arith.constant 0 : i32
    %c0_i32_0 = arith.constant 0 : i32
    %c0_i32_1 = arith.constant 0 : i32
    return %c0_i32, %c0_i32_0 : i32, i32
  }
  func.func @transform_3(%arg0: i32) -> (i32, i32, i32, i32, i32) {
    %c0_i32 = arith.constant 0 : i32
    %c0_i32_0 = arith.constant 0 : i32
    %c0_i32_1 = arith.constant 0 : i32
    %c0_i32_2 = arith.constant 0 : i32
    %c0_i32_3 = arith.constant 0 : i32
    return %arg0, %c0_i32, %c0_i32_0, %c0_i32_1, %c0_i32_2 : i32, i32, i32, i32, i32
  }
}

</mosaic_0001>

<llo_original>
// kernel: upsample_forward.1
$region0: #{upsample_forward.1}
  #allocation0 [shape = 'u32[]', space=smem, size = 0x4, offset = 0x4, fixed_abs, tag = 'smem constant byte address 0x4 - core index']
  #allocation1 [shape = 'u32[72,128]{1,0:T(1,128)}', space=vmem, size = 0x9000, scoped, tag = 'internal scratch']
  #allocation2 [shape = 'bf16[18,18,4]{2,1,0:T(8,128)(2,1)}', space=vmem, size = 0x1b000, scoped, tag = 'scratch operand']
  %s0 = inlined_call_operand.vmem [shape: bf16[2,16,16,4], index: 0, kind: input, shape index: {}]
  %s1 = inlined_call_operand.vmem [shape: bf16[4,16,4], index: 1, kind: input, shape index: {}]
  %s2 = inlined_call_operand.vmem [shape: f32[1,4], index: 2, kind: input, shape index: {}]
  %s3 = inlined_call_operand.vmem [shape: f32[2,16,2,16,8], index: 3, kind: output, shape index: {}]
  %s4 = sld [smem:[#allocation0]]
  $region45: #{upsample_forward.1} parent=0
    _
  %s6 = ssub.s32 1, %s4
  %s7 = scalar_select 0, %s6, %s4
  loop: start=0, step=1, limit=4
  $region2: #{upsample_forward.1} parent=0 // loop_pre_header
    _
  $region3: #{upsample_forward.1} parent=0 // loop_header
    %s9 = sphi 0, %s13
    %p10 = scmp.ge.s32.totalorder %s9, 4
    %s19 = sphi 0, %s21
    %s22 = sphi 0, %s19
    %s23 = sphi 0, %s22
    %s39 = sphi 0, %s23
    %s43 = sphi 0, %s43
    %s45 = sphi 0, %s43
    %s46 = sphi 0, %s45
    %s60 = sphi 0, %s46
    %s64 = sphi 0, %s64
    %s66 = sphi 0, %s64
    %s67 = sphi 0, %s66
    %s81 = sphi 0, %s67
    %s87 = sphi 0, %s89
    %s90 = sphi 0, %s87
    %s91 = sphi 0, %s90
    %s107 = sphi 0, %s91
  $region4: #{upsample_forward.1} parent=0 // loop_header_branch
    %12 = sbr.rel (%p10) target = $region8
  $region5: #{upsample_forward.1} parent=0 // loop_body
    %s14 = ssub.s32 %s9, 1
    %s15 = ssub.s32 %s9, 2
    %s16 = sadd.s32 %s9, 1
    %s17 = ssub.s32 %s9, %s16
    %p18 = scmp.eq.s32.totalorder %s17, 0
    %s20 = sadd.s32 %s19, 1
    %s21 = scalar_select %p18, %s19, %s20
    %p24 = pneg %p18
    %p25 = scmp.eq.s32.totalorder %s9, 1
    %p26 = por %p24, %p25
    %p27 = scmp.ne.s32.totalorder %s19, %s22
    %p28 = scmp.eq.s32.totalorder %s9, 0
    %p29 = por %p27, %p28
    %p30 = scmp.ne.s32.totalorder %s19, %s22
    %p31 = scmp.eq.s32.totalorder %s14, 1
    %p32 = por %p30, %p31
    %p33 = scmp.ne.s32.totalorder %s22, %s23
    %p34 = scmp.eq.s32.totalorder %s14, 0
    %p35 = por %p33, %p34
    %p36 = scmp.ne.s32.totalorder %s22, %s23
    %p37 = scmp.eq.s32.totalorder %s15, 1
    %p38 = por %p36, %p37
    %p40 = scmp.ne.s32.totalorder %s23, %s39
    %p41 = scmp.eq.s32.totalorder %s15, 0
    %p42 = por %p40, %p41
    %s44 = sadd.s32 %s43, 1
    %p47 = scmp.eq.s32.totalorder %s9, 1
    %p48 = scmp.ne.s32.totalorder %s43, %s45
    %p49 = scmp.eq.s32.totalorder %s9, 0
    %p50 = por %p48, %p49
    %p51 = scmp.ne.s32.totalorder %s43, %s45
    %p52 = scmp.eq.s32.totalorder %s14, 1
    %p53 = por %p51, %p52
    %p54 = scmp.ne.s32.totalorder %s45, %s46
    %p55 = scmp.eq.s32.totalorder %s14, 0
    %p56 = por %p54, %p55
    %p57 = scmp.ne.s32.totalorder %s45, %s46
    %p58 = scmp.eq.s32.totalorder %s15, 1
    %p59 = por %p57, %p58
    %p61 = scmp.ne.s32.totalorder %s46, %s60
    %p62 = scmp.eq.s32.totalorder %s15, 0
    %p63 = por %p61, %p62
    %s65 = sadd.s32 %s64, 1
    %p68 = scmp.eq.s32.totalorder %s9, 1
    %p69 = scmp.ne.s32.totalorder %s64, %s66
    %p70 = scmp.eq.s32.totalorder %s9, 0
    %p71 = por %p69, %p70
    %p72 = scmp.ne.s32.totalorder %s64, %s66
    %p73 = scmp.eq.s32.totalorder %s14, 1
    %p74 = por %p72, %p73
    %p75 = scmp.ne.s32.totalorder %s66, %s67
    %p76 = scmp.eq.s32.totalorder %s14, 0
    %p77 = por %p75, %p76
    %p78 = scmp.ne.s32.totalorder %s66, %s67
    %p79 = scmp.eq.s32.totalorder %s15, 1
    %p80 = por %p78, %p79
    %p82 = scmp.ne.s32.totalorder %s67, %s81
    %p83 = scmp.eq.s32.totalorder %s15, 0
    %p84 = por %p82, %p83
    %s85 = ssub.s32 %s9, %s16
    %p86 = scmp.eq.s32.totalorder %s85, 0
    %s88 = sadd.s32 %s87, 1
    %s89 = scalar_select %p86, %s87, %s88
    %p92 = pneg %p86
    %p93 = scmp.eq.s32.totalorder %s9, 1
    %p94 = por %p92, %p93
    %p95 = scmp.ne.s32.totalorder %s87, %s90
    %p96 = scmp.eq.s32.totalorder %s9, 0
    %p97 = por %p95, %p96
    %p98 = scmp.ne.s32.totalorder %s87, %s90
    %p99 = scmp.eq.s32.totalorder %s14, 1
    %p100 = por %p98, %p99
    %p101 = scmp.ne.s32.totalorder %s90, %s91
    %p102 = scmp.eq.s32.totalorder %s14, 0
    %p103 = por %p101, %p102
    %p104 = scmp.ne.s32.totalorder %s90, %s91
    %p105 = scmp.eq.s32.totalorder %s15, 1
    %p106 = por %p104, %p105
    %p108 = scmp.ne.s32.totalorder %s91, %s107
    %p109 = scmp.eq.s32.totalorder %s15, 0
    %p110 = por %p108, %p109
    %p111 = scmp.le.s32.totalorder 1, %s9
    %p112 = scmp.lt.s32.totalorder %s9, 3
    %p113 = pnand %p111, %p112
    %p114 = pneg %p113
    // Predicated region
    $region9: #{upsample_forward.1} parent=5 // pred_check
      _
    $region10: #{upsample_forward.1} parent=5 // pred_check_branch
      %116 = sbr.rel (%p113) target = $region12
    $region11: #{upsample_forward.1} parent=5 // pred_region
      %s117 = ssub.s32 %s9, 1
      // Predicated region
      $region13: #{upsample_forward.1} parent=11 // pred_check
        %p118 = pneg %p56
      $region14: #{upsample_forward.1} parent=11 // pred_check_branch
        %120 = sbr.rel (%p118) target = $region16
      $region15: #{upsample_forward.1} parent=11 // pred_region
        _
      $region16: #{upsample_forward.1} parent=11 // pred_fallthru
        _
      // Predicated region
      $region17: #{upsample_forward.1} parent=11 // pred_check
        %p121 = pneg %p77
      $region18: #{upsample_forward.1} parent=11 // pred_check_branch
        %123 = sbr.rel (%p121) target = $region20
      $region19: #{upsample_forward.1} parent=11 // pred_region
        _
      $region20: #{upsample_forward.1} parent=11 // pred_fallthru
        _
    $region12: #{upsample_forward.1} parent=5 // pred_fallthru
      _
    %p124 = scmp.lt.s32.totalorder %s9, 2
    // Predicated region
    $region21: #{upsample_forward.1} parent=5 // pred_check
      %p125 = pneg %p124
    $region22: #{upsample_forward.1} parent=5 // pred_check_branch
      %127 = sbr.rel (%p125) target = $region24
    $region23: #{upsample_forward.1} parent=5 // pred_region
      // Predicated region
      $region25: #{upsample_forward.1} parent=23 // pred_check
        %p128 = pneg %p29
      $region26: #{upsample_forward.1} parent=23 // pred_check_branch
        %130 = sbr.rel (%p128) target = $region28
      $region27: #{upsample_forward.1} parent=23 // pred_region
        %p131 = scmp.lt.s32.totalorder %s9, 1
        %s132 = scalar_select %p131, %s9, 1
        %s133 = smul.addr %s132, 32
        %s134 = smul.addr %s133, 4
        %s135 = scalar_lea.vmem %s0, %s134
      $region28: #{upsample_forward.1} parent=23 // pred_fallthru
        _
    $region24: #{upsample_forward.1} parent=5 // pred_fallthru
      _
    %p136 = scmp.le.s32.totalorder 1, %s9
    %p137 = scmp.lt.s32.totalorder %s9, 3
    %p138 = pnand %p136, %p137
    %p139 = pneg %p138
    // Predicated region
    $region29: #{upsample_forward.1} parent=5 // pred_check
      _
    $region30: #{upsample_forward.1} parent=5 // pred_check_branch
      %141 = sbr.rel (%p138) target = $region32
    $region31: #{upsample_forward.1} parent=5 // pred_region
      %s142 = ssub.s32 %s9, 1
      %p143 = scmp.lt.s32.totalorder %s14, 1
      %s144 = scalar_select %p143, %s14, 1
      %s145 = smul.addr %s144, 32
      %s146 = smul.addr %s145, 4
      %s147 = scalar_lea.vmem %s0, %s146
      %p148 = pneg %p35
      %p149 = pneg %p32
      %p150 = pneg %p56
      %p151 = pneg %p53
      %p152 = pneg %p77
      %p153 = pneg %p74
      %p154 = pneg %p103
      %p155 = pneg %p100
      %p156 = scmp.lt.s32.totalorder %s14, 1
      %s157 = scalar_select %p156, %s14, 1
      %s158 = smul.addr %s157, 64
      %s159 = smul.addr %s158, 8
      %s160 = scalar_lea.vmem %s3, %s159
      %p161 = scmp.lt.s32.totalorder %s14, 1
      %s162 = scalar_select %p161, %s14, 1
      %s163 = smul.addr %s162, 32
      %s164 = smul.addr %s163, 4
      %s165 = scalar_lea.vmem %s0, %s164
      %p166 = scmp.lt.s32.totalorder %s14, 1
      %s167 = scalar_select %p166, %s14, 1
      %s168 = smul.addr %s167, 64
      %s169 = smul.addr %s168, 8
      %s170 = scalar_lea.vmem %s3, %s169
      %vm172 = vcmask 27648
      %173 = vst.msk [vmem:[#allocation2] sm:$0xf] %vm172, 0
      %174 = vst.msk [vmem:[#allocation2 + $0x4] sm:$0xf] %vm172, 0
      %vm175 = vcmask 24576
      %176 = vst.msk [vmem:[#allocation2 + $0x8] sm:$0x1] %vm175, 0
      %s177 = scalar_lea.vmem [#allocation2], 204
      %178 = vst.msk [vmem:[%s177] sm:$0xf] %vm172, 0
      %179 = vst.msk [vmem:[%s177 + $0x4] sm:$0xf] %vm172, 0
      %180 = vst.msk [vmem:[%s177 + $0x8] sm:$0x1] %vm175, 0
      %vm181 = vcmask 24576
      %vm182 = vsmask.f32 256
      %vm183 = vmand %vm181, %vm182
      %v184 = vld [vmem:[#allocation2] sm:$0x1]
      %v185 = vsel %vm183, 0, %v184
      %186 = vst [vmem:[#allocation2] sm:$0x1] %v185
      %v187 = vld [vmem:[#allocation2 + $0xc] sm:$0x1]
      %v188 = vsel %vm183, 0, %v187
      %189 = vst [vmem:[#allocation2 + $0xc] sm:$0x1] %v188
      %v190 = vld [vmem:[#allocation2 + $0x18] sm:$0x1]
      %v191 = vsel %vm183, 0, %v190
      %192 = vst [vmem:[#allocation2 + $0x18] sm:$0x1] %v191
      %v193 = vld [vmem:[#allocation2 + $0x24] sm:$0x1]
      %v194 = vsel %vm183, 0, %v193
      %195 = vst [vmem:[#allocation2 + $0x24] sm:$0x1] %v194
      %v196 = vld [vmem:[#allocation2 + $0x30] sm:$0x1]
      %v197 = vsel %vm183, 0, %v196
      %198 = vst [vmem:[#allocation2 + $0x30] sm:$0x1] %v197
      %v199 = vld [vmem:[#allocation2 + $0x3c] sm:$0x1]
      %v200 = vsel %vm183, 0, %v199
      %201 = vst [vmem:[#allocation2 + $0x3c] sm:$0x1] %v200
      %v202 = vld [vmem:[#allocation2 + $0x48] sm:$0x1]
      %v203 = vsel %vm183, 0, %v202
      %204 = vst [vmem:[#allocation2 + $0x48] sm:$0x1] %v203
      %v205 = vld [vmem:[#allocation2 + $0x54] sm:$0x1]
      %v206 = vsel %vm183, 0, %v205
      %207 = vst [vmem:[#allocation2 + $0x54] sm:$0x1] %v206
      %v208 = vld [vmem:[#allocation2 + $0x60] sm:$0x1]
      %v209 = vsel %vm183, 0, %v208
      %210 = vst [vmem:[#allocation2 + $0x60] sm:$0x1] %v209
      %v211 = vld [vmem:[#allocation2 + $0x6c] sm:$0x1]
      %v212 = vsel %vm183, 0, %v211
      %213 = vst [vmem:[#allocation2 + $0x6c] sm:$0x1] %v212
      %v214 = vld [vmem:[#allocation2 + $0x78] sm:$0x1]
      %v215 = vsel %vm183, 0, %v214
      %216 = vst [vmem:[#allocation2 + $0x78] sm:$0x1] %v215
      %v217 = vld [vmem:[#allocation2 + $0x84] sm:$0x1]
      %v218 = vsel %vm183, 0, %v217
      %219 = vst [vmem:[#allocation2 + $0x84] sm:$0x1] %v218
      %v220 = vld [vmem:[#allocation2 + $0x90] sm:$0x1]
      %v221 = vsel %vm183, 0, %v220
      %222 = vst [vmem:[#allocation2 + $0x90] sm:$0x1] %v221
      %v223 = vld [vmem:[#allocation2 + $0x9c] sm:$0x1]
      %v224 = vsel %vm183, 0, %v223
      %225 = vst [vmem:[#allocation2 + $0x9c] sm:$0x1] %v224
      %v226 = vld [vmem:[#allocation2 + $0xa8] sm:$0x1]
      %v227 = vsel %vm183, 0, %v226
      %228 = vst [vmem:[#allocation2 + $0xa8] sm:$0x1] %v227
      %v229 = vld [vmem:[#allocation2 + $0xb4] sm:$0x1]
      %v230 = vsel %vm183, 0, %v229
      %231 = vst [vmem:[#allocation2 + $0xb4] sm:$0x1] %v230
      %v232 = vld [vmem:[#allocation2 + $0xc0] sm:$0x1]
      %v233 = vsel %vm183, 0, %v232
      %234 = vst [vmem:[#allocation2 + $0xc0] sm:$0x1] %v233
      %v235 = vld [vmem:[#allocation2 + $0xcc] sm:$0x1]
      %v236 = vsel %vm183, 0, %v235
      %237 = vst [vmem:[#allocation2 + $0xcc] sm:$0x1] %v236
      %vm238 = vsmask.f32 7938
      %vm239 = vmand %vm181, %vm238
      %v240 = vld [vmem:[#allocation2 + $0x8] sm:$0x1]
      %v241 = vsel %vm239, 0, %v240
      %242 = vst [vmem:[#allocation2 + $0x8] sm:$0x1] %v241
      %v243 = vld [vmem:[#allocation2 + $0x14] sm:$0x1]
      %v244 = vsel %vm239, 0, %v243
      %245 = vst [vmem:[#allocation2 + $0x14] sm:$0x1] %v244
      %v246 = vld [vmem:[#allocation2 + $0x20] sm:$0x1]
      %v247 = vsel %vm239, 0, %v246
      %248 = vst [vmem:[#allocation2 + $0x20] sm:$0x1] %v247
      %v249 = vld [vmem:[#allocation2 + $0x2c] sm:$0x1]
      %v250 = vsel %vm239, 0, %v249
      %251 = vst [vmem:[#allocation2 + $0x2c] sm:$0x1] %v250
      %v252 = vld [vmem:[#allocation2 + $0x38] sm:$0x1]
      %v253 = vsel %vm239, 0, %v252
      %254 = vst [vmem:[#allocation2 + $0x38] sm:$0x1] %v253
      %v255 = vld [vmem:[#allocation2 + $0x44] sm:$0x1]
      %v256 = vsel %vm239, 0, %v255
      %257 = vst [vmem:[#allocation2 + $0x44] sm:$0x1] %v256
      %v258 = vld [vmem:[#allocation2 + $0x50] sm:$0x1]
      %v259 = vsel %vm239, 0, %v258
      %260 = vst [vmem:[#allocation2 + $0x50] sm:$0x1] %v259
      %v261 = vld [vmem:[#allocation2 + $0x5c] sm:$0x1]
      %v262 = vsel %vm239, 0, %v261
      %263 = vst [vmem:[#allocation2 + $0x5c] sm:$0x1] %v262
      %v264 = vld [vmem:[#allocation2 + $0x68] sm:$0x1]
      %v265 = vsel %vm239, 0, %v264
      %266 = vst [vmem:[#allocation2 + $0x68] sm:$0x1] %v265
      %v267 = vld [vmem:[#allocation2 + $0x74] sm:$0x1]
      %v268 = vsel %vm239, 0, %v267
      %269 = vst [vmem:[#allocation2 + $0x74] sm:$0x1] %v268
      %v270 = vld [vmem:[#allocation2 + $0x80] sm:$0x1]
      %v271 = vsel %vm239, 0, %v270
      %272 = vst [vmem:[#allocation2 + $0x80] sm:$0x1] %v271
      %v273 = vld [vmem:[#allocation2 + $0x8c] sm:$0x1]
      %v274 = vsel %vm239, 0, %v273
      %275 = vst [vmem:[#allocation2 + $0x8c] sm:$0x1] %v274
      %v276 = vld [vmem:[#allocation2 + $0x98] sm:$0x1]
      %v277 = vsel %vm239, 0, %v276
      %278 = vst [vmem:[#allocation2 + $0x98] sm:$0x1] %v277
      %v279 = vld [vmem:[#allocation2 + $0xa4] sm:$0x1]
      %v280 = vsel %vm239, 0, %v279
      %281 = vst [vmem:[#allocation2 + $0xa4] sm:$0x1] %v280
      %v282 = vld [vmem:[#allocation2 + $0xb0] sm:$0x1]
      %v283 = vsel %vm239, 0, %v282
      %284 = vst [vmem:[#allocation2 + $0xb0] sm:$0x1] %v283
      %v285 = vld [vmem:[#allocation2 + $0xbc] sm:$0x1]
      %v286 = vsel %vm239, 0, %v285
      %287 = vst [vmem:[#allocation2 + $0xbc] sm:$0x1] %v286
      %v288 = vld [vmem:[#allocation2 + $0xc8] sm:$0x1]
      %v289 = vsel %vm239, 0, %v288
      %290 = vst [vmem:[#allocation2 + $0xc8] sm:$0x1] %v289
      %v291 = vld [vmem:[#allocation2 + $0xd4] sm:$0x1]
      %v292 = vsel %vm239, 0, %v291
      %293 = vst [vmem:[#allocation2 + $0xd4] sm:$0x1] %v292
      %v294 = vld [vmem:[%s165] sm:$0xf]
      %v295 = vld [vmem:[%s165 + $0x4] sm:$0xf]
      %v296 = vld [vmem:[%s165 + $0x8] sm:$0xf]
      %v297 = vld [vmem:[%s165 + $0xc] sm:$0xf]
      %v298 = vld [vmem:[%s165 + $0x10] sm:$0xf]
      %v299 = vld [vmem:[%s165 + $0x14] sm:$0xf]
      %v300 = vld [vmem:[%s165 + $0x18] sm:$0xf]
      %v301 = vld [vmem:[%s165 + $0x1c] sm:$0xf]
      %v302 = vld [vmem:[%s165 + $0x20] sm:$0xf]
      %v303 = vld [vmem:[%s165 + $0x24] sm:$0xf]
      %v304 = vld [vmem:[%s165 + $0x28] sm:$0xf]
      %v305 = vld [vmem:[%s165 + $0x2c] sm:$0xf]
      %v306 = vld [vmem:[%s165 + $0x30] sm:$0xf]
      %v307 = vld [vmem:[%s165 + $0x34] sm:$0xf]
      %v308 = vld [vmem:[%s165 + $0x38] sm:$0xf]
      %v309 = vld [vmem:[%s165 + $0x3c] sm:$0xf]
      %v310 = vld [vmem:[%s165 + $0x40] sm:$0xf]
      %v311 = vld [vmem:[%s165 + $0x44] sm:$0xf]
      %v312 = vld [vmem:[%s165 + $0x48] sm:$0xf]
      %v313 = vld [vmem:[%s165 + $0x4c] sm:$0xf]
      %v314 = vld [vmem:[%s165 + $0x50] sm:$0xf]
      %v315 = vld [vmem:[%s165 + $0x54] sm:$0xf]
      %v316 = vld [vmem:[%s165 + $0x58] sm:$0xf]
      %v317 = vld [vmem:[%s165 + $0x5c] sm:$0xf]
      %v318 = vld [vmem:[%s165 + $0x60] sm:$0xf]
      %v319 = vld [vmem:[%s165 + $0x64] sm:$0xf]
      %v320 = vld [vmem:[%s165 + $0x68] sm:$0xf]
      %v321 = vld [vmem:[%s165 + $0x6c] sm:$0xf]
      %v322 = vld [vmem:[%s165 + $0x70] sm:$0xf]
      %v323 = vld [vmem:[%s165 + $0x74] sm:$0xf]
      %v324 = vld [vmem:[%s165 + $0x78] sm:$0xf]
      %v325 = vld [vmem:[%s165 + $0x7c] sm:$0xf]
      %vm326 = vsmask.f32 4368
      %vm327 = vmor %vm182, %vm326
      %v329 = vshrl.u32 %v294, 16
      %v331 = vrot.slane %v329, 7
      %v332 = vshll.u32 %v294, 16
      %v334 = vor.u32 %v331, %v332
      %v335 = vrot.slane %v331, 4
      %v337 = vshrl.u32 %v295, 16
      %v339 = vrot.slane %v337, 7
      %v340 = vshll.u32 %v295, 16
      %v342 = vor.u32 %v339, %v340
      %v343 = vsel %vm327, %v335, %v342
      %v344 = vrot.slane %v339, 4
      %v346 = vshrl.u32 %v296, 16
      %v348 = vrot.slane %v346, 7
      %v349 = vshll.u32 %v296, 16
      %v351 = vor.u32 %v348, %v349
      %v352 = vrot.slane %v348, 4
      %v354 = vshrl.u32 %v297, 16
      %v356 = vrot.slane %v354, 7
      %v357 = vshll.u32 %v297, 16
      %v359 = vor.u32 %v356, %v357
      %v360 = vsel %vm327, %v352, %v359
      %v361 = vrot.slane %v356, 4
      %v363 = vshrl.u32 %v298, 16
      %v365 = vrot.slane %v363, 7
      %v366 = vshll.u32 %v298, 16
      %v368 = vor.u32 %v365, %v366
      %v369 = vrot.slane %v365, 4
      %v371 = vshrl.u32 %v299, 16
      %v373 = vrot.slane %v371, 7
      %v374 = vshll.u32 %v299, 16
      %v376 = vor.u32 %v373, %v374
      %v377 = vsel %vm327, %v369, %v376
      %v378 = vrot.slane %v373, 4
      %v380 = vshrl.u32 %v300, 16
      %v382 = vrot.slane %v380, 7
      %v383 = vshll.u32 %v300, 16
      %v385 = vor.u32 %v382, %v383
      %v386 = vrot.slane %v382, 4
      %v388 = vshrl.u32 %v301, 16
      %v390 = vrot.slane %v388, 7
      %v391 = vshll.u32 %v301, 16
      %v393 = vor.u32 %v390, %v391
      %v394 = vsel %vm327, %v386, %v393
      %v395 = vrot.slane %v390, 4
      %v397 = vshrl.u32 %v302, 16
      %v399 = vrot.slane %v397, 7
      %v400 = vshll.u32 %v302, 16
      %v402 = vor.u32 %v399, %v400
      %v403 = vrot.slane %v399, 4
      %v405 = vshrl.u32 %v303, 16
      %v407 = vrot.slane %v405, 7
      %v408 = vshll.u32 %v303, 16
      %v410 = vor.u32 %v407, %v408
      %v411 = vsel %vm327, %v403, %v410
      %v412 = vrot.slane %v407, 4
      %v414 = vshrl.u32 %v304, 16
      %v416 = vrot.slane %v414, 7
      %v417 = vshll.u32 %v304, 16
      %v419 = vor.u32 %v416, %v417
      %v420 = vrot.slane %v416, 4
      %v422 = vshrl.u32 %v305, 16
      %v424 = vrot.slane %v422, 7
      %v425 = vshll.u32 %v305, 16
      %v427 = vor.u32 %v424, %v425
      %v428 = vsel %vm327, %v420, %v427
      %v429 = vrot.slane %v424, 4
      %v431 = vshrl.u32 %v306, 16
      %v433 = vrot.slane %v431, 7
      %v434 = vshll.u32 %v306, 16
      %v436 = vor.u32 %v433, %v434
      %v437 = vrot.slane %v433, 4
      %v439 = vshrl.u32 %v307, 16
      %v441 = vrot.slane %v439, 7
      %v442 = vshll.u32 %v307, 16
      %v444 = vor.u32 %v441, %v442
      %v445 = vsel %vm327, %v437, %v444
      %v446 = vrot.slane %v441, 4
      %v448 = vshrl.u32 %v308, 16
      %v450 = vrot.slane %v448, 7
      %v451 = vshll.u32 %v308, 16
      %v453 = vor.u32 %v450, %v451
      %v454 = vrot.slane %v450, 4
      %v456 = vshrl.u32 %v309, 16
      %v458 = vrot.slane %v456, 7
      %v459 = vshll.u32 %v309, 16
      %v461 = vor.u32 %v458, %v459
      %v462 = vsel %vm327, %v454, %v461
      %v463 = vrot.slane %v458, 4
      %v465 = vshrl.u32 %v310, 16
      %v467 = vrot.slane %v465, 7
      %v468 = vshll.u32 %v310, 16
      %v470 = vor.u32 %v467, %v468
      %v471 = vrot.slane %v467, 4
      %v473 = vshrl.u32 %v311, 16
      %v475 = vrot.slane %v473, 7
      %v476 = vshll.u32 %v311, 16
      %v478 = vor.u32 %v475, %v476
      %v479 = vsel %vm327, %v471, %v478
      %v480 = vrot.slane %v475, 4
      %v482 = vshrl.u32 %v312, 16
      %v484 = vrot.slane %v482, 7
      %v485 = vshll.u32 %v312, 16
      %v487 = vor.u32 %v484, %v485
      %v488 = vrot.slane %v484, 4
      %v490 = vshrl.u32 %v313, 16
      %v492 = vrot.slane %v490, 7
      %v493 = vshll.u32 %v313, 16
      %v495 = vor.u32 %v492, %v493
      %v496 = vsel %vm327, %v488, %v495
      %v497 = vrot.slane %v492, 4
      %v499 = vshrl.u32 %v314, 16
      %v501 = vrot.slane %v499, 7
      %v502 = vshll.u32 %v314, 16
      %v504 = vor.u32 %v501, %v502
      %v505 = vrot.slane %v501, 4
      %v507 = vshrl.u32 %v315, 16
      %v509 = vrot.slane %v507, 7
      %v510 = vshll.u32 %v315, 16
      %v512 = vor.u32 %v509, %v510
      %v513 = vsel %vm327, %v505, %v512
      %v514 = vrot.slane %v509, 4
      %v516 = vshrl.u32 %v316, 16
      %v518 = vrot.slane %v516, 7
      %v519 = vshll.u32 %v316, 16
      %v521 = vor.u32 %v518, %v519
      %v522 = vrot.slane %v518, 4
      %v524 = vshrl.u32 %v317, 16
      %v526 = vrot.slane %v524, 7
      %v527 = vshll.u32 %v317, 16
      %v529 = vor.u32 %v526, %v527
      %v530 = vsel %vm327, %v522, %v529
      %v531 = vrot.slane %v526, 4
      %v533 = vshrl.u32 %v318, 16
      %v535 = vrot.slane %v533, 7
      %v536 = vshll.u32 %v318, 16
      %v538 = vor.u32 %v535, %v536
      %v539 = vrot.slane %v535, 4
      %v541 = vshrl.u32 %v319, 16
      %v543 = vrot.slane %v541, 7
      %v544 = vshll.u32 %v319, 16
      %v546 = vor.u32 %v543, %v544
      %v547 = vsel %vm327, %v539, %v546
      %v548 = vrot.slane %v543, 4
      %v550 = vshrl.u32 %v320, 16
      %v552 = vrot.slane %v550, 7
      %v553 = vshll.u32 %v320, 16
      %v555 = vor.u32 %v552, %v553
      %v556 = vrot.slane %v552, 4
      %v558 = vshrl.u32 %v321, 16
      %v560 = vrot.slane %v558, 7
      %v561 = vshll.u32 %v321, 16
      %v563 = vor.u32 %v560, %v561
      %v564 = vsel %vm327, %v556, %v563
      %v565 = vrot.slane %v560, 4
      %v567 = vshrl.u32 %v322, 16
      %v569 = vrot.slane %v567, 7
      %v570 = vshll.u32 %v322, 16
      %v572 = vor.u32 %v569, %v570
      %v573 = vrot.slane %v569, 4
      %v575 = vshrl.u32 %v323, 16
      %v577 = vrot.slane %v575, 7
      %v578 = vshll.u32 %v323, 16
      %v580 = vor.u32 %v577, %v578
      %v581 = vsel %vm327, %v573, %v580
      %v582 = vrot.slane %v577, 4
      %v584 = vshrl.u32 %v324, 16
      %v586 = vrot.slane %v584, 7
      %v587 = vshll.u32 %v324, 16
      %v589 = vor.u32 %v586, %v587
      %v590 = vrot.slane %v586, 4
      %v592 = vshrl.u32 %v325, 16
      %v594 = vrot.slane %v592, 7
      %v595 = vshll.u32 %v325, 16
      %v597 = vor.u32 %v594, %v595
      %v598 = vsel %vm327, %v590, %v597
      %v599 = vrot.slane %v594, 4
      %s648 = scalar_lea.vmem [#allocation2], 12
      %vm649 = vcmask 27648
      %vm650 = vmand %vm649, %vm238
      %v651 = vld [vmem:[%s648] sm:$0xf]
      %v652 = vsel %vm650, %v334, %v651
      %653 = vst [vmem:[%s648] sm:$0xf] %v652
      %654 = vst.msk [vmem:[%s648 + $0x4] sm:$0xf] %vm172, %v343
      %v655 = vld [vmem:[%s648 + $0x8] sm:$0x1]
      %v656 = vsel %vm183, %v344, %v655
      %657 = vst [vmem:[%s648 + $0x8] sm:$0x1] %v656
      %v658 = vld [vmem:[%s648 + $0xc] sm:$0xf]
      %v659 = vsel %vm650, %v351, %v658
      %660 = vst [vmem:[%s648 + $0xc] sm:$0xf] %v659
      %661 = vst.msk [vmem:[%s648 + $0x10] sm:$0xf] %vm172, %v360
      %v662 = vld [vmem:[%s648 + $0x14] sm:$0x1]
      %v663 = vsel %vm183, %v361, %v662
      %664 = vst [vmem:[%s648 + $0x14] sm:$0x1] %v663
      %v665 = vld [vmem:[%s648 + $0x18] sm:$0xf]
      %v666 = vsel %vm650, %v368, %v665
      %667 = vst [vmem:[%s648 + $0x18] sm:$0xf] %v666
      %668 = vst.msk [vmem:[%s648 + $0x1c] sm:$0xf] %vm172, %v377
      %v669 = vld [vmem:[%s648 + $0x20] sm:$0x1]
      %v670 = vsel %vm183, %v378, %v669
      %671 = vst [vmem:[%s648 + $0x20] sm:$0x1] %v670
      %v672 = vld [vmem:[%s648 + $0x24] sm:$0xf]
      %v673 = vsel %vm650, %v385, %v672
      %674 = vst [vmem:[%s648 + $0x24] sm:$0xf] %v673
      %675 = vst.msk [vmem:[%s648 + $0x28] sm:$0xf] %vm172, %v394
      %v676 = vld [vmem:[%s648 + $0x2c] sm:$0x1]
      %v677 = vsel %vm183, %v395, %v676
      %678 = vst [vmem:[%s648 + $0x2c] sm:$0x1] %v677
      %v679 = vld [vmem:[%s648 + $0x30] sm:$0xf]
      %v680 = vsel %vm650, %v402, %v679
      %681 = vst [vmem:[%s648 + $0x30] sm:$0xf] %v680
      %682 = vst.msk [vmem:[%s648 + $0x34] sm:$0xf] %vm172, %v411
      %v683 = vld [vmem:[%s648 + $0x38] sm:$0x1]
      %v684 = vsel %vm183, %v412, %v683
      %685 = vst [vmem:[%s648 + $0x38] sm:$0x1] %v684
      %v686 = vld [vmem:[%s648 + $0x3c] sm:$0xf]
      %v687 = vsel %vm650, %v419, %v686
      %688 = vst [vmem:[%s648 + $0x3c] sm:$0xf] %v687
      %689 = vst.msk [vmem:[%s648 + $0x40] sm:$0xf] %vm172, %v428
      %v690 = vld [vmem:[%s648 + $0x44] sm:$0x1]
      %v691 = vsel %vm183, %v429, %v690
      %692 = vst [vmem:[%s648 + $0x44] sm:$0x1] %v691
      %v693 = vld [vmem:[%s648 + $0x48] sm:$0xf]
      %v694 = vsel %vm650, %v436, %v693
      %695 = vst [vmem:[%s648 + $0x48] sm:$0xf] %v694
      %696 = vst.msk [vmem:[%s648 + $0x4c] sm:$0xf] %vm172, %v445
      %v697 = vld [vmem:[%s648 + $0x50] sm:$0x1]
      %v698 = vsel %vm183, %v446, %v697
      %699 = vst [vmem:[%s648 + $0x50] sm:$0x1] %v698
      %v700 = vld [vmem:[%s648 + $0x54] sm:$0xf]
      %v701 = vsel %vm650, %v453, %v700
      %702 = vst [vmem:[%s648 + $0x54] sm:$0xf] %v701
      %703 = vst.msk [vmem:[%s648 + $0x58] sm:$0xf] %vm172, %v462
      %v704 = vld [vmem:[%s648 + $0x5c] sm:$0x1]
      %v705 = vsel %vm183, %v463, %v704
      %706 = vst [vmem:[%s648 + $0x5c] sm:$0x1] %v705
      %v707 = vld [vmem:[%s648 + $0x60] sm:$0xf]
      %v708 = vsel %vm650, %v470, %v707
      %709 = vst [vmem:[%s648 + $0x60] sm:$0xf] %v708
      %710 = vst.msk [vmem:[%s648 + $0x64] sm:$0xf] %vm172, %v479
      %v711 = vld [vmem:[%s648 + $0x68] sm:$0x1]
      %v712 = vsel %vm183, %v480, %v711
      %713 = vst [vmem:[%s648 + $0x68] sm:$0x1] %v712
      %v714 = vld [vmem:[%s648 + $0x6c] sm:$0xf]
      %v715 = vsel %vm650, %v487, %v714
      %716 = vst [vmem:[%s648 + $0x6c] sm:$0xf] %v715
      %717 = vst.msk [vmem:[%s648 + $0x70] sm:$0xf] %vm172, %v496
      %v718 = vld [vmem:[%s648 + $0x74] sm:$0x1]
      %v719 = vsel %vm183, %v497, %v718
      %720 = vst [vmem:[%s648 + $0x74] sm:$0x1] %v719
      %v721 = vld [vmem:[%s648 + $0x78] sm:$0xf]
      %v722 = vsel %vm650, %v504, %v721
      %723 = vst [vmem:[%s648 + $0x78] sm:$0xf] %v722
      %724 = vst.msk [vmem:[%s648 + $0x7c] sm:$0xf] %vm172, %v513
      %v725 = vld [vmem:[%s648 + $0x80] sm:$0x1]
      %v726 = vsel %vm183, %v514, %v725
      %727 = vst [vmem:[%s648 + $0x80] sm:$0x1] %v726
      %v728 = vld [vmem:[%s648 + $0x84] sm:$0xf]
      %v729 = vsel %vm650, %v521, %v728
      %730 = vst [vmem:[%s648 + $0x84] sm:$0xf] %v729
      %731 = vst.msk [vmem:[%s648 + $0x88] sm:$0xf] %vm172, %v530
      %v732 = vld [vmem:[%s648 + $0x8c] sm:$0x1]
      %v733 = vsel %vm183, %v531, %v732
      %734 = vst [vmem:[%s648 + $0x8c] sm:$0x1] %v733
      %v735 = vld [vmem:[%s648 + $0x90] sm:$0xf]
      %v736 = vsel %vm650, %v538, %v735
      %737 = vst [vmem:[%s648 + $0x90] sm:$0xf] %v736
      %738 = vst.msk [vmem:[%s648 + $0x94] sm:$0xf] %vm172, %v547
      %v739 = vld [vmem:[%s648 + $0x98] sm:$0x1]
      %v740 = vsel %vm183, %v548, %v739
      %741 = vst [vmem:[%s648 + $0x98] sm:$0x1] %v740
      %v742 = vld [vmem:[%s648 + $0x9c] sm:$0xf]
      %v743 = vsel %vm650, %v555, %v742
      %744 = vst [vmem:[%s648 + $0x9c] sm:$0xf] %v743
      %745 = vst.msk [vmem:[%s648 + $0xa0] sm:$0xf] %vm172, %v564
      %v746 = vld [vmem:[%s648 + $0xa4] sm:$0x1]
      %v747 = vsel %vm183, %v565, %v746
      %748 = vst [vmem:[%s648 + $0xa4] sm:$0x1] %v747
      %v749 = vld [vmem:[%s648 + $0xa8] sm:$0xf]
      %v750 = vsel %vm650, %v572, %v749
      %751 = vst [vmem:[%s648 + $0xa8] sm:$0xf] %v750
      %752 = vst.msk [vmem:[%s648 + $0xac] sm:$0xf] %vm172, %v581
      %v753 = vld [vmem:[%s648 + $0xb0] sm:$0x1]
      %v754 = vsel %vm183, %v582, %v753
      %755 = vst [vmem:[%s648 + $0xb0] sm:$0x1] %v754
      %v756 = vld [vmem:[%s648 + $0xb4] sm:$0xf]
      %v757 = vsel %vm650, %v589, %v756
      %758 = vst [vmem:[%s648 + $0xb4] sm:$0xf] %v757
      %759 = vst.msk [vmem:[%s648 + $0xb8] sm:$0xf] %vm172, %v598
      %v760 = vld [vmem:[%s648 + $0xbc] sm:$0x1]
      %v761 = vsel %vm183, %v599, %v760
      %762 = vst [vmem:[%s648 + $0xbc] sm:$0x1] %v761
      %v763 = vld [vmem:[%s2] sm:$0x1]
      %v764 = vld [vmem:[#allocation2] sm:$0xf]
      %v765 = vld [vmem:[#allocation2 + $0x4] sm:$0xf]
      %v766 = vld [vmem:[#allocation2 + $0xc] sm:$0xf]
      %v767 = vld [vmem:[#allocation2 + $0x10] sm:$0xf]
      %v768 = vld [vmem:[#allocation2 + $0x18] sm:$0xf]
      %v769 = vld [vmem:[#allocation2 + $0x1c] sm:$0xf]
      %v770 = vld [vmem:[#allocation2 + $0x24] sm:$0xf]
      %v771 = vld [vmem:[#allocation2 + $0x28] sm:$0xf]
      %v772 = vld [vmem:[#allocation2 + $0x30] sm:$0xf]
      %v773 = vld [vmem:[#allocation2 + $0x34] sm:$0xf]
      %v774 = vld [vmem:[#allocation2 + $0x3c] sm:$0xf]
      %v775 = vld [vmem:[#allocation2 + $0x40] sm:$0xf]
      %v776 = vld [vmem:[#allocation2 + $0x48] sm:$0xf]
      %v777 = vld [vmem:[#allocation2 + $0x4c] sm:$0xf]
      %v778 = vld [vmem:[#allocation2 + $0x54] sm:$0xf]
      %v779 = vld [vmem:[#allocation2 + $0x58] sm:$0xf]
      %v780 = vld [vmem:[#allocation2 + $0x60] sm:$0xf]
      %v781 = vld [vmem:[#allocation2 + $0x64] sm:$0xf]
      %v782 = vld [vmem:[#allocation2 + $0x6c] sm:$0xf]
      %v783 = vld [vmem:[#allocation2 + $0x70] sm:$0xf]
      %v784 = vld [vmem:[#allocation2 + $0x78] sm:$0xf]
      %v785 = vld [vmem:[#allocation2 + $0x7c] sm:$0xf]
      %v786 = vld [vmem:[#allocation2 + $0x84] sm:$0xf]
      %v787 = vld [vmem:[#allocation2 + $0x88] sm:$0xf]
      %v788 = vld [vmem:[#allocation2 + $0x90] sm:$0xf]
      %v789 = vld [vmem:[#allocation2 + $0x94] sm:$0xf]
      %v790 = vld [vmem:[#allocation2 + $0x9c] sm:$0xf]
      %v791 = vld [vmem:[#allocation2 + $0xa0] sm:$0xf]
      %v792 = vld [vmem:[#allocation2 + $0xa8] sm:$0xf]
      %v793 = vld [vmem:[#allocation2 + $0xac] sm:$0xf]
      %v794 = vld [vmem:[#allocation2 + $0xb4] sm:$0xf]
      %v795 = vld [vmem:[#allocation2 + $0xb8] sm:$0xf]
      %v796 = vld [vmem:[#allocation2 + $0x8] sm:$0x1]
      %v797 = vld [vmem:[#allocation2 + $0x14] sm:$0x1]
      %v798 = vld [vmem:[#allocation2 + $0x20] sm:$0x1]
      %v799 = vld [vmem:[#allocation2 + $0x2c] sm:$0x1]
      %v800 = vld [vmem:[#allocation2 + $0x38] sm:$0x1]
      %v801 = vld [vmem:[#allocation2 + $0x44] sm:$0x1]
      %v802 = vld [vmem:[#allocation2 + $0x50] sm:$0x1]
      %v803 = vld [vmem:[#allocation2 + $0x5c] sm:$0x1]
      %v804 = vld [vmem:[#allocation2 + $0x68] sm:$0x1]
      %v805 = vld [vmem:[#allocation2 + $0x74] sm:$0x1]
      %v806 = vld [vmem:[#allocation2 + $0x80] sm:$0x1]
      %v807 = vld [vmem:[#allocation2 + $0x8c] sm:$0x1]
      %v808 = vld [vmem:[#allocation2 + $0x98] sm:$0x1]
      %v809 = vld [vmem:[#allocation2 + $0xa4] sm:$0x1]
      %v810 = vld [vmem:[#allocation2 + $0xb0] sm:$0x1]
      %v811 = vld [vmem:[#allocation2 + $0xbc] sm:$0x1]
      %v812 = vld [vmem:[%s648] sm:$0xf]
      %v813 = vld [vmem:[%s648 + $0x4] sm:$0xf]
      %v814 = vld [vmem:[%s648 + $0xc] sm:$0xf]
      %v815 = vld [vmem:[%s648 + $0x10] sm:$0xf]
      %v816 = vld [vmem:[%s648 + $0x18] sm:$0xf]
      %v817 = vld [vmem:[%s648 + $0x1c] sm:$0xf]
      %v818 = vld [vmem:[%s648 + $0x24] sm:$0xf]
      %v819 = vld [vmem:[%s648 + $0x28] sm:$0xf]
      %v820 = vld [vmem:[%s648 + $0x30] sm:$0xf]
      %v821 = vld [vmem:[%s648 + $0x34] sm:$0xf]
      %v822 = vld [vmem:[%s648 + $0x3c] sm:$0xf]
      %v823 = vld [vmem:[%s648 + $0x40] sm:$0xf]
      %v824 = vld [vmem:[%s648 + $0x48] sm:$0xf]
      %v825 = vld [vmem:[%s648 + $0x4c] sm:$0xf]
      %v826 = vld [vmem:[%s648 + $0x54] sm:$0xf]
      %v827 = vld [vmem:[%s648 + $0x58] sm:$0xf]
      %v828 = vld [vmem:[%s648 + $0x60] sm:$0xf]
      %v829 = vld [vmem:[%s648 + $0x64] sm:$0xf]
      %v830 = vld [vmem:[%s648 + $0x6c] sm:$0xf]
      %v831 = vld [vmem:[%s648 + $0x70] sm:$0xf]
      %v832 = vld [vmem:[%s648 + $0x78] sm:$0xf]
      %v833 = vld [vmem:[%s648 + $0x7c] sm:$0xf]
      %v834 = vld [vmem:[%s648 + $0x84] sm:$0xf]
      %v835 = vld [vmem:[%s648 + $0x88] sm:$0xf]
      %v836 = vld [vmem:[%s648 + $0x90] sm:$0xf]
      %v837 = vld [vmem:[%s648 + $0x94] sm:$0xf]
      %v838 = vld [vmem:[%s648 + $0x9c] sm:$0xf]
      %v839 = vld [vmem:[%s648 + $0xa0] sm:$0xf]
      %v840 = vld [vmem:[%s648 + $0xa8] sm:$0xf]
      %v841 = vld [vmem:[%s648 + $0xac] sm:$0xf]
      %v842 = vld [vmem:[%s648 + $0xb4] sm:$0xf]
      %v843 = vld [vmem:[%s648 + $0xb8] sm:$0xf]
      %v844 = vld [vmem:[%s648 + $0x8] sm:$0x1]
      %v845 = vld [vmem:[%s648 + $0x14] sm:$0x1]
      %v846 = vld [vmem:[%s648 + $0x20] sm:$0x1]
      %v847 = vld [vmem:[%s648 + $0x2c] sm:$0x1]
      %v848 = vld [vmem:[%s648 + $0x38] sm:$0x1]
      %v849 = vld [vmem:[%s648 + $0x44] sm:$0x1]
      %v850 = vld [vmem:[%s648 + $0x50] sm:$0x1]
      %v851 = vld [vmem:[%s648 + $0x5c] sm:$0x1]
      %v852 = vld [vmem:[%s648 + $0x68] sm:$0x1]
      %v853 = vld [vmem:[%s648 + $0x74] sm:$0x1]
      %v854 = vld [vmem:[%s648 + $0x80] sm:$0x1]
      %v855 = vld [vmem:[%s648 + $0x8c] sm:$0x1]
      %v856 = vld [vmem:[%s648 + $0x98] sm:$0x1]
      %v857 = vld [vmem:[%s648 + $0xa4] sm:$0x1]
      %v858 = vld [vmem:[%s648 + $0xb0] sm:$0x1]
      %v859 = vld [vmem:[%s648 + $0xbc] sm:$0x1]
      %v892 = vunpack.c.l.b16 %v764
      %v893 = vunpack.c.l.b16 %v765
      %v894 = vunpack.c.l.b16 %v766
      %v895 = vunpack.c.l.b16 %v767
      %v896 = vunpack.c.l.b16 %v768
      %v897 = vunpack.c.l.b16 %v769
      %v898 = vunpack.c.l.b16 %v770
      %v899 = vunpack.c.l.b16 %v771
      %v900 = vunpack.c.l.b16 %v772
      %v901 = vunpack.c.l.b16 %v773
      %v902 = vunpack.c.l.b16 %v774
      %v903 = vunpack.c.l.b16 %v775
      %v904 = vunpack.c.l.b16 %v776
      %v905 = vunpack.c.l.b16 %v777
      %v906 = vunpack.c.l.b16 %v778
      %v907 = vunpack.c.l.b16 %v779
      %v908 = vunpack.c.l.b16 %v780
      %v909 = vunpack.c.l.b16 %v781
      %v910 = vunpack.c.l.b16 %v782
      %v911 = vunpack.c.l.b16 %v783
      %v912 = vunpack.c.l.b16 %v784
      %v913 = vunpack.c.l.b16 %v785
      %v914 = vunpack.c.l.b16 %v786
      %v915 = vunpack.c.l.b16 %v787
      %v916 = vunpack.c.l.b16 %v788
      %v917 = vunpack.c.l.b16 %v789
      %v918 = vunpack.c.l.b16 %v790
      %v919 = vunpack.c.l.b16 %v791
      %v920 = vunpack.c.l.b16 %v792
      %v921 = vunpack.c.l.b16 %v793
      %v922 = vunpack.c.l.b16 %v794
      %v923 = vunpack.c.l.b16 %v795
      %v924 = vpack.c.b16 %v893, %v892
      %v925 = vpack.c.b16 %v895, %v894
      %v926 = vpack.c.b16 %v897, %v896
      %v927 = vpack.c.b16 %v899, %v898
      %v928 = vpack.c.b16 %v901, %v900
      %v929 = vpack.c.b16 %v903, %v902
      %v930 = vpack.c.b16 %v905, %v904
      %v931 = vpack.c.b16 %v907, %v906
      %v932 = vpack.c.b16 %v909, %v908
      %v933 = vpack.c.b16 %v911, %v910
      %v934 = vpack.c.b16 %v913, %v912
      %v935 = vpack.c.b16 %v915, %v914
      %v936 = vpack.c.b16 %v917, %v916
      %v937 = vpack.c.b16 %v919, %v918
      %v938 = vpack.c.b16 %v921, %v920
      %v939 = vpack.c.b16 %v923, %v922
      %v956 = vunpack.c.l.b16 %v796
      %v957 = vunpack.c.l.b16 %v797
      %v958 = vunpack.c.l.b16 %v798
      %v959 = vunpack.c.l.b16 %v799
      %v960 = vunpack.c.l.b16 %v800
      %v961 = vunpack.c.l.b16 %v801
      %v962 = vunpack.c.l.b16 %v802
      %v963 = vunpack.c.l.b16 %v803
      %v964 = vunpack.c.l.b16 %v804
      %v965 = vunpack.c.l.b16 %v805
      %v966 = vunpack.c.l.b16 %v806
      %v967 = vunpack.c.l.b16 %v807
      %v968 = vunpack.c.l.b16 %v808
      %v969 = vunpack.c.l.b16 %v809
      %v970 = vunpack.c.l.b16 %v810
      %v971 = vunpack.c.l.b16 %v811
      %v972 = vpack.c.b16 %v956, %v956
      %v973 = vpack.c.b16 %v957, %v957
      %v974 = vpack.c.b16 %v958, %v958
      %v975 = vpack.c.b16 %v959, %v959
      %v976 = vpack.c.b16 %v960, %v960
      %v977 = vpack.c.b16 %v961, %v961
      %v978 = vpack.c.b16 %v962, %v962
      %v979 = vpack.c.b16 %v963, %v963
      %v980 = vpack.c.b16 %v964, %v964
      %v981 = vpack.c.b16 %v965, %v965
      %v982 = vpack.c.b16 %v966, %v966
      %v983 = vpack.c.b16 %v967, %v967
      %v984 = vpack.c.b16 %v968, %v968
      %v985 = vpack.c.b16 %v969, %v969
      %v986 = vpack.c.b16 %v970, %v970
      %v987 = vpack.c.b16 %v971, %v971
      %vm988 = vsmask.f32 7424
      %v990 = vshrl.u32 %v924, 16
      %v992 = vshll.u32 %v924, 16
      %v994 = vrot.slane %v992, 1
      %v995 = vor.u32 %v990, %v994
      %v997 = vshll.u32 %v972, 16
      %v999 = vrot.slane %v997, 1
      %v1000 = vsel %vm988, %v995, %v999
      %v1002 = vshrl.u32 %v925, 16
      %v1004 = vshll.u32 %v925, 16
      %v1006 = vrot.slane %v1004, 1
      %v1007 = vor.u32 %v1002, %v1006
      %v1009 = vshll.u32 %v973, 16
      %v1011 = vrot.slane %v1009, 1
      %v1012 = vsel %vm988, %v1007, %v1011
      %v1014 = vshrl.u32 %v926, 16
      %v1016 = vshll.u32 %v926, 16
      %v1018 = vrot.slane %v1016, 1
      %v1019 = vor.u32 %v1014, %v1018
      %v1021 = vshll.u32 %v974, 16
      %v1023 = vrot.slane %v1021, 1
      %v1024 = vsel %vm988, %v1019, %v1023
      %v1026 = vshrl.u32 %v927, 16
      %v1028 = vshll.u32 %v927, 16
      %v1030 = vrot.slane %v1028, 1
      %v1031 = vor.u32 %v1026, %v1030
      %v1033 = vshll.u32 %v975, 16
      %v1035 = vrot.slane %v1033, 1
      %v1036 = vsel %vm988, %v1031, %v1035
      %v1038 = vshrl.u32 %v928, 16
      %v1040 = vshll.u32 %v928, 16
      %v1042 = vrot.slane %v1040, 1
      %v1043 = vor.u32 %v1038, %v1042
      %v1045 = vshll.u32 %v976, 16
      %v1047 = vrot.slane %v1045, 1
      %v1048 = vsel %vm988, %v1043, %v1047
      %v1050 = vshrl.u32 %v929, 16
      %v1052 = vshll.u32 %v929, 16
      %v1054 = vrot.slane %v1052, 1
      %v1055 = vor.u32 %v1050, %v1054
      %v1057 = vshll.u32 %v977, 16
      %v1059 = vrot.slane %v1057, 1
      %v1060 = vsel %vm988, %v1055, %v1059
      %v1062 = vshrl.u32 %v930, 16
      %v1064 = vshll.u32 %v930, 16
      %v1066 = vrot.slane %v1064, 1
      %v1067 = vor.u32 %v1062, %v1066
      %v1069 = vshll.u32 %v978, 16
      %v1071 = vrot.slane %v1069, 1
      %v1072 = vsel %vm988, %v1067, %v1071
      %v1074 = vshrl.u32 %v931, 16
      %v1076 = vshll.u32 %v931, 16
      %v1078 = vrot.slane %v1076, 1
      %v1079 = vor.u32 %v1074, %v1078
      %v1081 = vshll.u32 %v979, 16
      %v1083 = vrot.slane %v1081, 1
      %v1084 = vsel %vm988, %v1079, %v1083
      %v1086 = vshrl.u32 %v932, 16
      %v1088 = vshll.u32 %v932, 16
      %v1090 = vrot.slane %v1088, 1
      %v1091 = vor.u32 %v1086, %v1090
      %v1093 = vshll.u32 %v980, 16
      %v1095 = vrot.slane %v1093, 1
      %v1096 = vsel %vm988, %v1091, %v1095
      %v1098 = vshrl.u32 %v933, 16
      %v1100 = vshll.u32 %v933, 16
      %v1102 = vrot.slane %v1100, 1
      %v1103 = vor.u32 %v1098, %v1102
      %v1105 = vshll.u32 %v981, 16
      %v1107 = vrot.slane %v1105, 1
      %v1108 = vsel %vm988, %v1103, %v1107
      %v1110 = vshrl.u32 %v934, 16
      %v1112 = vshll.u32 %v934, 16
      %v1114 = vrot.slane %v1112, 1
      %v1115 = vor.u32 %v1110, %v1114
      %v1117 = vshll.u32 %v982, 16
      %v1119 = vrot.slane %v1117, 1
      %v1120 = vsel %vm988, %v1115, %v1119
      %v1122 = vshrl.u32 %v935, 16
      %v1124 = vshll.u32 %v935, 16
      %v1126 = vrot.slane %v1124, 1
      %v1127 = vor.u32 %v1122, %v1126
      %v1129 = vshll.u32 %v983, 16
      %v1131 = vrot.slane %v1129, 1
      %v1132 = vsel %vm988, %v1127, %v1131
      %v1134 = vshrl.u32 %v936, 16
      %v1136 = vshll.u32 %v936, 16
      %v1138 = vrot.slane %v1136, 1
      %v1139 = vor.u32 %v1134, %v1138
      %v1141 = vshll.u32 %v984, 16
      %v1143 = vrot.slane %v1141, 1
      %v1144 = vsel %vm988, %v1139, %v1143
      %v1146 = vshrl.u32 %v937, 16
      %v1148 = vshll.u32 %v937, 16
      %v1150 = vrot.slane %v1148, 1
      %v1151 = vor.u32 %v1146, %v1150
      %v1153 = vshll.u32 %v985, 16
      %v1155 = vrot.slane %v1153, 1
      %v1156 = vsel %vm988, %v1151, %v1155
      %v1158 = vshrl.u32 %v938, 16
      %v1160 = vshll.u32 %v938, 16
      %v1162 = vrot.slane %v1160, 1
      %v1163 = vor.u32 %v1158, %v1162
      %v1165 = vshll.u32 %v986, 16
      %v1167 = vrot.slane %v1165, 1
      %v1168 = vsel %vm988, %v1163, %v1167
      %v1170 = vshrl.u32 %v939, 16
      %v1172 = vshll.u32 %v939, 16
      %v1174 = vrot.slane %v1172, 1
      %v1175 = vor.u32 %v1170, %v1174
      %v1177 = vshll.u32 %v987, 16
      %v1179 = vrot.slane %v1177, 1
      %v1180 = vsel %vm988, %v1175, %v1179
      %1181 = vrot.lane.b32.xlu0 %v1000, 4
      %v1182 = vpop.permute.xlu0 %1181
      %1183 = vrot.lane.b32.xlu0 %v1012, 4
      %v1184 = vpop.permute.xlu0 %1183
      %1185 = vrot.lane.b32.xlu0 %v1024, 4
      %v1186 = vpop.permute.xlu0 %1185
      %1187 = vrot.lane.b32.xlu0 %v1036, 4
      %v1188 = vpop.permute.xlu0 %1187
      %1189 = vrot.lane.b32.xlu0 %v1048, 4
      %v1190 = vpop.permute.xlu0 %1189
      %1191 = vrot.lane.b32.xlu0 %v1060, 4
      %v1192 = vpop.permute.xlu0 %1191
      %1193 = vrot.lane.b32.xlu0 %v1072, 4
      %v1194 = vpop.permute.xlu0 %1193
      %1195 = vrot.lane.b32.xlu0 %v1084, 4
      %v1196 = vpop.permute.xlu0 %1195
      %1197 = vrot.lane.b32.xlu0 %v1096, 4
      %v1198 = vpop.permute.xlu0 %1197
      %1199 = vrot.lane.b32.xlu0 %v1108, 4
      %v1200 = vpop.permute.xlu0 %1199
      %1201 = vrot.lane.b32.xlu0 %v1120, 4
      %v1202 = vpop.permute.xlu0 %1201
      %1203 = vrot.lane.b32.xlu0 %v1132, 4
      %v1204 = vpop.permute.xlu0 %1203
      %1205 = vrot.lane.b32.xlu0 %v1144, 4
      %v1206 = vpop.permute.xlu0 %1205
      %1207 = vrot.lane.b32.xlu0 %v1156, 4
      %v1208 = vpop.permute.xlu0 %1207
      %1209 = vrot.lane.b32.xlu0 %v1168, 4
      %v1210 = vpop.permute.xlu0 %1209
      %1211 = vrot.lane.b32.xlu0 %v1180, 4
      %v1212 = vpop.permute.xlu0 %1211
      %v1245 = vunpack.c.l.b16 %v812
      %v1246 = vunpack.c.l.b16 %v813
      %v1247 = vunpack.c.l.b16 %v814
      %v1248 = vunpack.c.l.b16 %v815
      %v1249 = vunpack.c.l.b16 %v816
      %v1250 = vunpack.c.l.b16 %v817
      %v1251 = vunpack.c.l.b16 %v818
      %v1252 = vunpack.c.l.b16 %v819
      %v1253 = vunpack.c.l.b16 %v820
      %v1254 = vunpack.c.l.b16 %v821
      %v1255 = vunpack.c.l.b16 %v822
      %v1256 = vunpack.c.l.b16 %v823
      %v1257 = vunpack.c.l.b16 %v824
      %v1258 = vunpack.c.l.b16 %v825
      %v1259 = vunpack.c.l.b16 %v826
      %v1260 = vunpack.c.l.b16 %v827
      %v1261 = vunpack.c.l.b16 %v828
      %v1262 = vunpack.c.l.b16 %v829
      %v1263 = vunpack.c.l.b16 %v830
      %v1264 = vunpack.c.l.b16 %v831
      %v1265 = vunpack.c.l.b16 %v832
      %v1266 = vunpack.c.l.b16 %v833
      %v1267 = vunpack.c.l.b16 %v834
      %v1268 = vunpack.c.l.b16 %v835
      %v1269 = vunpack.c.l.b16 %v836
      %v1270 = vunpack.c.l.b16 %v837
      %v1271 = vunpack.c.l.b16 %v838
      %v1272 = vunpack.c.l.b16 %v839
      %v1273 = vunpack.c.l.b16 %v840
      %v1274 = vunpack.c.l.b16 %v841
      %v1275 = vunpack.c.l.b16 %v842
      %v1276 = vunpack.c.l.b16 %v843
      %v1277 = vpack.c.b16 %v1246, %v1245
      %v1278 = vpack.c.b16 %v1248, %v1247
      %v1279 = vpack.c.b16 %v1250, %v1249
      %v1280 = vpack.c.b16 %v1252, %v1251
      %v1281 = vpack.c.b16 %v1254, %v1253
      %v1282 = vpack.c.b16 %v1256, %v1255
      %v1283 = vpack.c.b16 %v1258, %v1257
      %v1284 = vpack.c.b16 %v1260, %v1259
      %v1285 = vpack.c.b16 %v1262, %v1261
      %v1286 = vpack.c.b16 %v1264, %v1263
      %v1287 = vpack.c.b16 %v1266, %v1265
      %v1288 = vpack.c.b16 %v1268, %v1267
      %v1289 = vpack.c.b16 %v1270, %v1269
      %v1290 = vpack.c.b16 %v1272, %v1271
      %v1291 = vpack.c.b16 %v1274, %v1273
      %v1292 = vpack.c.b16 %v1276, %v1275
      %1293 = vrot.lane.b32.xlu0 %v1277, 8
      %v1294 = vpop.permute.xlu0 %1293
      %1295 = vrot.lane.b32.xlu0 %v1278, 8
      %v1296 = vpop.permute.xlu0 %1295
      %1297 = vrot.lane.b32.xlu0 %v1279, 8
      %v1298 = vpop.permute.xlu0 %1297
      %1299 = vrot.lane.b32.xlu0 %v1280, 8
      %v1300 = vpop.permute.xlu0 %1299
      %1301 = vrot.lane.b32.xlu0 %v1281, 8
      %v1302 = vpop.permute.xlu0 %1301
      %1303 = vrot.lane.b32.xlu0 %v1282, 8
      %v1304 = vpop.permute.xlu0 %1303
      %1305 = vrot.lane.b32.xlu0 %v1283, 8
      %v1306 = vpop.permute.xlu0 %1305
      %1307 = vrot.lane.b32.xlu0 %v1284, 8
      %v1308 = vpop.permute.xlu0 %1307
      %1309 = vrot.lane.b32.xlu0 %v1285, 8
      %v1310 = vpop.permute.xlu0 %1309
      %1311 = vrot.lane.b32.xlu0 %v1286, 8
      %v1312 = vpop.permute.xlu0 %1311
      %1313 = vrot.lane.b32.xlu0 %v1287, 8
      %v1314 = vpop.permute.xlu0 %1313
      %1315 = vrot.lane.b32.xlu0 %v1288, 8
      %v1316 = vpop.permute.xlu0 %1315
      %1317 = vrot.lane.b32.xlu0 %v1289, 8
      %v1318 = vpop.permute.xlu0 %1317
      %1319 = vrot.lane.b32.xlu0 %v1290, 8
      %v1320 = vpop.permute.xlu0 %1319
      %1321 = vrot.lane.b32.xlu0 %v1291, 8
      %v1322 = vpop.permute.xlu0 %1321
      %1323 = vrot.lane.b32.xlu0 %v1292, 8
      %v1324 = vpop.permute.xlu0 %1323
      %v1341 = vunpack.c.l.b16 %v844
      %v1342 = vunpack.c.l.b16 %v845
      %v1343 = vunpack.c.l.b16 %v846
      %v1344 = vunpack.c.l.b16 %v847
      %v1345 = vunpack.c.l.b16 %v848
      %v1346 = vunpack.c.l.b16 %v849
      %v1347 = vunpack.c.l.b16 %v850
      %v1348 = vunpack.c.l.b16 %v851
      %v1349 = vunpack.c.l.b16 %v852
      %v1350 = vunpack.c.l.b16 %v853
      %v1351 = vunpack.c.l.b16 %v854
      %v1352 = vunpack.c.l.b16 %v855
      %v1353 = vunpack.c.l.b16 %v856
      %v1354 = vunpack.c.l.b16 %v857
      %v1355 = vunpack.c.l.b16 %v858
      %v1356 = vunpack.c.l.b16 %v859
      %v1357 = vpack.c.b16 %v1341, %v1341
      %v1358 = vpack.c.b16 %v1342, %v1342
      %v1359 = vpack.c.b16 %v1343, %v1343
      %v1360 = vpack.c.b16 %v1344, %v1344
      %v1361 = vpack.c.b16 %v1345, %v1345
      %v1362 = vpack.c.b16 %v1346, %v1346
      %v1363 = vpack.c.b16 %v1347, %v1347
      %v1364 = vpack.c.b16 %v1348, %v1348
      %v1365 = vpack.c.b16 %v1349, %v1349
      %v1366 = vpack.c.b16 %v1350, %v1350
      %v1367 = vpack.c.b16 %v1351, %v1351
      %v1368 = vpack.c.b16 %v1352, %v1352
      %v1369 = vpack.c.b16 %v1353, %v1353
      %v1370 = vpack.c.b16 %v1354, %v1354
      %v1371 = vpack.c.b16 %v1355, %v1355
      %v1372 = vpack.c.b16 %v1356, %v1356
      %v1374 = vshrl.u32 %v1277, 16
      %v1376 = vshll.u32 %v1277, 16
      %v1378 = vrot.slane %v1376, 1
      %v1379 = vor.u32 %v1374, %v1378
      %v1381 = vshll.u32 %v1357, 16
      %v1383 = vrot.slane %v1381, 1
      %v1384 = vsel %vm988, %v1379, %v1383
      %v1386 = vshrl.u32 %v1278, 16
      %v1388 = vshll.u32 %v1278, 16
      %v1390 = vrot.slane %v1388, 1
      %v1391 = vor.u32 %v1386, %v1390
      %v1393 = vshll.u32 %v1358, 16
      %v1395 = vrot.slane %v1393, 1
      %v1396 = vsel %vm988, %v1391, %v1395
      %v1398 = vshrl.u32 %v1279, 16
      %v1400 = vshll.u32 %v1279, 16
      %v1402 = vrot.slane %v1400, 1
      %v1403 = vor.u32 %v1398, %v1402
      %v1405 = vshll.u32 %v1359, 16
      %v1407 = vrot.slane %v1405, 1
      %v1408 = vsel %vm988, %v1403, %v1407
      %v1410 = vshrl.u32 %v1280, 16
      %v1412 = vshll.u32 %v1280, 16
      %v1414 = vrot.slane %v1412, 1
      %v1415 = vor.u32 %v1410, %v1414
      %v1417 = vshll.u32 %v1360, 16
      %v1419 = vrot.slane %v1417, 1
      %v1420 = vsel %vm988, %v1415, %v1419
      %v1422 = vshrl.u32 %v1281, 16
      %v1424 = vshll.u32 %v1281, 16
      %v1426 = vrot.slane %v1424, 1
      %v1427 = vor.u32 %v1422, %v1426
      %v1429 = vshll.u32 %v1361, 16
      %v1431 = vrot.slane %v1429, 1
      %v1432 = vsel %vm988, %v1427, %v1431
      %v1434 = vshrl.u32 %v1282, 16
      %v1436 = vshll.u32 %v1282, 16
      %v1438 = vrot.slane %v1436, 1
      %v1439 = vor.u32 %v1434, %v1438
      %v1441 = vshll.u32 %v1362, 16
      %v1443 = vrot.slane %v1441, 1
      %v1444 = vsel %vm988, %v1439, %v1443
      %v1446 = vshrl.u32 %v1283, 16
      %v1448 = vshll.u32 %v1283, 16
      %v1450 = vrot.slane %v1448, 1
      %v1451 = vor.u32 %v1446, %v1450
      %v1453 = vshll.u32 %v1363, 16
      %v1455 = vrot.slane %v1453, 1
      %v1456 = vsel %vm988, %v1451, %v1455
      %v1458 = vshrl.u32 %v1284, 16
      %v1460 = vshll.u32 %v1284, 16
      %v1462 = vrot.slane %v1460, 1
      %v1463 = vor.u32 %v1458, %v1462
      %v1465 = vshll.u32 %v1364, 16
      %v1467 = vrot.slane %v1465, 1
      %v1468 = vsel %vm988, %v1463, %v1467
      %v1470 = vshrl.u32 %v1285, 16
      %v1472 = vshll.u32 %v1285, 16
      %v1474 = vrot.slane %v1472, 1
      %v1475 = vor.u32 %v1470, %v1474
      %v1477 = vshll.u32 %v1365, 16
      %v1479 = vrot.slane %v1477, 1
      %v1480 = vsel %vm988, %v1475, %v1479
      %v1482 = vshrl.u32 %v1286, 16
      %v1484 = vshll.u32 %v1286, 16
      %v1486 = vrot.slane %v1484, 1
      %v1487 = vor.u32 %v1482, %v1486
      %v1489 = vshll.u32 %v1366, 16
      %v1491 = vrot.slane %v1489, 1
      %v1492 = vsel %vm988, %v1487, %v1491
      %v1494 = vshrl.u32 %v1287, 16
      %v1496 = vshll.u32 %v1287, 16
      %v1498 = vrot.slane %v1496, 1
      %v1499 = vor.u32 %v1494, %v1498
      %v1501 = vshll.u32 %v1367, 16
      %v1503 = vrot.slane %v1501, 1
      %v1504 = vsel %vm988, %v1499, %v1503
      %v1506 = vshrl.u32 %v1288, 16
      %v1508 = vshll.u32 %v1288, 16
      %v1510 = vrot.slane %v1508, 1
      %v1511 = vor.u32 %v1506, %v1510
      %v1513 = vshll.u32 %v1368, 16
      %v1515 = vrot.slane %v1513, 1
      %v1516 = vsel %vm988, %v1511, %v1515
      %v1518 = vshrl.u32 %v1289, 16
      %v1520 = vshll.u32 %v1289, 16
      %v1522 = vrot.slane %v1520, 1
      %v1523 = vor.u32 %v1518, %v1522
      %v1525 = vshll.u32 %v1369, 16
      %v1527 = vrot.slane %v1525, 1
      %v1528 = vsel %vm988, %v1523, %v1527
      %v1530 = vshrl.u32 %v1290, 16
      %v1532 = vshll.u32 %v1290, 16
      %v1534 = vrot.slane %v1532, 1
      %v1535 = vor.u32 %v1530, %v1534
      %v1537 = vshll.u32 %v1370, 16
      %v1539 = vrot.slane %v1537, 1
      %v1540 = vsel %vm988, %v1535, %v1539
      %v1542 = vshrl.u32 %v1291, 16
      %v1544 = vshll.u32 %v1291, 16
      %v1546 = vrot.slane %v1544, 1
      %v1547 = vor.u32 %v1542, %v1546
      %v1549 = vshll.u32 %v1371, 16
      %v1551 = vrot.slane %v1549, 1
      %v1552 = vsel %vm988, %v1547, %v1551
      %v1554 = vshrl.u32 %v1292, 16
      %v1556 = vshll.u32 %v1292, 16
      %v1558 = vrot.slane %v1556, 1
      %v1559 = vor.u32 %v1554, %v1558
      %v1561 = vshll.u32 %v1372, 16
      %v1563 = vrot.slane %v1561, 1
      %v1564 = vsel %vm988, %v1559, %v1563
      %1565 = vrot.lane.b32.xlu0 %v1384, 12
      %v1566 = vpop.permute.xlu0 %1565
      %1567 = vrot.lane.b32.xlu0 %v1396, 12
      %v1568 = vpop.permute.xlu0 %1567
      %1569 = vrot.lane.b32.xlu0 %v1408, 12
      %v1570 = vpop.permute.xlu0 %1569
      %1571 = vrot.lane.b32.xlu0 %v1420, 12
      %v1572 = vpop.permute.xlu0 %1571
      %1573 = vrot.lane.b32.xlu0 %v1432, 12
      %v1574 = vpop.permute.xlu0 %1573
      %1575 = vrot.lane.b32.xlu0 %v1444, 12
      %v1576 = vpop.permute.xlu0 %1575
      %1577 = vrot.lane.b32.xlu0 %v1456, 12
      %v1578 = vpop.permute.xlu0 %1577
      %1579 = vrot.lane.b32.xlu0 %v1468, 12
      %v1580 = vpop.permute.xlu0 %1579
      %1581 = vrot.lane.b32.xlu0 %v1480, 12
      %v1582 = vpop.permute.xlu0 %1581
      %1583 = vrot.lane.b32.xlu0 %v1492, 12
      %v1584 = vpop.permute.xlu0 %1583
      %1585 = vrot.lane.b32.xlu0 %v1504, 12
      %v1586 = vpop.permute.xlu0 %1585
      %1587 = vrot.lane.b32.xlu0 %v1516, 12
      %v1588 = vpop.permute.xlu0 %1587
      %1589 = vrot.lane.b32.xlu0 %v1528, 12
      %v1590 = vpop.permute.xlu0 %1589
      %1591 = vrot.lane.b32.xlu0 %v1540, 12
      %v1592 = vpop.permute.xlu0 %1591
      %1593 = vrot.lane.b32.xlu0 %v1552, 12
      %v1594 = vpop.permute.xlu0 %1593
      %1595 = vrot.lane.b32.xlu0 %v1564, 12
      %v1596 = vpop.permute.xlu0 %1595
      %vm1597 = vcmask 31744
      %v1599 = vsel %vm1597, %v924, %v1182
      %v1601 = vsel %vm1597, %v925, %v1184
      %v1603 = vsel %vm1597, %v926, %v1186
      %v1605 = vsel %vm1597, %v927, %v1188
      %v1607 = vsel %vm1597, %v928, %v1190
      %v1609 = vsel %vm1597, %v929, %v1192
      %v1611 = vsel %vm1597, %v930, %v1194
      %v1613 = vsel %vm1597, %v931, %v1196
      %v1615 = vsel %vm1597, %v932, %v1198
      %v1617 = vsel %vm1597, %v933, %v1200
      %v1619 = vsel %vm1597, %v934, %v1202
      %v1621 = vsel %vm1597, %v935, %v1204
      %v1623 = vsel %vm1597, %v936, %v1206
      %v1625 = vsel %vm1597, %v937, %v1208
      %v1627 = vsel %vm1597, %v938, %v1210
      %v1629 = vsel %vm1597, %v939, %v1212
      %vm1630 = vcmask 64512
      %v1632 = vsel %vm1630, %v1599, %v1294
      %v1634 = vsel %vm1630, %v1601, %v1296
      %v1636 = vsel %vm1630, %v1603, %v1298
      %v1638 = vsel %vm1630, %v1605, %v1300
      %v1640 = vsel %vm1630, %v1607, %v1302
      %v1642 = vsel %vm1630, %v1609, %v1304
      %v1644 = vsel %vm1630, %v1611, %v1306
      %v1646 = vsel %vm1630, %v1613, %v1308
      %v1648 = vsel %vm1630, %v1615, %v1310
      %v1650 = vsel %vm1630, %v1617, %v1312
      %v1652 = vsel %vm1630, %v1619, %v1314
      %v1654 = vsel %vm1630, %v1621, %v1316
      %v1656 = vsel %vm1630, %v1623, %v1318
      %v1658 = vsel %vm1630, %v1625, %v1320
      %v1660 = vsel %vm1630, %v1627, %v1322
      %v1662 = vsel %vm1630, %v1629, %v1324
      %vm1663 = vcmask 97280
      %v1665 = vsel %vm1663, %v1632, %v1566
      %v1667 = vsel %vm1663, %v1634, %v1568
      %v1669 = vsel %vm1663, %v1636, %v1570
      %v1671 = vsel %vm1663, %v1638, %v1572
      %v1673 = vsel %vm1663, %v1640, %v1574
      %v1675 = vsel %vm1663, %v1642, %v1576
      %v1677 = vsel %vm1663, %v1644, %v1578
      %v1679 = vsel %vm1663, %v1646, %v1580
      %v1681 = vsel %vm1663, %v1648, %v1582
      %v1683 = vsel %vm1663, %v1650, %v1584
      %v1685 = vsel %vm1663, %v1652, %v1586
      %v1687 = vsel %vm1663, %v1654, %v1588
      %v1689 = vsel %vm1663, %v1656, %v1590
      %v1691 = vsel %vm1663, %v1658, %v1592
      %v1693 = vsel %vm1663, %v1660, %v1594
      %v1695 = vsel %vm1663, %v1662, %v1596
      %v1696 = vld [vmem:[%s1] sm:$0xf]
      %v1697 = vld [vmem:[%s1 + $0x4] sm:$0xf]
      %v1699 = vperm.slane %v763, 0
      %v1703 = vunpack.c.l.b16 %v1696
      %v1704 = vunpack.c.l.b16 %v1697
      %v1705 = vpack.c.b16 %v1704, %v1703
      %vm1707 = vcmask 130048
      %v1708 = vsel %vm1707, %v1665, 0
      %v1710 = vsel %vm1707, %v1667, 0
      %v1712 = vsel %vm1707, %v1669, 0
      %v1714 = vsel %vm1707, %v1671, 0
      %v1716 = vsel %vm1707, %v1673, 0
      %v1718 = vsel %vm1707, %v1675, 0
      %v1720 = vsel %vm1707, %v1677, 0
      %v1722 = vsel %vm1707, %v1679, 0
      %v1724 = vsel %vm1707, %v1681, 0
      %v1726 = vsel %vm1707, %v1683, 0
      %v1728 = vsel %vm1707, %v1685, 0
      %v1730 = vsel %vm1707, %v1687, 0
      %v1732 = vsel %vm1707, %v1689, 0
      %v1734 = vsel %vm1707, %v1691, 0
      %v1736 = vsel %vm1707, %v1693, 0
      %v1738 = vsel %vm1707, %v1695, 0
      %1740 = vmatpush.bf16.msra.mxu0 0
      %1741 = vmatpush.bf16.msra.mxu0 0
      %1742 = vmatpush.bf16.msra.mxu0 0
      %1743 = vmatpush.bf16.msra.mxu0 0
      %1744 = vmatpush.bf16.msra.mxu0 0
      %1745 = vmatpush.bf16.msra.mxu0 0
      %1746 = vmatpush.bf16.msra.mxu0 0
      %1747 = vmatpush.bf16.msra.mxu0 %v1705
      %1748 = vmatmul.bf16.gmra.mxu0 %v1708
      %v1749 = vpop.f32.mrf.mxu0
      %v1750 = vadd.f32 %v1699, %v1749
      %v1751 = vpop.f32.mrf.mxu0
      %v1752 = vadd.f32 %v1699, %v1751
      %1753 = vmatmul.bf16.gmra.mxu0 %v1710
      %v1754 = vpop.f32.mrf.mxu0
      %v1755 = vadd.f32 %v1699, %v1754
      %v1756 = vpop.f32.mrf.mxu0
      %v1757 = vadd.f32 %v1699, %v1756
      %1758 = vmatmul.bf16.gmra.mxu0 %v1712
      %v1759 = vpop.f32.mrf.mxu0
      %v1760 = vadd.f32 %v1699, %v1759
      %v1761 = vpop.f32.mrf.mxu0
      %v1762 = vadd.f32 %v1699, %v1761
      %1763 = vmatmul.bf16.gmra.mxu0 %v1714
      %v1764 = vpop.f32.mrf.mxu0
      %v1765 = vadd.f32 %v1699, %v1764
      %v1766 = vpop.f32.mrf.mxu0
      %v1767 = vadd.f32 %v1699, %v1766
      %1768 = vmatmul.bf16.gmra.mxu0 %v1716
      %v1769 = vpop.f32.mrf.mxu0
      %v1770 = vadd.f32 %v1699, %v1769
      %v1771 = vpop.f32.mrf.mxu0
      %v1772 = vadd.f32 %v1699, %v1771
      %1773 = vmatmul.bf16.gmra.mxu0 %v1718
      %v1774 = vpop.f32.mrf.mxu0
      %v1775 = vadd.f32 %v1699, %v1774
      %v1776 = vpop.f32.mrf.mxu0
      %v1777 = vadd.f32 %v1699, %v1776
      %1778 = vmatmul.bf16.gmra.mxu0 %v1720
      %v1779 = vpop.f32.mrf.mxu0
      %v1780 = vadd.f32 %v1699, %v1779
      %v1781 = vpop.f32.mrf.mxu0
      %v1782 = vadd.f32 %v1699, %v1781
      %1783 = vmatmul.bf16.gmra.mxu0 %v1722
      %v1784 = vpop.f32.mrf.mxu0
      %v1785 = vadd.f32 %v1699, %v1784
      %v1786 = vpop.f32.mrf.mxu0
      %v1787 = vadd.f32 %v1699, %v1786
      %1788 = vmatmul.bf16.gmra.mxu0 %v1724
      %v1789 = vpop.f32.mrf.mxu0
      %v1790 = vadd.f32 %v1699, %v1789
      %v1791 = vpop.f32.mrf.mxu0
      %v1792 = vadd.f32 %v1699, %v1791
      %1793 = vmatmul.bf16.gmra.mxu0 %v1726
      %v1794 = vpop.f32.mrf.mxu0
      %v1795 = vadd.f32 %v1699, %v1794
      %v1796 = vpop.f32.mrf.mxu0
      %v1797 = vadd.f32 %v1699, %v1796
      %1798 = vmatmul.bf16.gmra.mxu0 %v1728
      %v1799 = vpop.f32.mrf.mxu0
      %v1800 = vadd.f32 %v1699, %v1799
      %v1801 = vpop.f32.mrf.mxu0
      %v1802 = vadd.f32 %v1699, %v1801
      %1803 = vmatmul.bf16.gmra.mxu0 %v1730
      %v1804 = vpop.f32.mrf.mxu0
      %v1805 = vadd.f32 %v1699, %v1804
      %v1806 = vpop.f32.mrf.mxu0
      %v1807 = vadd.f32 %v1699, %v1806
      %1808 = vmatmul.bf16.gmra.mxu0 %v1732
      %v1809 = vpop.f32.mrf.mxu0
      %v1810 = vadd.f32 %v1699, %v1809
      %v1811 = vpop.f32.mrf.mxu0
      %v1812 = vadd.f32 %v1699, %v1811
      %1813 = vmatmul.bf16.gmra.mxu0 %v1734
      %v1814 = vpop.f32.mrf.mxu0
      %v1815 = vadd.f32 %v1699, %v1814
      %v1816 = vpop.f32.mrf.mxu0
      %v1817 = vadd.f32 %v1699, %v1816
      %1818 = vmatmul.bf16.gmra.mxu0 %v1736
      %v1819 = vpop.f32.mrf.mxu0
      %v1820 = vadd.f32 %v1699, %v1819
      %v1821 = vpop.f32.mrf.mxu0
      %v1822 = vadd.f32 %v1699, %v1821
      %1823 = vmatmul.bf16.gmra.mxu0 %v1738
      %v1824 = vpop.f32.mrf.mxu0
      %v1825 = vadd.f32 %v1699, %v1824
      %v1826 = vpop.f32.mrf.mxu0
      %v1827 = vadd.f32 %v1699, %v1826
      %1828 = vdwg.mxu0
      %1829 = vst.msk [vmem:[%s170] sm:$0xff] %vm1597, %v1750
      %1830 = vst.msk [vmem:[%s170 + $0x8] sm:$0xff] %vm1597, %v1752
      %1831 = vst.msk [vmem:[%s170 + $0x20] sm:$0xff] %vm1597, %v1755
      %1832 = vst.msk [vmem:[%s170 + $0x28] sm:$0xff] %vm1597, %v1757
      %1833 = vst.msk [vmem:[%s170 + $0x40] sm:$0xff] %vm1597, %v1760
      %1834 = vst.msk [vmem:[%s170 + $0x48] sm:$0xff] %vm1597, %v1762
      %1835 = vst.msk [vmem:[%s170 + $0x60] sm:$0xff] %vm1597, %v1765
      %1836 = vst.msk [vmem:[%s170 + $0x68] sm:$0xff] %vm1597, %v1767
      %1837 = vst.msk [vmem:[%s170 + $0x80] sm:$0xff] %vm1597, %v1770
      %1838 = vst.msk [vmem:[%s170 + $0x88] sm:$0xff] %vm1597, %v1772
      %1839 = vst.msk [vmem:[%s170 + $0xa0] sm:$0xff] %vm1597, %v1775
      %1840 = vst.msk [vmem:[%s170 + $0xa8] sm:$0xff] %vm1597, %v1777
      %1841 = vst.msk [vmem:[%s170 + $0xc0] sm:$0xff] %vm1597, %v1780
      %1842 = vst.msk [vmem:[%s170 + $0xc8] sm:$0xff] %vm1597, %v1782
      %1843 = vst.msk [vmem:[%s170 + $0xe0] sm:$0xff] %vm1597, %v1785
      %1844 = vst.msk [vmem:[%s170 + $0xe8] sm:$0xff] %vm1597, %v1787
      %1845 = vst.msk [vmem:[%s170 + $0x100] sm:$0xff] %vm1597, %v1790
      %1846 = vst.msk [vmem:[%s170 + $0x108] sm:$0xff] %vm1597, %v1792
      %1847 = vst.msk [vmem:[%s170 + $0x120] sm:$0xff] %vm1597, %v1795
      %1848 = vst.msk [vmem:[%s170 + $0x128] sm:$0xff] %vm1597, %v1797
      %1849 = vst.msk [vmem:[%s170 + $0x140] sm:$0xff] %vm1597, %v1800
      %1850 = vst.msk [vmem:[%s170 + $0x148] sm:$0xff] %vm1597, %v1802
      %1851 = vst.msk [vmem:[%s170 + $0x160] sm:$0xff] %vm1597, %v1805
      %1852 = vst.msk [vmem:[%s170 + $0x168] sm:$0xff] %vm1597, %v1807
      %1853 = vst.msk [vmem:[%s170 + $0x180] sm:$0xff] %vm1597, %v1810
      %1854 = vst.msk [vmem:[%s170 + $0x188] sm:$0xff] %vm1597, %v1812
      %1855 = vst.msk [vmem:[%s170 + $0x1a0] sm:$0xff] %vm1597, %v1815
      %1856 = vst.msk [vmem:[%s170 + $0x1a8] sm:$0xff] %vm1597, %v1817
      %1857 = vst.msk [vmem:[%s170 + $0x1c0] sm:$0xff] %vm1597, %v1820
      %1858 = vst.msk [vmem:[%s170 + $0x1c8] sm:$0xff] %vm1597, %v1822
      %1859 = vst.msk [vmem:[%s170 + $0x1e0] sm:$0xff] %vm1597, %v1825
      %1860 = vst.msk [vmem:[%s170 + $0x1e8] sm:$0xff] %vm1597, %v1827
      %v1861 = vld [vmem:[#allocation2] sm:$0xf]
      %v1862 = vld [vmem:[#allocation2 + $0x4] sm:$0xf]
      %v1863 = vld [vmem:[#allocation2 + $0x8] sm:$0x1]
      %v1864 = vld [vmem:[#allocation2 + $0xc] sm:$0xf]
      %v1865 = vld [vmem:[#allocation2 + $0x10] sm:$0xf]
      %v1866 = vld [vmem:[#allocation2 + $0x14] sm:$0x1]
      %v1867 = vld [vmem:[#allocation2 + $0x18] sm:$0xf]
      %v1868 = vld [vmem:[#allocation2 + $0x1c] sm:$0xf]
      %v1869 = vld [vmem:[#allocation2 + $0x20] sm:$0x1]
      %v1870 = vld [vmem:[#allocation2 + $0x24] sm:$0xf]
      %v1871 = vld [vmem:[#allocation2 + $0x28] sm:$0xf]
      %v1872 = vld [vmem:[#allocation2 + $0x2c] sm:$0x1]
      %v1873 = vld [vmem:[#allocation2 + $0x30] sm:$0xf]
      %v1874 = vld [vmem:[#allocation2 + $0x34] sm:$0xf]
      %v1875 = vld [vmem:[#allocation2 + $0x38] sm:$0x1]
      %v1876 = vld [vmem:[#allocation2 + $0x3c] sm:$0xf]
      %v1877 = vld [vmem:[#allocation2 + $0x40] sm:$0xf]
      %v1878 = vld [vmem:[#allocation2 + $0x44] sm:$0x1]
      %v1879 = vld [vmem:[#allocation2 + $0x48] sm:$0xf]
      %v1880 = vld [vmem:[#allocation2 + $0x4c] sm:$0xf]
      %v1881 = vld [vmem:[#allocation2 + $0x50] sm:$0x1]
      %v1882 = vld [vmem:[#allocation2 + $0x54] sm:$0xf]
      %v1883 = vld [vmem:[#allocation2 + $0x58] sm:$0xf]
      %v1884 = vld [vmem:[#allocation2 + $0x5c] sm:$0x1]
      %v1885 = vld [vmem:[#allocation2 + $0x60] sm:$0xf]
      %v1886 = vld [vmem:[#allocation2 + $0x64] sm:$0xf]
      %v1887 = vld [vmem:[#allocation2 + $0x68] sm:$0x1]
      %v1888 = vld [vmem:[#allocation2 + $0x6c] sm:$0xf]
      %v1889 = vld [vmem:[#allocation2 + $0x70] sm:$0xf]
      %v1890 = vld [vmem:[#allocation2 + $0x74] sm:$0x1]
      %v1891 = vld [vmem:[#allocation2 + $0x78] sm:$0xf]
      %v1892 = vld [vmem:[#allocation2 + $0x7c] sm:$0xf]
      %v1893 = vld [vmem:[#allocation2 + $0x80] sm:$0x1]
      %v1894 = vld [vmem:[#allocation2 + $0x84] sm:$0xf]
      %v1895 = vld [vmem:[#allocation2 + $0x88] sm:$0xf]
      %v1896 = vld [vmem:[#allocation2 + $0x8c] sm:$0x1]
      %v1897 = vld [vmem:[#allocation2 + $0x90] sm:$0xf]
      %v1898 = vld [vmem:[#allocation2 + $0x94] sm:$0xf]
      %v1899 = vld [vmem:[#allocation2 + $0x98] sm:$0x1]
      %v1900 = vld [vmem:[#allocation2 + $0x9c] sm:$0xf]
      %v1901 = vld [vmem:[#allocation2 + $0xa0] sm:$0xf]
      %v1902 = vld [vmem:[#allocation2 + $0xa4] sm:$0x1]
      %v1903 = vld [vmem:[#allocation2 + $0xa8] sm:$0xf]
      %v1904 = vld [vmem:[#allocation2 + $0xac] sm:$0xf]
      %v1905 = vld [vmem:[#allocation2 + $0xb0] sm:$0x1]
      %v1906 = vld [vmem:[#allocation2 + $0xb4] sm:$0xf]
      %v1907 = vld [vmem:[#allocation2 + $0xb8] sm:$0xf]
      %v1908 = vld [vmem:[#allocation2 + $0xbc] sm:$0x1]
      %v1909 = vld [vmem:[#allocation2] sm:$0xe]
      %v1910 = vld [vmem:[#allocation2 + $0xc] sm:$0xe]
      %v1911 = vld [vmem:[#allocation2 + $0x18] sm:$0xe]
      %v1912 = vld [vmem:[#allocation2 + $0x24] sm:$0xe]
      %v1913 = vld [vmem:[#allocation2 + $0x30] sm:$0xe]
      %v1914 = vld [vmem:[#allocation2 + $0x3c] sm:$0xe]
      %v1915 = vld [vmem:[#allocation2 + $0x48] sm:$0xe]
      %v1916 = vld [vmem:[#allocation2 + $0x54] sm:$0xe]
      %v1917 = vld [vmem:[#allocation2 + $0x60] sm:$0xe]
      %v1918 = vld [vmem:[#allocation2 + $0x6c] sm:$0xe]
      %v1919 = vld [vmem:[#allocation2 + $0x78] sm:$0xe]
      %v1920 = vld [vmem:[#allocation2 + $0x84] sm:$0xe]
      %v1921 = vld [vmem:[#allocation2 + $0x90] sm:$0xe]
      %v1922 = vld [vmem:[#allocation2 + $0x9c] sm:$0xe]
      %v1923 = vld [vmem:[#allocation2 + $0xa8] sm:$0xe]
      %v1924 = vld [vmem:[#allocation2 + $0xb4] sm:$0xe]
      %v1925 = vld [vmem:[%s648] sm:$0xf]
      %v1926 = vld [vmem:[%s648 + $0x4] sm:$0xf]
      %v1927 = vld [vmem:[%s648 + $0x8] sm:$0x1]
      %v1928 = vld [vmem:[%s648 + $0xc] sm:$0xf]
      %v1929 = vld [vmem:[%s648 + $0x10] sm:$0xf]
      %v1930 = vld [vmem:[%s648 + $0x14] sm:$0x1]
      %v1931 = vld [vmem:[%s648 + $0x18] sm:$0xf]
      %v1932 = vld [vmem:[%s648 + $0x1c] sm:$0xf]
      %v1933 = vld [vmem:[%s648 + $0x20] sm:$0x1]
      %v1934 = vld [vmem:[%s648 + $0x24] sm:$0xf]
      %v1935 = vld [vmem:[%s648 + $0x28] sm:$0xf]
      %v1936 = vld [vmem:[%s648 + $0x2c] sm:$0x1]
      %v1937 = vld [vmem:[%s648 + $0x30] sm:$0xf]
      %v1938 = vld [vmem:[%s648 + $0x34] sm:$0xf]
      %v1939 = vld [vmem:[%s648 + $0x38] sm:$0x1]
      %v1940 = vld [vmem:[%s648 + $0x3c] sm:$0xf]
      %v1941 = vld [vmem:[%s648 + $0x40] sm:$0xf]
      %v1942 = vld [vmem:[%s648 + $0x44] sm:$0x1]
      %v1943 = vld [vmem:[%s648 + $0x48] sm:$0xf]
      %v1944 = vld [vmem:[%s648 + $0x4c] sm:$0xf]
      %v1945 = vld [vmem:[%s648 + $0x50] sm:$0x1]
      %v1946 = vld [vmem:[%s648 + $0x54] sm:$0xf]
      %v1947 = vld [vmem:[%s648 + $0x58] sm:$0xf]
      %v1948 = vld [vmem:[%s648 + $0x5c] sm:$0x1]
      %v1949 = vld [vmem:[%s648 + $0x60] sm:$0xf]
      %v1950 = vld [vmem:[%s648 + $0x64] sm:$0xf]
      %v1951 = vld [vmem:[%s648 + $0x68] sm:$0x1]
      %v1952 = vld [vmem:[%s648 + $0x6c] sm:$0xf]
      %v1953 = vld [vmem:[%s648 + $0x70] sm:$0xf]
      %v1954 = vld [vmem:[%s648 + $0x74] sm:$0x1]
      %v1955 = vld [vmem:[%s648 + $0x78] sm:$0xf]
      %v1956 = vld [vmem:[%s648 + $0x7c] sm:$0xf]
      %v1957 = vld [vmem:[%s648 + $0x80] sm:$0x1]
      %v1958 = vld [vmem:[%s648 + $0x84] sm:$0xf]
      %v1959 = vld [vmem:[%s648 + $0x88] sm:$0xf]
      %v1960 = vld [vmem:[%s648 + $0x8c] sm:$0x1]
      %v1961 = vld [vmem:[%s648 + $0x90] sm:$0xf]
      %v1962 = vld [vmem:[%s648 + $0x94] sm:$0xf]
      %v1963 = vld [vmem:[%s648 + $0x98] sm:$0x1]
      %v1964 = vld [vmem:[%s648 + $0x9c] sm:$0xf]
      %v1965 = vld [vmem:[%s648 + $0xa0] sm:$0xf]
      %v1966 = vld [vmem:[%s648 + $0xa4] sm:$0x1]
      %v1967 = vld [vmem:[%s648 + $0xa8] sm:$0xf]
      %v1968 = vld [vmem:[%s648 + $0xac] sm:$0xf]
      %v1969 = vld [vmem:[%s648 + $0xb0] sm:$0x1]
      %v1970 = vld [vmem:[%s648 + $0xb4] sm:$0xf]
      %v1971 = vld [vmem:[%s648 + $0xb8] sm:$0xf]
      %v1972 = vld [vmem:[%s648 + $0xbc] sm:$0x1]
      %v1973 = vld [vmem:[%s648] sm:$0xe]
      %v1974 = vld [vmem:[%s648 + $0xc] sm:$0xe]
      %v1975 = vld [vmem:[%s648 + $0x18] sm:$0xe]
      %v1976 = vld [vmem:[%s648 + $0x24] sm:$0xe]
      %v1977 = vld [vmem:[%s648 + $0x30] sm:$0xe]
      %v1978 = vld [vmem:[%s648 + $0x3c] sm:$0xe]
      %v1979 = vld [vmem:[%s648 + $0x48] sm:$0xe]
      %v1980 = vld [vmem:[%s648 + $0x54] sm:$0xe]
      %v1981 = vld [vmem:[%s648 + $0x60] sm:$0xe]
      %v1982 = vld [vmem:[%s648 + $0x6c] sm:$0xe]
      %v1983 = vld [vmem:[%s648 + $0x78] sm:$0xe]
      %v1984 = vld [vmem:[%s648 + $0x84] sm:$0xe]
      %v1985 = vld [vmem:[%s648 + $0x90] sm:$0xe]
      %v1986 = vld [vmem:[%s648 + $0x9c] sm:$0xe]
      %v1987 = vld [vmem:[%s648 + $0xa8] sm:$0xe]
      %v1988 = vld [vmem:[%s648 + $0xb4] sm:$0xe]
      %v2037 = vunpack.c.l.b16 %v1861
      %v2038 = vunpack.c.l.b16 %v1862
      %v2039 = vunpack.c.l.b16 %v1863
      %v2040 = vunpack.c.l.b16 %v1864
      %v2041 = vunpack.c.l.b16 %v1865
      %v2042 = vunpack.c.l.b16 %v1866
      %v2043 = vunpack.c.l.b16 %v1867
      %v2044 = vunpack.c.l.b16 %v1868
      %v2045 = vunpack.c.l.b16 %v1869
      %v2046 = vunpack.c.l.b16 %v1870
      %v2047 = vunpack.c.l.b16 %v1871
      %v2048 = vunpack.c.l.b16 %v1872
      %v2049 = vunpack.c.l.b16 %v1873
      %v2050 = vunpack.c.l.b16 %v1874
      %v2051 = vunpack.c.l.b16 %v1875
      %v2052 = vunpack.c.l.b16 %v1876
      %v2053 = vunpack.c.l.b16 %v1877
      %v2054 = vunpack.c.l.b16 %v1878
      %v2055 = vunpack.c.l.b16 %v1879
      %v2056 = vunpack.c.l.b16 %v1880
      %v2057 = vunpack.c.l.b16 %v1881
      %v2058 = vunpack.c.l.b16 %v1882
      %v2059 = vunpack.c.l.b16 %v1883
      %v2060 = vunpack.c.l.b16 %v1884
      %v2061 = vunpack.c.l.b16 %v1885
      %v2062 = vunpack.c.l.b16 %v1886
      %v2063 = vunpack.c.l.b16 %v1887
      %v2064 = vunpack.c.l.b16 %v1888
      %v2065 = vunpack.c.l.b16 %v1889
      %v2066 = vunpack.c.l.b16 %v1890
      %v2067 = vunpack.c.l.b16 %v1891
      %v2068 = vunpack.c.l.b16 %v1892
      %v2069 = vunpack.c.l.b16 %v1893
      %v2070 = vunpack.c.l.b16 %v1894
      %v2071 = vunpack.c.l.b16 %v1895
      %v2072 = vunpack.c.l.b16 %v1896
      %v2073 = vunpack.c.l.b16 %v1897
      %v2074 = vunpack.c.l.b16 %v1898
      %v2075 = vunpack.c.l.b16 %v1899
      %v2076 = vunpack.c.l.b16 %v1900
      %v2077 = vunpack.c.l.b16 %v1901
      %v2078 = vunpack.c.l.b16 %v1902
      %v2079 = vunpack.c.l.b16 %v1903
      %v2080 = vunpack.c.l.b16 %v1904
      %v2081 = vunpack.c.l.b16 %v1905
      %v2082 = vunpack.c.l.b16 %v1906
      %v2083 = vunpack.c.l.b16 %v1907
      %v2084 = vunpack.c.l.b16 %v1908
      %v2085 = vpack.c.b16 %v2038, %v2037
      %v2086 = vpack.c.b16 %v2039, %v2039
      %v2087 = vpack.c.b16 %v2041, %v2040
      %v2088 = vpack.c.b16 %v2042, %v2042
      %v2089 = vpack.c.b16 %v2044, %v2043
      %v2090 = vpack.c.b16 %v2045, %v2045
      %v2091 = vpack.c.b16 %v2047, %v2046
      %v2092 = vpack.c.b16 %v2048, %v2048
      %v2093 = vpack.c.b16 %v2050, %v2049
      %v2094 = vpack.c.b16 %v2051, %v2051
      %v2095 = vpack.c.b16 %v2053, %v2052
      %v2096 = vpack.c.b16 %v2054, %v2054
      %v2097 = vpack.c.b16 %v2056, %v2055
      %v2098 = vpack.c.b16 %v2057, %v2057
      %v2099 = vpack.c.b16 %v2059, %v2058
      %v2100 = vpack.c.b16 %v2060, %v2060
      %v2101 = vpack.c.b16 %v2062, %v2061
      %v2102 = vpack.c.b16 %v2063, %v2063
      %v2103 = vpack.c.b16 %v2065, %v2064
      %v2104 = vpack.c.b16 %v2066, %v2066
      %v2105 = vpack.c.b16 %v2068, %v2067
      %v2106 = vpack.c.b16 %v2069, %v2069
      %v2107 = vpack.c.b16 %v2071, %v2070
      %v2108 = vpack.c.b16 %v2072, %v2072
      %v2109 = vpack.c.b16 %v2074, %v2073
      %v2110 = vpack.c.b16 %v2075, %v2075
      %v2111 = vpack.c.b16 %v2077, %v2076
      %v2112 = vpack.c.b16 %v2078, %v2078
      %v2113 = vpack.c.b16 %v2080, %v2079
      %v2114 = vpack.c.b16 %v2081, %v2081
      %v2115 = vpack.c.b16 %v2083, %v2082
      %v2116 = vpack.c.b16 %v2084, %v2084
      %v2133 = vunpack.c.l.b16 %v1909
      %v2134 = vunpack.c.l.b16 %v1910
      %v2135 = vunpack.c.l.b16 %v1911
      %v2136 = vunpack.c.l.b16 %v1912
      %v2137 = vunpack.c.l.b16 %v1913
      %v2138 = vunpack.c.l.b16 %v1914
      %v2139 = vunpack.c.l.b16 %v1915
      %v2140 = vunpack.c.l.b16 %v1916
      %v2141 = vunpack.c.l.b16 %v1917
      %v2142 = vunpack.c.l.b16 %v1918
      %v2143 = vunpack.c.l.b16 %v1919
      %v2144 = vunpack.c.l.b16 %v1920
      %v2145 = vunpack.c.l.b16 %v1921
      %v2146 = vunpack.c.l.b16 %v1922
      %v2147 = vunpack.c.l.b16 %v1923
      %v2148 = vunpack.c.l.b16 %v1924
      %v2149 = vpack.c.b16 %v2038, %v2133
      %v2150 = vpack.c.b16 %v2041, %v2134
      %v2151 = vpack.c.b16 %v2044, %v2135
      %v2152 = vpack.c.b16 %v2047, %v2136
      %v2153 = vpack.c.b16 %v2050, %v2137
      %v2154 = vpack.c.b16 %v2053, %v2138
      %v2155 = vpack.c.b16 %v2056, %v2139
      %v2156 = vpack.c.b16 %v2059, %v2140
      %v2157 = vpack.c.b16 %v2062, %v2141
      %v2158 = vpack.c.b16 %v2065, %v2142
      %v2159 = vpack.c.b16 %v2068, %v2143
      %v2160 = vpack.c.b16 %v2071, %v2144
      %v2161 = vpack.c.b16 %v2074, %v2145
      %v2162 = vpack.c.b16 %v2077, %v2146
      %v2163 = vpack.c.b16 %v2080, %v2147
      %v2164 = vpack.c.b16 %v2083, %v2148
      %v2166 = vshrl.u32 %v2149, 16
      %v2168 = vshll.u32 %v2149, 16
      %v2170 = vrot.slane %v2168, 1
      %v2171 = vor.u32 %v2166, %v2170
      %v2173 = vshll.u32 %v2086, 16
      %v2175 = vrot.slane %v2173, 1
      %v2176 = vsel %vm988, %v2171, %v2175
      %v2177 = vshrl.u32 %v2086, 16
      %v2180 = vshrl.u32 %v2150, 16
      %v2182 = vshll.u32 %v2150, 16
      %v2184 = vrot.slane %v2182, 1
      %v2185 = vor.u32 %v2180, %v2184
      %v2187 = vshll.u32 %v2088, 16
      %v2189 = vrot.slane %v2187, 1
      %v2190 = vsel %vm988, %v2185, %v2189
      %v2191 = vshrl.u32 %v2088, 16
      %v2194 = vshrl.u32 %v2151, 16
      %v2196 = vshll.u32 %v2151, 16
      %v2198 = vrot.slane %v2196, 1
      %v2199 = vor.u32 %v2194, %v2198
      %v2201 = vshll.u32 %v2090, 16
      %v2203 = vrot.slane %v2201, 1
      %v2204 = vsel %vm988, %v2199, %v2203
      %v2205 = vshrl.u32 %v2090, 16
      %v2208 = vshrl.u32 %v2152, 16
      %v2210 = vshll.u32 %v2152, 16
      %v2212 = vrot.slane %v2210, 1
      %v2213 = vor.u32 %v2208, %v2212
      %v2215 = vshll.u32 %v2092, 16
      %v2217 = vrot.slane %v2215, 1
      %v2218 = vsel %vm988, %v2213, %v2217
      %v2219 = vshrl.u32 %v2092, 16
      %v2222 = vshrl.u32 %v2153, 16
      %v2224 = vshll.u32 %v2153, 16
      %v2226 = vrot.slane %v2224, 1
      %v2227 = vor.u32 %v2222, %v2226
      %v2229 = vshll.u32 %v2094, 16
      %v2231 = vrot.slane %v2229, 1
      %v2232 = vsel %vm988, %v2227, %v2231
      %v2233 = vshrl.u32 %v2094, 16
      %v2236 = vshrl.u32 %v2154, 16
      %v2238 = vshll.u32 %v2154, 16
      %v2240 = vrot.slane %v2238, 1
      %v2241 = vor.u32 %v2236, %v2240
      %v2243 = vshll.u32 %v2096, 16
      %v2245 = vrot.slane %v2243, 1
      %v2246 = vsel %vm988, %v2241, %v2245
      %v2247 = vshrl.u32 %v2096, 16
      %v2250 = vshrl.u32 %v2155, 16
      %v2252 = vshll.u32 %v2155, 16
      %v2254 = vrot.slane %v2252, 1
      %v2255 = vor.u32 %v2250, %v2254
      %v2257 = vshll.u32 %v2098, 16
      %v2259 = vrot.slane %v2257, 1
      %v2260 = vsel %vm988, %v2255, %v2259
      %v2261 = vshrl.u32 %v2098, 16
      %v2264 = vshrl.u32 %v2156, 16
      %v2266 = vshll.u32 %v2156, 16
      %v2268 = vrot.slane %v2266, 1
      %v2269 = vor.u32 %v2264, %v2268
      %v2271 = vshll.u32 %v2100, 16
      %v2273 = vrot.slane %v2271, 1
      %v2274 = vsel %vm988, %v2269, %v2273
      %v2275 = vshrl.u32 %v2100, 16
      %v2278 = vshrl.u32 %v2157, 16
      %v2280 = vshll.u32 %v2157, 16
      %v2282 = vrot.slane %v2280, 1
      %v2283 = vor.u32 %v2278, %v2282
      %v2285 = vshll.u32 %v2102, 16
      %v2287 = vrot.slane %v2285, 1
      %v2288 = vsel %vm988, %v2283, %v2287
      %v2289 = vshrl.u32 %v2102, 16
      %v2292 = vshrl.u32 %v2158, 16
      %v2294 = vshll.u32 %v2158, 16
      %v2296 = vrot.slane %v2294, 1
      %v2297 = vor.u32 %v2292, %v2296
      %v2299 = vshll.u32 %v2104, 16
      %v2301 = vrot.slane %v2299, 1
      %v2302 = vsel %vm988, %v2297, %v2301
      %v2303 = vshrl.u32 %v2104, 16
      %v2306 = vshrl.u32 %v2159, 16
      %v2308 = vshll.u32 %v2159, 16
      %v2310 = vrot.slane %v2308, 1
      %v2311 = vor.u32 %v2306, %v2310
      %v2313 = vshll.u32 %v2106, 16
      %v2315 = vrot.slane %v2313, 1
      %v2316 = vsel %vm988, %v2311, %v2315
      %v2317 = vshrl.u32 %v2106, 16
      %v2320 = vshrl.u32 %v2160, 16
      %v2322 = vshll.u32 %v2160, 16
      %v2324 = vrot.slane %v2322, 1
      %v2325 = vor.u32 %v2320, %v2324
      %v2327 = vshll.u32 %v2108, 16
      %v2329 = vrot.slane %v2327, 1
      %v2330 = vsel %vm988, %v2325, %v2329
      %v2331 = vshrl.u32 %v2108, 16
      %v2334 = vshrl.u32 %v2161, 16
      %v2336 = vshll.u32 %v2161, 16
      %v2338 = vrot.slane %v2336, 1
      %v2339 = vor.u32 %v2334, %v2338
      %v2341 = vshll.u32 %v2110, 16
      %v2343 = vrot.slane %v2341, 1
      %v2344 = vsel %vm988, %v2339, %v2343
      %v2345 = vshrl.u32 %v2110, 16
      %v2348 = vshrl.u32 %v2162, 16
      %v2350 = vshll.u32 %v2162, 16
      %v2352 = vrot.slane %v2350, 1
      %v2353 = vor.u32 %v2348, %v2352
      %v2355 = vshll.u32 %v2112, 16
      %v2357 = vrot.slane %v2355, 1
      %v2358 = vsel %vm988, %v2353, %v2357
      %v2359 = vshrl.u32 %v2112, 16
      %v2362 = vshrl.u32 %v2163, 16
      %v2364 = vshll.u32 %v2163, 16
      %v2366 = vrot.slane %v2364, 1
      %v2367 = vor.u32 %v2362, %v2366
      %v2369 = vshll.u32 %v2114, 16
      %v2371 = vrot.slane %v2369, 1
      %v2372 = vsel %vm988, %v2367, %v2371
      %v2373 = vshrl.u32 %v2114, 16
      %v2376 = vshrl.u32 %v2164, 16
      %v2378 = vshll.u32 %v2164, 16
      %v2380 = vrot.slane %v2378, 1
      %v2381 = vor.u32 %v2376, %v2380
      %v2383 = vshll.u32 %v2116, 16
      %v2385 = vrot.slane %v2383, 1
      %v2386 = vsel %vm988, %v2381, %v2385
      %v2387 = vshrl.u32 %v2116, 16
      %2389 = vrot.lane.b32.xlu0 %v2176, 4
      %v2390 = vpop.permute.xlu0 %2389
      %2391 = vrot.lane.b32.xlu0 %v2177, 4
      %v2392 = vpop.permute.xlu0 %2391
      %2393 = vrot.lane.b32.xlu0 %v2190, 4
      %v2394 = vpop.permute.xlu0 %2393
      %2395 = vrot.lane.b32.xlu0 %v2191, 4
      %v2396 = vpop.permute.xlu0 %2395
      %2397 = vrot.lane.b32.xlu0 %v2204, 4
      %v2398 = vpop.permute.xlu0 %2397
      %2399 = vrot.lane.b32.xlu0 %v2205, 4
      %v2400 = vpop.permute.xlu0 %2399
      %2401 = vrot.lane.b32.xlu0 %v2218, 4
      %v2402 = vpop.permute.xlu0 %2401
      %2403 = vrot.lane.b32.xlu0 %v2219, 4
      %v2404 = vpop.permute.xlu0 %2403
      %2405 = vrot.lane.b32.xlu0 %v2232, 4
      %v2406 = vpop.permute.xlu0 %2405
      %2407 = vrot.lane.b32.xlu0 %v2233, 4
      %v2408 = vpop.permute.xlu0 %2407
      %2409 = vrot.lane.b32.xlu0 %v2246, 4
      %v2410 = vpop.permute.xlu0 %2409
      %2411 = vrot.lane.b32.xlu0 %v2247, 4
      %v2412 = vpop.permute.xlu0 %2411
      %2413 = vrot.lane.b32.xlu0 %v2260, 4
      %v2414 = vpop.permute.xlu0 %2413
      %2415 = vrot.lane.b32.xlu0 %v2261, 4
      %v2416 = vpop.permute.xlu0 %2415
      %2417 = vrot.lane.b32.xlu0 %v2274, 4
      %v2418 = vpop.permute.xlu0 %2417
      %2419 = vrot.lane.b32.xlu0 %v2275, 4
      %v2420 = vpop.permute.xlu0 %2419
      %2421 = vrot.lane.b32.xlu0 %v2288, 4
      %v2422 = vpop.permute.xlu0 %2421
      %2423 = vrot.lane.b32.xlu0 %v2289, 4
      %v2424 = vpop.permute.xlu0 %2423
      %2425 = vrot.lane.b32.xlu0 %v2302, 4
      %v2426 = vpop.permute.xlu0 %2425
      %2427 = vrot.lane.b32.xlu0 %v2303, 4
      %v2428 = vpop.permute.xlu0 %2427
      %2429 = vrot.lane.b32.xlu0 %v2316, 4
      %v2430 = vpop.permute.xlu0 %2429
      %2431 = vrot.lane.b32.xlu0 %v2317, 4
      %v2432 = vpop.permute.xlu0 %2431
      %2433 = vrot.lane.b32.xlu0 %v2330, 4
      %v2434 = vpop.permute.xlu0 %2433
      %2435 = vrot.lane.b32.xlu0 %v2331, 4
      %v2436 = vpop.permute.xlu0 %2435
      %2437 = vrot.lane.b32.xlu0 %v2344, 4
      %v2438 = vpop.permute.xlu0 %2437
      %2439 = vrot.lane.b32.xlu0 %v2345, 4
      %v2440 = vpop.permute.xlu0 %2439
      %2441 = vrot.lane.b32.xlu0 %v2358, 4
      %v2442 = vpop.permute.xlu0 %2441
      %2443 = vrot.lane.b32.xlu0 %v2359, 4
      %v2444 = vpop.permute.xlu0 %2443
      %2445 = vrot.lane.b32.xlu0 %v2372, 4
      %v2446 = vpop.permute.xlu0 %2445
      %2447 = vrot.lane.b32.xlu0 %v2373, 4
      %v2448 = vpop.permute.xlu0 %2447
      %2449 = vrot.lane.b32.xlu0 %v2386, 4
      %v2450 = vpop.permute.xlu0 %2449
      %2451 = vrot.lane.b32.xlu0 %v2387, 4
      %v2452 = vpop.permute.xlu0 %2451
      %v2501 = vunpack.c.l.b16 %v1925
      %v2502 = vunpack.c.l.b16 %v1926
      %v2503 = vunpack.c.l.b16 %v1927
      %v2504 = vunpack.c.l.b16 %v1928
      %v2505 = vunpack.c.l.b16 %v1929
      %v2506 = vunpack.c.l.b16 %v1930
      %v2507 = vunpack.c.l.b16 %v1931
      %v2508 = vunpack.c.l.b16 %v1932
      %v2509 = vunpack.c.l.b16 %v1933
      %v2510 = vunpack.c.l.b16 %v1934
      %v2511 = vunpack.c.l.b16 %v1935
      %v2512 = vunpack.c.l.b16 %v1936
      %v2513 = vunpack.c.l.b16 %v1937
      %v2514 = vunpack.c.l.b16 %v1938
      %v2515 = vunpack.c.l.b16 %v1939
      %v2516 = vunpack.c.l.b16 %v1940
      %v2517 = vunpack.c.l.b16 %v1941
      %v2518 = vunpack.c.l.b16 %v1942
      %v2519 = vunpack.c.l.b16 %v1943
      %v2520 = vunpack.c.l.b16 %v1944
      %v2521 = vunpack.c.l.b16 %v1945
      %v2522 = vunpack.c.l.b16 %v1946
      %v2523 = vunpack.c.l.b16 %v1947
      %v2524 = vunpack.c.l.b16 %v1948
      %v2525 = vunpack.c.l.b16 %v1949
      %v2526 = vunpack.c.l.b16 %v1950
      %v2527 = vunpack.c.l.b16 %v1951
      %v2528 = vunpack.c.l.b16 %v1952
      %v2529 = vunpack.c.l.b16 %v1953
      %v2530 = vunpack.c.l.b16 %v1954
      %v2531 = vunpack.c.l.b16 %v1955
      %v2532 = vunpack.c.l.b16 %v1956
      %v2533 = vunpack.c.l.b16 %v1957
      %v2534 = vunpack.c.l.b16 %v1958
      %v2535 = vunpack.c.l.b16 %v1959
      %v2536 = vunpack.c.l.b16 %v1960
      %v2537 = vunpack.c.l.b16 %v1961
      %v2538 = vunpack.c.l.b16 %v1962
      %v2539 = vunpack.c.l.b16 %v1963
      %v2540 = vunpack.c.l.b16 %v1964
      %v2541 = vunpack.c.l.b16 %v1965
      %v2542 = vunpack.c.l.b16 %v1966
      %v2543 = vunpack.c.l.b16 %v1967
      %v2544 = vunpack.c.l.b16 %v1968
      %v2545 = vunpack.c.l.b16 %v1969
      %v2546 = vunpack.c.l.b16 %v1970
      %v2547 = vunpack.c.l.b16 %v1971
      %v2548 = vunpack.c.l.b16 %v1972
      %v2549 = vpack.c.b16 %v2502, %v2501
      %v2550 = vpack.c.b16 %v2503, %v2503
      %v2551 = vpack.c.b16 %v2505, %v2504
      %v2552 = vpack.c.b16 %v2506, %v2506
      %v2553 = vpack.c.b16 %v2508, %v2507
      %v2554 = vpack.c.b16 %v2509, %v2509
      %v2555 = vpack.c.b16 %v2511, %v2510
      %v2556 = vpack.c.b16 %v2512, %v2512
      %v2557 = vpack.c.b16 %v2514, %v2513
      %v2558 = vpack.c.b16 %v2515, %v2515
      %v2559 = vpack.c.b16 %v2517, %v2516
      %v2560 = vpack.c.b16 %v2518, %v2518
      %v2561 = vpack.c.b16 %v2520, %v2519
      %v2562 = vpack.c.b16 %v2521, %v2521
      %v2563 = vpack.c.b16 %v2523, %v2522
      %v2564 = vpack.c.b16 %v2524, %v2524
      %v2565 = vpack.c.b16 %v2526, %v2525
      %v2566 = vpack.c.b16 %v2527, %v2527
      %v2567 = vpack.c.b16 %v2529, %v2528
      %v2568 = vpack.c.b16 %v2530, %v2530
      %v2569 = vpack.c.b16 %v2532, %v2531
      %v2570 = vpack.c.b16 %v2533, %v2533
      %v2571 = vpack.c.b16 %v2535, %v2534
      %v2572 = vpack.c.b16 %v2536, %v2536
      %v2573 = vpack.c.b16 %v2538, %v2537
      %v2574 = vpack.c.b16 %v2539, %v2539
      %v2575 = vpack.c.b16 %v2541, %v2540
      %v2576 = vpack.c.b16 %v2542, %v2542
      %v2577 = vpack.c.b16 %v2544, %v2543
      %v2578 = vpack.c.b16 %v2545, %v2545
      %v2579 = vpack.c.b16 %v2547, %v2546
      %v2580 = vpack.c.b16 %v2548, %v2548
      %2581 = vrot.lane.b32.xlu0 %v2549, 8
      %v2582 = vpop.permute.xlu0 %2581
      %2583 = vrot.lane.b32.xlu0 %v2550, 8
      %v2584 = vpop.permute.xlu0 %2583
      %2585 = vrot.lane.b32.xlu0 %v2551, 8
      %v2586 = vpop.permute.xlu0 %2585
      %2587 = vrot.lane.b32.xlu0 %v2552, 8
      %v2588 = vpop.permute.xlu0 %2587
      %2589 = vrot.lane.b32.xlu0 %v2553, 8
      %v2590 = vpop.permute.xlu0 %2589
      %2591 = vrot.lane.b32.xlu0 %v2554, 8
      %v2592 = vpop.permute.xlu0 %2591
      %2593 = vrot.lane.b32.xlu0 %v2555, 8
      %v2594 = vpop.permute.xlu0 %2593
      %2595 = vrot.lane.b32.xlu0 %v2556, 8
      %v2596 = vpop.permute.xlu0 %2595
      %2597 = vrot.lane.b32.xlu0 %v2557, 8
      %v2598 = vpop.permute.xlu0 %2597
      %2599 = vrot.lane.b32.xlu0 %v2558, 8
      %v2600 = vpop.permute.xlu0 %2599
      %2601 = vrot.lane.b32.xlu0 %v2559, 8
      %v2602 = vpop.permute.xlu0 %2601
      %2603 = vrot.lane.b32.xlu0 %v2560, 8
      %v2604 = vpop.permute.xlu0 %2603
      %2605 = vrot.lane.b32.xlu0 %v2561, 8
      %v2606 = vpop.permute.xlu0 %2605
      %2607 = vrot.lane.b32.xlu0 %v2562, 8
      %v2608 = vpop.permute.xlu0 %2607
      %2609 = vrot.lane.b32.xlu0 %v2563, 8
      %v2610 = vpop.permute.xlu0 %2609
      %2611 = vrot.lane.b32.xlu0 %v2564, 8
      %v2612 = vpop.permute.xlu0 %2611
      %2613 = vrot.lane.b32.xlu0 %v2565, 8
      %v2614 = vpop.permute.xlu0 %2613
      %2615 = vrot.lane.b32.xlu0 %v2566, 8
      %v2616 = vpop.permute.xlu0 %2615
      %2617 = vrot.lane.b32.xlu0 %v2567, 8
      %v2618 = vpop.permute.xlu0 %2617
      %2619 = vrot.lane.b32.xlu0 %v2568, 8
      %v2620 = vpop.permute.xlu0 %2619
      %2621 = vrot.lane.b32.xlu0 %v2569, 8
      %v2622 = vpop.permute.xlu0 %2621
      %2623 = vrot.lane.b32.xlu0 %v2570, 8
      %v2624 = vpop.permute.xlu0 %2623
      %2625 = vrot.lane.b32.xlu0 %v2571, 8
      %v2626 = vpop.permute.xlu0 %2625
      %2627 = vrot.lane.b32.xlu0 %v2572, 8
      %v2628 = vpop.permute.xlu0 %2627
      %2629 = vrot.lane.b32.xlu0 %v2573, 8
      %v2630 = vpop.permute.xlu0 %2629
      %2631 = vrot.lane.b32.xlu0 %v2574, 8
      %v2632 = vpop.permute.xlu0 %2631
      %2633 = vrot.lane.b32.xlu0 %v2575, 8
      %v2634 = vpop.permute.xlu0 %2633
      %2635 = vrot.lane.b32.xlu0 %v2576, 8
      %v2636 = vpop.permute.xlu0 %2635
      %2637 = vrot.lane.b32.xlu0 %v2577, 8
      %v2638 = vpop.permute.xlu0 %2637
      %2639 = vrot.lane.b32.xlu0 %v2578, 8
      %v2640 = vpop.permute.xlu0 %2639
      %2641 = vrot.lane.b32.xlu0 %v2579, 8
      %v2642 = vpop.permute.xlu0 %2641
      %2643 = vrot.lane.b32.xlu0 %v2580, 8
      %v2644 = vpop.permute.xlu0 %2643
      %v2661 = vunpack.c.l.b16 %v1973
      %v2662 = vunpack.c.l.b16 %v1974
      %v2663 = vunpack.c.l.b16 %v1975
      %v2664 = vunpack.c.l.b16 %v1976
      %v2665 = vunpack.c.l.b16 %v1977
      %v2666 = vunpack.c.l.b16 %v1978
      %v2667 = vunpack.c.l.b16 %v1979
      %v2668 = vunpack.c.l.b16 %v1980
      %v2669 = vunpack.c.l.b16 %v1981
      %v2670 = vunpack.c.l.b16 %v1982
      %v2671 = vunpack.c.l.b16 %v1983
      %v2672 = vunpack.c.l.b16 %v1984
      %v2673 = vunpack.c.l.b16 %v1985
      %v2674 = vunpack.c.l.b16 %v1986
      %v2675 = vunpack.c.l.b16 %v1987
      %v2676 = vunpack.c.l.b16 %v1988
      %v2677 = vpack.c.b16 %v2502, %v2661
      %v2678 = vpack.c.b16 %v2505, %v2662
      %v2679 = vpack.c.b16 %v2508, %v2663
      %v2680 = vpack.c.b16 %v2511, %v2664
      %v2681 = vpack.c.b16 %v2514, %v2665
      %v2682 = vpack.c.b16 %v2517, %v2666
      %v2683 = vpack.c.b16 %v2520, %v2667
      %v2684 = vpack.c.b16 %v2523, %v2668
      %v2685 = vpack.c.b16 %v2526, %v2669
      %v2686 = vpack.c.b16 %v2529, %v2670
      %v2687 = vpack.c.b16 %v2532, %v2671
      %v2688 = vpack.c.b16 %v2535, %v2672
      %v2689 = vpack.c.b16 %v2538, %v2673
      %v2690 = vpack.c.b16 %v2541, %v2674
      %v2691 = vpack.c.b16 %v2544, %v2675
      %v2692 = vpack.c.b16 %v2547, %v2676
      %v2694 = vshrl.u32 %v2677, 16
      %v2696 = vshll.u32 %v2677, 16
      %v2698 = vrot.slane %v2696, 1
      %v2699 = vor.u32 %v2694, %v2698
      %v2701 = vshll.u32 %v2550, 16
      %v2703 = vrot.slane %v2701, 1
      %v2704 = vsel %vm988, %v2699, %v2703
      %v2705 = vshrl.u32 %v2550, 16
      %v2708 = vshrl.u32 %v2678, 16
      %v2710 = vshll.u32 %v2678, 16
      %v2712 = vrot.slane %v2710, 1
      %v2713 = vor.u32 %v2708, %v2712
      %v2715 = vshll.u32 %v2552, 16
      %v2717 = vrot.slane %v2715, 1
      %v2718 = vsel %vm988, %v2713, %v2717
      %v2719 = vshrl.u32 %v2552, 16
      %v2722 = vshrl.u32 %v2679, 16
      %v2724 = vshll.u32 %v2679, 16
      %v2726 = vrot.slane %v2724, 1
      %v2727 = vor.u32 %v2722, %v2726
      %v2729 = vshll.u32 %v2554, 16
      %v2731 = vrot.slane %v2729, 1
      %v2732 = vsel %vm988, %v2727, %v2731
      %v2733 = vshrl.u32 %v2554, 16
      %v2736 = vshrl.u32 %v2680, 16
      %v2738 = vshll.u32 %v2680, 16
      %v2740 = vrot.slane %v2738, 1
      %v2741 = vor.u32 %v2736, %v2740
      %v2743 = vshll.u32 %v2556, 16
      %v2745 = vrot.slane %v2743, 1
      %v2746 = vsel %vm988, %v2741, %v2745
      %v2747 = vshrl.u32 %v2556, 16
      %v2750 = vshrl.u32 %v2681, 16
      %v2752 = vshll.u32 %v2681, 16
      %v2754 = vrot.slane %v2752, 1
      %v2755 = vor.u32 %v2750, %v2754
      %v2757 = vshll.u32 %v2558, 16
      %v2759 = vrot.slane %v2757, 1
      %v2760 = vsel %vm988, %v2755, %v2759
      %v2761 = vshrl.u32 %v2558, 16
      %v2764 = vshrl.u32 %v2682, 16
      %v2766 = vshll.u32 %v2682, 16
      %v2768 = vrot.slane %v2766, 1
      %v2769 = vor.u32 %v2764, %v2768
      %v2771 = vshll.u32 %v2560, 16
      %v2773 = vrot.slane %v2771, 1
      %v2774 = vsel %vm988, %v2769, %v2773
      %v2775 = vshrl.u32 %v2560, 16
      %v2778 = vshrl.u32 %v2683, 16
      %v2780 = vshll.u32 %v2683, 16
      %v2782 = vrot.slane %v2780, 1
      %v2783 = vor.u32 %v2778, %v2782
      %v2785 = vshll.u32 %v2562, 16
      %v2787 = vrot.slane %v2785, 1
      %v2788 = vsel %vm988, %v2783, %v2787
      %v2789 = vshrl.u32 %v2562, 16
      %v2792 = vshrl.u32 %v2684, 16
      %v2794 = vshll.u32 %v2684, 16
      %v2796 = vrot.slane %v2794, 1
      %v2797 = vor.u32 %v2792, %v2796
      %v2799 = vshll.u32 %v2564, 16
      %v2801 = vrot.slane %v2799, 1
      %v2802 = vsel %vm988, %v2797, %v2801
      %v2803 = vshrl.u32 %v2564, 16
      %v2806 = vshrl.u32 %v2685, 16
      %v2808 = vshll.u32 %v2685, 16
      %v2810 = vrot.slane %v2808, 1
      %v2811 = vor.u32 %v2806, %v2810
      %v2813 = vshll.u32 %v2566, 16
      %v2815 = vrot.slane %v2813, 1
      %v2816 = vsel %vm988, %v2811, %v2815
      %v2817 = vshrl.u32 %v2566, 16
      %v2820 = vshrl.u32 %v2686, 16
      %v2822 = vshll.u32 %v2686, 16
      %v2824 = vrot.slane %v2822, 1
      %v2825 = vor.u32 %v2820, %v2824
      %v2827 = vshll.u32 %v2568, 16
      %v2829 = vrot.slane %v2827, 1
      %v2830 = vsel %vm988, %v2825, %v2829
      %v2831 = vshrl.u32 %v2568, 16
      %v2834 = vshrl.u32 %v2687, 16
      %v2836 = vshll.u32 %v2687, 16
      %v2838 = vrot.slane %v2836, 1
      %v2839 = vor.u32 %v2834, %v2838
      %v2841 = vshll.u32 %v2570, 16
      %v2843 = vrot.slane %v2841, 1
      %v2844 = vsel %vm988, %v2839, %v2843
      %v2845 = vshrl.u32 %v2570, 16
      %v2848 = vshrl.u32 %v2688, 16
      %v2850 = vshll.u32 %v2688, 16
      %v2852 = vrot.slane %v2850, 1
      %v2853 = vor.u32 %v2848, %v2852
      %v2855 = vshll.u32 %v2572, 16
      %v2857 = vrot.slane %v2855, 1
      %v2858 = vsel %vm988, %v2853, %v2857
      %v2859 = vshrl.u32 %v2572, 16
      %v2862 = vshrl.u32 %v2689, 16
      %v2864 = vshll.u32 %v2689, 16
      %v2866 = vrot.slane %v2864, 1
      %v2867 = vor.u32 %v2862, %v2866
      %v2869 = vshll.u32 %v2574, 16
      %v2871 = vrot.slane %v2869, 1
      %v2872 = vsel %vm988, %v2867, %v2871
      %v2873 = vshrl.u32 %v2574, 16
      %v2876 = vshrl.u32 %v2690, 16
      %v2878 = vshll.u32 %v2690, 16
      %v2880 = vrot.slane %v2878, 1
      %v2881 = vor.u32 %v2876, %v2880
      %v2883 = vshll.u32 %v2576, 16
      %v2885 = vrot.slane %v2883, 1
      %v2886 = vsel %vm988, %v2881, %v2885
      %v2887 = vshrl.u32 %v2576, 16
      %v2890 = vshrl.u32 %v2691, 16
      %v2892 = vshll.u32 %v2691, 16
      %v2894 = vrot.slane %v2892, 1
      %v2895 = vor.u32 %v2890, %v2894
      %v2897 = vshll.u32 %v2578, 16
      %v2899 = vrot.slane %v2897, 1
      %v2900 = vsel %vm988, %v2895, %v2899
      %v2901 = vshrl.u32 %v2578, 16
      %v2904 = vshrl.u32 %v2692, 16
      %v2906 = vshll.u32 %v2692, 16
      %v2908 = vrot.slane %v2906, 1
      %v2909 = vor.u32 %v2904, %v2908
      %v2911 = vshll.u32 %v2580, 16
      %v2913 = vrot.slane %v2911, 1
      %v2914 = vsel %vm988, %v2909, %v2913
      %v2915 = vshrl.u32 %v2580, 16
      %2917 = vrot.lane.b32.xlu0 %v2704, 12
      %v2918 = vpop.permute.xlu0 %2917
      %2919 = vrot.lane.b32.xlu0 %v2705, 12
      %v2920 = vpop.permute.xlu0 %2919
      %2921 = vrot.lane.b32.xlu0 %v2718, 12
      %v2922 = vpop.permute.xlu0 %2921
      %2923 = vrot.lane.b32.xlu0 %v2719, 12
      %v2924 = vpop.permute.xlu0 %2923
      %2925 = vrot.lane.b32.xlu0 %v2732, 12
      %v2926 = vpop.permute.xlu0 %2925
      %2927 = vrot.lane.b32.xlu0 %v2733, 12
      %v2928 = vpop.permute.xlu0 %2927
      %2929 = vrot.lane.b32.xlu0 %v2746, 12
      %v2930 = vpop.permute.xlu0 %2929
      %2931 = vrot.lane.b32.xlu0 %v2747, 12
      %v2932 = vpop.permute.xlu0 %2931
      %2933 = vrot.lane.b32.xlu0 %v2760, 12
      %v2934 = vpop.permute.xlu0 %2933
      %2935 = vrot.lane.b32.xlu0 %v2761, 12
      %v2936 = vpop.permute.xlu0 %2935
      %2937 = vrot.lane.b32.xlu0 %v2774, 12
      %v2938 = vpop.permute.xlu0 %2937
      %2939 = vrot.lane.b32.xlu0 %v2775, 12
      %v2940 = vpop.permute.xlu0 %2939
      %2941 = vrot.lane.b32.xlu0 %v2788, 12
      %v2942 = vpop.permute.xlu0 %2941
      %2943 = vrot.lane.b32.xlu0 %v2789, 12
      %v2944 = vpop.permute.xlu0 %2943
      %2945 = vrot.lane.b32.xlu0 %v2802, 12
      %v2946 = vpop.permute.xlu0 %2945
      %2947 = vrot.lane.b32.xlu0 %v2803, 12
      %v2948 = vpop.permute.xlu0 %2947
      %2949 = vrot.lane.b32.xlu0 %v2816, 12
      %v2950 = vpop.permute.xlu0 %2949
      %2951 = vrot.lane.b32.xlu0 %v2817, 12
      %v2952 = vpop.permute.xlu0 %2951
      %2953 = vrot.lane.b32.xlu0 %v2830, 12
      %v2954 = vpop.permute.xlu0 %2953
      %2955 = vrot.lane.b32.xlu0 %v2831, 12
      %v2956 = vpop.permute.xlu0 %2955
      %2957 = vrot.lane.b32.xlu0 %v2844, 12
      %v2958 = vpop.permute.xlu0 %2957
      %2959 = vrot.lane.b32.xlu0 %v2845, 12
      %v2960 = vpop.permute.xlu0 %2959
      %2961 = vrot.lane.b32.xlu0 %v2858, 12
      %v2962 = vpop.permute.xlu0 %2961
      %2963 = vrot.lane.b32.xlu0 %v2859, 12
      %v2964 = vpop.permute.xlu0 %2963
      %2965 = vrot.lane.b32.xlu0 %v2872, 12
      %v2966 = vpop.permute.xlu0 %2965
      %2967 = vrot.lane.b32.xlu0 %v2873, 12
      %v2968 = vpop.permute.xlu0 %2967
      %2969 = vrot.lane.b32.xlu0 %v2886, 12
      %v2970 = vpop.permute.xlu0 %2969
      %2971 = vrot.lane.b32.xlu0 %v2887, 12
      %v2972 = vpop.permute.xlu0 %2971
      %2973 = vrot.lane.b32.xlu0 %v2900, 12
      %v2974 = vpop.permute.xlu0 %2973
      %2975 = vrot.lane.b32.xlu0 %v2901, 12
      %v2976 = vpop.permute.xlu0 %2975
      %2977 = vrot.lane.b32.xlu0 %v2914, 12
      %v2978 = vpop.permute.xlu0 %2977
      %2979 = vrot.lane.b32.xlu0 %v2915, 12
      %v2980 = vpop.permute.xlu0 %2979
      %v2983 = vsel %vm1597, %v2085, %v2390
      %v2985 = vsel %vm1597, %v2086, %v2392
      %v2988 = vsel %vm1597, %v2087, %v2394
      %v2990 = vsel %vm1597, %v2088, %v2396
      %v2993 = vsel %vm1597, %v2089, %v2398
      %v2995 = vsel %vm1597, %v2090, %v2400
      %v2998 = vsel %vm1597, %v2091, %v2402
      %v3000 = vsel %vm1597, %v2092, %v2404
      %v3003 = vsel %vm1597, %v2093, %v2406
      %v3005 = vsel %vm1597, %v2094, %v2408
      %v3008 = vsel %vm1597, %v2095, %v2410
      %v3010 = vsel %vm1597, %v2096, %v2412
      %v3013 = vsel %vm1597, %v2097, %v2414
      %v3015 = vsel %vm1597, %v2098, %v2416
      %v3018 = vsel %vm1597, %v2099, %v2418
      %v3020 = vsel %vm1597, %v2100, %v2420
      %v3023 = vsel %vm1597, %v2101, %v2422
      %v3025 = vsel %vm1597, %v2102, %v2424
      %v3028 = vsel %vm1597, %v2103, %v2426
      %v3030 = vsel %vm1597, %v2104, %v2428
      %v3033 = vsel %vm1597, %v2105, %v2430
      %v3035 = vsel %vm1597, %v2106, %v2432
      %v3038 = vsel %vm1597, %v2107, %v2434
      %v3040 = vsel %vm1597, %v2108, %v2436
      %v3043 = vsel %vm1597, %v2109, %v2438
      %v3045 = vsel %vm1597, %v2110, %v2440
      %v3048 = vsel %vm1597, %v2111, %v2442
      %v3050 = vsel %vm1597, %v2112, %v2444
      %v3053 = vsel %vm1597, %v2113, %v2446
      %v3055 = vsel %vm1597, %v2114, %v2448
      %v3058 = vsel %vm1597, %v2115, %v2450
      %v3060 = vsel %vm1597, %v2116, %v2452
      %v3062 = vsel %vm1630, %v2983, %v2582
      %v3064 = vsel %vm1630, %v2985, %v2584
      %v3066 = vsel %vm1630, %v2988, %v2586
      %v3068 = vsel %vm1630, %v2990, %v2588
      %v3070 = vsel %vm1630, %v2993, %v2590
      %v3072 = vsel %vm1630, %v2995, %v2592
      %v3074 = vsel %vm1630, %v2998, %v2594
      %v3076 = vsel %vm1630, %v3000, %v2596
      %v3078 = vsel %vm1630, %v3003, %v2598
      %v3080 = vsel %vm1630, %v3005, %v2600
      %v3082 = vsel %vm1630, %v3008, %v2602
      %v3084 = vsel %vm1630, %v3010, %v2604
      %v3086 = vsel %vm1630, %v3013, %v2606
      %v3088 = vsel %vm1630, %v3015, %v2608
      %v3090 = vsel %vm1630, %v3018, %v2610
      %v3092 = vsel %vm1630, %v3020, %v2612
      %v3094 = vsel %vm1630, %v3023, %v2614
      %v3096 = vsel %vm1630, %v3025, %v2616
      %v3098 = vsel %vm1630, %v3028, %v2618
      %v3100 = vsel %vm1630, %v3030, %v2620
      %v3102 = vsel %vm1630, %v3033, %v2622
      %v3104 = vsel %vm1630, %v3035, %v2624
      %v3106 = vsel %vm1630, %v3038, %v2626
      %v3108 = vsel %vm1630, %v3040, %v2628
      %v3110 = vsel %vm1630, %v3043, %v2630
      %v3112 = vsel %vm1630, %v3045, %v2632
      %v3114 = vsel %vm1630, %v3048, %v2634
      %v3116 = vsel %vm1630, %v3050, %v2636
      %v3118 = vsel %vm1630, %v3053, %v2638
      %v3120 = vsel %vm1630, %v3055, %v2640
      %v3122 = vsel %vm1630, %v3058, %v2642
      %v3124 = vsel %vm1630, %v3060, %v2644
      %v3126 = vsel %vm1663, %v3062, %v2918
      %v3128 = vsel %vm1663, %v3064, %v2920
      %v3130 = vsel %vm1663, %v3066, %v2922
      %v3132 = vsel %vm1663, %v3068, %v2924
      %v3134 = vsel %vm1663, %v3070, %v2926
      %v3136 = vsel %vm1663, %v3072, %v2928
      %v3138 = vsel %vm1663, %v3074, %v2930
      %v3140 = vsel %vm1663, %v3076, %v2932
      %v3142 = vsel %vm1663, %v3078, %v2934
      %v3144 = vsel %vm1663, %v3080, %v2936
      %v3146 = vsel %vm1663, %v3082, %v2938
      %v3148 = vsel %vm1663, %v3084, %v2940
      %v3150 = vsel %vm1663, %v3086, %v2942
      %v3152 = vsel %vm1663, %v3088, %v2944
      %v3154 = vsel %vm1663, %v3090, %v2946
      %v3156 = vsel %vm1663, %v3092, %v2948
      %v3158 = vsel %vm1663, %v3094, %v2950
      %v3160 = vsel %vm1663, %v3096, %v2952
      %v3162 = vsel %vm1663, %v3098, %v2954
      %v3164 = vsel %vm1663, %v3100, %v2956
      %v3166 = vsel %vm1663, %v3102, %v2958
      %v3168 = vsel %vm1663, %v3104, %v2960
      %v3170 = vsel %vm1663, %v3106, %v2962
      %v3172 = vsel %vm1663, %v3108, %v2964
      %v3174 = vsel %vm1663, %v3110, %v2966
      %v3176 = vsel %vm1663, %v3112, %v2968
      %v3178 = vsel %vm1663, %v3114, %v2970
      %v3180 = vsel %vm1663, %v3116, %v2972
      %v3182 = vsel %vm1663, %v3118, %v2974
      %v3184 = vsel %vm1663, %v3120, %v2976
      %v3186 = vsel %vm1663, %v3122, %v2978
      %v3188 = vsel %vm1663, %v3124, %v2980
      %s3189 = scalar_lea.vmem %s1, 8
      %v3190 = vld [vmem:[%s3189] sm:$0xf]
      %v3191 = vld [vmem:[%s3189 + $0x4] sm:$0xf]
      %v3192 = vshrl.u32 %v3126, 16
      %v3194 = vshll.u32 %v3126, 16
      %v3196 = vrot.slane %v3194, 1
      %v3197 = vor.u32 %v3192, %v3196
      %v3198 = vshll.u32 %v3128, 16
      %v3200 = vrot.slane %v3198, 1
      %v3201 = vsel %vm988, %v3197, %v3200
      %v3202 = vshrl.u32 %v3130, 16
      %v3204 = vshll.u32 %v3130, 16
      %v3206 = vrot.slane %v3204, 1
      %v3207 = vor.u32 %v3202, %v3206
      %v3208 = vshll.u32 %v3132, 16
      %v3210 = vrot.slane %v3208, 1
      %v3211 = vsel %vm988, %v3207, %v3210
      %v3212 = vshrl.u32 %v3134, 16
      %v3214 = vshll.u32 %v3134, 16
      %v3216 = vrot.slane %v3214, 1
      %v3217 = vor.u32 %v3212, %v3216
      %v3218 = vshll.u32 %v3136, 16
      %v3220 = vrot.slane %v3218, 1
      %v3221 = vsel %vm988, %v3217, %v3220
      %v3222 = vshrl.u32 %v3138, 16
      %v3224 = vshll.u32 %v3138, 16
      %v3226 = vrot.slane %v3224, 1
      %v3227 = vor.u32 %v3222, %v3226
      %v3228 = vshll.u32 %v3140, 16
      %v3230 = vrot.slane %v3228, 1
      %v3231 = vsel %vm988, %v3227, %v3230
      %v3232 = vshrl.u32 %v3142, 16
      %v3234 = vshll.u32 %v3142, 16
      %v3236 = vrot.slane %v3234, 1
      %v3237 = vor.u32 %v3232, %v3236
      %v3238 = vshll.u32 %v3144, 16
      %v3240 = vrot.slane %v3238, 1
      %v3241 = vsel %vm988, %v3237, %v3240
      %v3242 = vshrl.u32 %v3146, 16
      %v3244 = vshll.u32 %v3146, 16
      %v3246 = vrot.slane %v3244, 1
      %v3247 = vor.u32 %v3242, %v3246
      %v3248 = vshll.u32 %v3148, 16
      %v3250 = vrot.slane %v3248, 1
      %v3251 = vsel %vm988, %v3247, %v3250
      %v3252 = vshrl.u32 %v3150, 16
      %v3254 = vshll.u32 %v3150, 16
      %v3256 = vrot.slane %v3254, 1
      %v3257 = vor.u32 %v3252, %v3256
      %v3258 = vshll.u32 %v3152, 16
      %v3260 = vrot.slane %v3258, 1
      %v3261 = vsel %vm988, %v3257, %v3260
      %v3262 = vshrl.u32 %v3154, 16
      %v3264 = vshll.u32 %v3154, 16
      %v3266 = vrot.slane %v3264, 1
      %v3267 = vor.u32 %v3262, %v3266
      %v3268 = vshll.u32 %v3156, 16
      %v3270 = vrot.slane %v3268, 1
      %v3271 = vsel %vm988, %v3267, %v3270
      %v3272 = vshrl.u32 %v3158, 16
      %v3274 = vshll.u32 %v3158, 16
      %v3276 = vrot.slane %v3274, 1
      %v3277 = vor.u32 %v3272, %v3276
      %v3278 = vshll.u32 %v3160, 16
      %v3280 = vrot.slane %v3278, 1
      %v3281 = vsel %vm988, %v3277, %v3280
      %v3282 = vshrl.u32 %v3162, 16
      %v3284 = vshll.u32 %v3162, 16
      %v3286 = vrot.slane %v3284, 1
      %v3287 = vor.u32 %v3282, %v3286
      %v3288 = vshll.u32 %v3164, 16
      %v3290 = vrot.slane %v3288, 1
      %v3291 = vsel %vm988, %v3287, %v3290
      %v3292 = vshrl.u32 %v3166, 16
      %v3294 = vshll.u32 %v3166, 16
      %v3296 = vrot.slane %v3294, 1
      %v3297 = vor.u32 %v3292, %v3296
      %v3298 = vshll.u32 %v3168, 16
      %v3300 = vrot.slane %v3298, 1
      %v3301 = vsel %vm988, %v3297, %v3300
      %v3302 = vshrl.u32 %v3170, 16
      %v3304 = vshll.u32 %v3170, 16
      %v3306 = vrot.slane %v3304, 1
      %v3307 = vor.u32 %v3302, %v3306
      %v3308 = vshll.u32 %v3172, 16
      %v3310 = vrot.slane %v3308, 1
      %v3311 = vsel %vm988, %v3307, %v3310
      %v3312 = vshrl.u32 %v3174, 16
      %v3314 = vshll.u32 %v3174, 16
      %v3316 = vrot.slane %v3314, 1
      %v3317 = vor.u32 %v3312, %v3316
      %v3318 = vshll.u32 %v3176, 16
      %v3320 = vrot.slane %v3318, 1
      %v3321 = vsel %vm988, %v3317, %v3320
      %v3322 = vshrl.u32 %v3178, 16
      %v3324 = vshll.u32 %v3178, 16
      %v3326 = vrot.slane %v3324, 1
      %v3327 = vor.u32 %v3322, %v3326
      %v3328 = vshll.u32 %v3180, 16
      %v3330 = vrot.slane %v3328, 1
      %v3331 = vsel %vm988, %v3327, %v3330
      %v3332 = vshrl.u32 %v3182, 16
      %v3334 = vshll.u32 %v3182, 16
      %v3336 = vrot.slane %v3334, 1
      %v3337 = vor.u32 %v3332, %v3336
      %v3338 = vshll.u32 %v3184, 16
      %v3340 = vrot.slane %v3338, 1
      %v3341 = vsel %vm988, %v3337, %v3340
      %v3342 = vshrl.u32 %v3186, 16
      %v3344 = vshll.u32 %v3186, 16
      %v3346 = vrot.slane %v3344, 1
      %v3347 = vor.u32 %v3342, %v3346
      %v3348 = vshll.u32 %v3188, 16
      %v3350 = vrot.slane %v3348, 1
      %v3351 = vsel %vm988, %v3347, %v3350
      %v3354 = vunpack.c.l.b16 %v3190
      %v3355 = vunpack.c.l.b16 %v3191
      %v3356 = vpack.c.b16 %v3355, %v3354
      %v3359 = vsel %vm1707, %v3201, 0
      %v3362 = vsel %vm1707, %v3211, 0
      %v3365 = vsel %vm1707, %v3221, 0
      %v3368 = vsel %vm1707, %v3231, 0
      %v3371 = vsel %vm1707, %v3241, 0
      %v3374 = vsel %vm1707, %v3251, 0
      %v3377 = vsel %vm1707, %v3261, 0
      %v3380 = vsel %vm1707, %v3271, 0
      %v3383 = vsel %vm1707, %v3281, 0
      %v3386 = vsel %vm1707, %v3291, 0
      %v3389 = vsel %vm1707, %v3301, 0
      %v3392 = vsel %vm1707, %v3311, 0
      %v3395 = vsel %vm1707, %v3321, 0
      %v3398 = vsel %vm1707, %v3331, 0
      %v3401 = vsel %vm1707, %v3341, 0
      %v3404 = vsel %vm1707, %v3351, 0
      %3406 = vmatpush.bf16.msra.mxu0 0
      %3407 = vmatpush.bf16.msra.mxu0 0
      %3408 = vmatpush.bf16.msra.mxu0 0
      %3409 = vmatpush.bf16.msra.mxu0 0
      %3410 = vmatpush.bf16.msra.mxu0 0
      %3411 = vmatpush.bf16.msra.mxu0 0
      %3412 = vmatpush.bf16.msra.mxu0 0
      %3413 = vmatpush.bf16.msra.mxu0 %v3356
      %3414 = vmatmul.bf16.gmra.mxu0 %v3359
      %v3415 = vpop.f32.mrf.mxu0
      %v3416 = vadd.f32 %v1699, %v3415
      %v3417 = vpop.f32.mrf.mxu0
      %v3418 = vadd.f32 %v1699, %v3417
      %3419 = vmatmul.bf16.gmra.mxu0 %v3362
      %v3420 = vpop.f32.mrf.mxu0
      %v3421 = vadd.f32 %v1699, %v3420
      %v3422 = vpop.f32.mrf.mxu0
      %v3423 = vadd.f32 %v1699, %v3422
      %3424 = vmatmul.bf16.gmra.mxu0 %v3365
      %v3425 = vpop.f32.mrf.mxu0
      %v3426 = vadd.f32 %v1699, %v3425
      %v3427 = vpop.f32.mrf.mxu0
      %v3428 = vadd.f32 %v1699, %v3427
      %3429 = vmatmul.bf16.gmra.mxu0 %v3368
      %v3430 = vpop.f32.mrf.mxu0
      %v3431 = vadd.f32 %v1699, %v3430
      %v3432 = vpop.f32.mrf.mxu0
      %v3433 = vadd.f32 %v1699, %v3432
      %3434 = vmatmul.bf16.gmra.mxu0 %v3371
      %v3435 = vpop.f32.mrf.mxu0
      %v3436 = vadd.f32 %v1699, %v3435
      %v3437 = vpop.f32.mrf.mxu0
      %v3438 = vadd.f32 %v1699, %v3437
      %3439 = vmatmul.bf16.gmra.mxu0 %v3374
      %v3440 = vpop.f32.mrf.mxu0
      %v3441 = vadd.f32 %v1699, %v3440
      %v3442 = vpop.f32.mrf.mxu0
      %v3443 = vadd.f32 %v1699, %v3442
      %3444 = vmatmul.bf16.gmra.mxu0 %v3377
      %v3445 = vpop.f32.mrf.mxu0
      %v3446 = vadd.f32 %v1699, %v3445
      %v3447 = vpop.f32.mrf.mxu0
      %v3448 = vadd.f32 %v1699, %v3447
      %3449 = vmatmul.bf16.gmra.mxu0 %v3380
      %v3450 = vpop.f32.mrf.mxu0
      %v3451 = vadd.f32 %v1699, %v3450
      %v3452 = vpop.f32.mrf.mxu0
      %v3453 = vadd.f32 %v1699, %v3452
      %3454 = vmatmul.bf16.gmra.mxu0 %v3383
      %v3455 = vpop.f32.mrf.mxu0
      %v3456 = vadd.f32 %v1699, %v3455
      %v3457 = vpop.f32.mrf.mxu0
      %v3458 = vadd.f32 %v1699, %v3457
      %3459 = vmatmul.bf16.gmra.mxu0 %v3386
      %v3460 = vpop.f32.mrf.mxu0
      %v3461 = vadd.f32 %v1699, %v3460
      %v3462 = vpop.f32.mrf.mxu0
      %v3463 = vadd.f32 %v1699, %v3462
      %3464 = vmatmul.bf16.gmra.mxu0 %v3389
      %v3465 = vpop.f32.mrf.mxu0
      %v3466 = vadd.f32 %v1699, %v3465
      %v3467 = vpop.f32.mrf.mxu0
      %v3468 = vadd.f32 %v1699, %v3467
      %3469 = vmatmul.bf16.gmra.mxu0 %v3392
      %v3470 = vpop.f32.mrf.mxu0
      %v3471 = vadd.f32 %v1699, %v3470
      %v3472 = vpop.f32.mrf.mxu0
      %v3473 = vadd.f32 %v1699, %v3472
      %3474 = vmatmul.bf16.gmra.mxu0 %v3395
      %v3475 = vpop.f32.mrf.mxu0
      %v3476 = vadd.f32 %v1699, %v3475
      %v3477 = vpop.f32.mrf.mxu0
      %v3478 = vadd.f32 %v1699, %v3477
      %3479 = vmatmul.bf16.gmra.mxu0 %v3398
      %v3480 = vpop.f32.mrf.mxu0
      %v3481 = vadd.f32 %v1699, %v3480
      %v3482 = vpop.f32.mrf.mxu0
      %v3483 = vadd.f32 %v1699, %v3482
      %3484 = vmatmul.bf16.gmra.mxu0 %v3401
      %v3485 = vpop.f32.mrf.mxu0
      %v3486 = vadd.f32 %v1699, %v3485
      %v3487 = vpop.f32.mrf.mxu0
      %v3488 = vadd.f32 %v1699, %v3487
      %3489 = vmatmul.bf16.gmra.mxu0 %v3404
      %v3490 = vpop.f32.mrf.mxu0
      %v3491 = vadd.f32 %v1699, %v3490
      %v3492 = vpop.f32.mrf.mxu0
      %v3493 = vadd.f32 %v1699, %v3492
      %3494 = vdwg.mxu0
      %3527 = vrot.lane.b32.xlu0 %v3416, 4
      %v3528 = vpop.permute.xlu0 %3527
      %3529 = vrot.lane.b32.xlu0 %v3418, 4
      %v3530 = vpop.permute.xlu0 %3529
      %3531 = vrot.lane.b32.xlu0 %v3421, 4
      %v3532 = vpop.permute.xlu0 %3531
      %3533 = vrot.lane.b32.xlu0 %v3423, 4
      %v3534 = vpop.permute.xlu0 %3533
      %3535 = vrot.lane.b32.xlu0 %v3426, 4
      %v3536 = vpop.permute.xlu0 %3535
      %3537 = vrot.lane.b32.xlu0 %v3428, 4
      %v3538 = vpop.permute.xlu0 %3537
      %3539 = vrot.lane.b32.xlu0 %v3431, 4
      %v3540 = vpop.permute.xlu0 %3539
      %3541 = vrot.lane.b32.xlu0 %v3433, 4
      %v3542 = vpop.permute.xlu0 %3541
      %3543 = vrot.lane.b32.xlu0 %v3436, 4
      %v3544 = vpop.permute.xlu0 %3543
      %3545 = vrot.lane.b32.xlu0 %v3438, 4
      %v3546 = vpop.permute.xlu0 %3545
      %3547 = vrot.lane.b32.xlu0 %v3441, 4
      %v3548 = vpop.permute.xlu0 %3547
      %3549 = vrot.lane.b32.xlu0 %v3443, 4
      %v3550 = vpop.permute.xlu0 %3549
      %3551 = vrot.lane.b32.xlu0 %v3446, 4
      %v3552 = vpop.permute.xlu0 %3551
      %3553 = vrot.lane.b32.xlu0 %v3448, 4
      %v3554 = vpop.permute.xlu0 %3553
      %3555 = vrot.lane.b32.xlu0 %v3451, 4
      %v3556 = vpop.permute.xlu0 %3555
      %3557 = vrot.lane.b32.xlu0 %v3453, 4
      %v3558 = vpop.permute.xlu0 %3557
      %3559 = vrot.lane.b32.xlu0 %v3456, 4
      %v3560 = vpop.permute.xlu0 %3559
      %3561 = vrot.lane.b32.xlu0 %v3458, 4
      %v3562 = vpop.permute.xlu0 %3561
      %3563 = vrot.lane.b32.xlu0 %v3461, 4
      %v3564 = vpop.permute.xlu0 %3563
      %3565 = vrot.lane.b32.xlu0 %v3463, 4
      %v3566 = vpop.permute.xlu0 %3565
      %3567 = vrot.lane.b32.xlu0 %v3466, 4
      %v3568 = vpop.permute.xlu0 %3567
      %3569 = vrot.lane.b32.xlu0 %v3468, 4
      %v3570 = vpop.permute.xlu0 %3569
      %3571 = vrot.lane.b32.xlu0 %v3471, 4
      %v3572 = vpop.permute.xlu0 %3571
      %3573 = vrot.lane.b32.xlu0 %v3473, 4
      %v3574 = vpop.permute.xlu0 %3573
      %3575 = vrot.lane.b32.xlu0 %v3476, 4
      %v3576 = vpop.permute.xlu0 %3575
      %3577 = vrot.lane.b32.xlu0 %v3478, 4
      %v3578 = vpop.permute.xlu0 %3577
      %3579 = vrot.lane.b32.xlu0 %v3481, 4
      %v3580 = vpop.permute.xlu0 %3579
      %3581 = vrot.lane.b32.xlu0 %v3483, 4
      %v3582 = vpop.permute.xlu0 %3581
      %3583 = vrot.lane.b32.xlu0 %v3486, 4
      %v3584 = vpop.permute.xlu0 %3583
      %3585 = vrot.lane.b32.xlu0 %v3488, 4
      %v3586 = vpop.permute.xlu0 %3585
      %3587 = vrot.lane.b32.xlu0 %v3491, 4
      %v3588 = vpop.permute.xlu0 %3587
      %3589 = vrot.lane.b32.xlu0 %v3493, 4
      %v3590 = vpop.permute.xlu0 %3589
      %vm3623 = vcmask 64544
      %3624 = vst.msk [vmem:[%s170] sm:$0xff] %vm3623, %v3528
      %3625 = vst.msk [vmem:[%s170 + $0x8] sm:$0xff] %vm3623, %v3530
      %3626 = vst.msk [vmem:[%s170 + $0x20] sm:$0xff] %vm3623, %v3532
      %3627 = vst.msk [vmem:[%s170 + $0x28] sm:$0xff] %vm3623, %v3534
      %3628 = vst.msk [vmem:[%s170 + $0x40] sm:$0xff] %vm3623, %v3536
      %3629 = vst.msk [vmem:[%s170 + $0x48] sm:$0xff] %vm3623, %v3538
      %3630 = vst.msk [vmem:[%s170 + $0x60] sm:$0xff] %vm3623, %v3540
      %3631 = vst.msk [vmem:[%s170 + $0x68] sm:$0xff] %vm3623, %v3542
      %3632 = vst.msk [vmem:[%s170 + $0x80] sm:$0xff] %vm3623, %v3544
      %3633 = vst.msk [vmem:[%s170 + $0x88] sm:$0xff] %vm3623, %v3546
      %3634 = vst.msk [vmem:[%s170 + $0xa0] sm:$0xff] %vm3623, %v3548
      %3635 = vst.msk [vmem:[%s170 + $0xa8] sm:$0xff] %vm3623, %v3550
      %3636 = vst.msk [vmem:[%s170 + $0xc0] sm:$0xff] %vm3623, %v3552
      %3637 = vst.msk [vmem:[%s170 + $0xc8] sm:$0xff] %vm3623, %v3554
      %3638 = vst.msk [vmem:[%s170 + $0xe0] sm:$0xff] %vm3623, %v3556
      %3639 = vst.msk [vmem:[%s170 + $0xe8] sm:$0xff] %vm3623, %v3558
      %3640 = vst.msk [vmem:[%s170 + $0x100] sm:$0xff] %vm3623, %v3560
      %3641 = vst.msk [vmem:[%s170 + $0x108] sm:$0xff] %vm3623, %v3562
      %3642 = vst.msk [vmem:[%s170 + $0x120] sm:$0xff] %vm3623, %v3564
      %3643 = vst.msk [vmem:[%s170 + $0x128] sm:$0xff] %vm3623, %v3566
      %3644 = vst.msk [vmem:[%s170 + $0x140] sm:$0xff] %vm3623, %v3568
      %3645 = vst.msk [vmem:[%s170 + $0x148] sm:$0xff] %vm3623, %v3570
      %3646 = vst.msk [vmem:[%s170 + $0x160] sm:$0xff] %vm3623, %v3572
      %3647 = vst.msk [vmem:[%s170 + $0x168] sm:$0xff] %vm3623, %v3574
      %3648 = vst.msk [vmem:[%s170 + $0x180] sm:$0xff] %vm3623, %v3576
      %3649 = vst.msk [vmem:[%s170 + $0x188] sm:$0xff] %vm3623, %v3578
      %3650 = vst.msk [vmem:[%s170 + $0x1a0] sm:$0xff] %vm3623, %v3580
      %3651 = vst.msk [vmem:[%s170 + $0x1a8] sm:$0xff] %vm3623, %v3582
      %3652 = vst.msk [vmem:[%s170 + $0x1c0] sm:$0xff] %vm3623, %v3584
      %3653 = vst.msk [vmem:[%s170 + $0x1c8] sm:$0xff] %vm3623, %v3586
      %3654 = vst.msk [vmem:[%s170 + $0x1e0] sm:$0xff] %vm3623, %v3588
      %3655 = vst.msk [vmem:[%s170 + $0x1e8] sm:$0xff] %vm3623, %v3590
      %v3656 = vld [vmem:[%s648] sm:$0xf]
      %v3657 = vld [vmem:[%s648 + $0x4] sm:$0xf]
      %v3658 = vld [vmem:[%s648 + $0xc] sm:$0xf]
      %v3659 = vld [vmem:[%s648 + $0x10] sm:$0xf]
      %v3660 = vld [vmem:[%s648 + $0x18] sm:$0xf]
      %v3661 = vld [vmem:[%s648 + $0x1c] sm:$0xf]
      %v3662 = vld [vmem:[%s648 + $0x24] sm:$0xf]
      %v3663 = vld [vmem:[%s648 + $0x28] sm:$0xf]
      %v3664 = vld [vmem:[%s648 + $0x30] sm:$0xf]
      %v3665 = vld [vmem:[%s648 + $0x34] sm:$0xf]
      %v3666 = vld [vmem:[%s648 + $0x3c] sm:$0xf]
      %v3667 = vld [vmem:[%s648 + $0x40] sm:$0xf]
      %v3668 = vld [vmem:[%s648 + $0x48] sm:$0xf]
      %v3669 = vld [vmem:[%s648 + $0x4c] sm:$0xf]
      %v3670 = vld [vmem:[%s648 + $0x54] sm:$0xf]
      %v3671 = vld [vmem:[%s648 + $0x58] sm:$0xf]
      %v3672 = vld [vmem:[%s648 + $0x60] sm:$0xf]
      %v3673 = vld [vmem:[%s648 + $0x64] sm:$0xf]
      %v3674 = vld [vmem:[%s648 + $0x6c] sm:$0xf]
      %v3675 = vld [vmem:[%s648 + $0x70] sm:$0xf]
      %v3676 = vld [vmem:[%s648 + $0x78] sm:$0xf]
      %v3677 = vld [vmem:[%s648 + $0x7c] sm:$0xf]
      %v3678 = vld [vmem:[%s648 + $0x84] sm:$0xf]
      %v3679 = vld [vmem:[%s648 + $0x88] sm:$0xf]
      %v3680 = vld [vmem:[%s648 + $0x90] sm:$0xf]
      %v3681 = vld [vmem:[%s648 + $0x94] sm:$0xf]
      %v3682 = vld [vmem:[%s648 + $0x9c] sm:$0xf]
      %v3683 = vld [vmem:[%s648 + $0xa0] sm:$0xf]
      %v3684 = vld [vmem:[%s648 + $0xa8] sm:$0xf]
      %v3685 = vld [vmem:[%s648 + $0xac] sm:$0xf]
      %v3686 = vld [vmem:[%s648 + $0xb4] sm:$0xf]
      %v3687 = vld [vmem:[%s648 + $0xb8] sm:$0xf]
      %v3688 = vld [vmem:[%s648 + $0x8] sm:$0x1]
      %v3689 = vld [vmem:[%s648 + $0x14] sm:$0x1]
      %v3690 = vld [vmem:[%s648 + $0x20] sm:$0x1]
      %v3691 = vld [vmem:[%s648 + $0x2c] sm:$0x1]
      %v3692 = vld [vmem:[%s648 + $0x38] sm:$0x1]
      %v3693 = vld [vmem:[%s648 + $0x44] sm:$0x1]
      %v3694 = vld [vmem:[%s648 + $0x50] sm:$0x1]
      %v3695 = vld [vmem:[%s648 + $0x5c] sm:$0x1]
      %v3696 = vld [vmem:[%s648 + $0x68] sm:$0x1]
      %v3697 = vld [vmem:[%s648 + $0x74] sm:$0x1]
      %v3698 = vld [vmem:[%s648 + $0x80] sm:$0x1]
      %v3699 = vld [vmem:[%s648 + $0x8c] sm:$0x1]
      %v3700 = vld [vmem:[%s648 + $0x98] sm:$0x1]
      %v3701 = vld [vmem:[%s648 + $0xa4] sm:$0x1]
      %v3702 = vld [vmem:[%s648 + $0xb0] sm:$0x1]
      %v3703 = vld [vmem:[%s648 + $0xbc] sm:$0x1]
      %s3704 = scalar_lea.vmem [#allocation2], 24
      %v3705 = vld [vmem:[%s3704] sm:$0xf]
      %v3706 = vld [vmem:[%s3704 + $0x4] sm:$0xf]
      %v3707 = vld [vmem:[%s3704 + $0xc] sm:$0xf]
      %v3708 = vld [vmem:[%s3704 + $0x10] sm:$0xf]
      %v3709 = vld [vmem:[%s3704 + $0x18] sm:$0xf]
      %v3710 = vld [vmem:[%s3704 + $0x1c] sm:$0xf]
      %v3711 = vld [vmem:[%s3704 + $0x24] sm:$0xf]
      %v3712 = vld [vmem:[%s3704 + $0x28] sm:$0xf]
      %v3713 = vld [vmem:[%s3704 + $0x30] sm:$0xf]
      %v3714 = vld [vmem:[%s3704 + $0x34] sm:$0xf]
      %v3715 = vld [vmem:[%s3704 + $0x3c] sm:$0xf]
      %v3716 = vld [vmem:[%s3704 + $0x40] sm:$0xf]
      %v3717 = vld [vmem:[%s3704 + $0x48] sm:$0xf]
      %v3718 = vld [vmem:[%s3704 + $0x4c] sm:$0xf]
      %v3719 = vld [vmem:[%s3704 + $0x54] sm:$0xf]
      %v3720 = vld [vmem:[%s3704 + $0x58] sm:$0xf]
      %v3721 = vld [vmem:[%s3704 + $0x60] sm:$0xf]
      %v3722 = vld [vmem:[%s3704 + $0x64] sm:$0xf]
      %v3723 = vld [vmem:[%s3704 + $0x6c] sm:$0xf]
      %v3724 = vld [vmem:[%s3704 + $0x70] sm:$0xf]
      %v3725 = vld [vmem:[%s3704 + $0x78] sm:$0xf]
      %v3726 = vld [vmem:[%s3704 + $0x7c] sm:$0xf]
      %v3727 = vld [vmem:[%s3704 + $0x84] sm:$0xf]
      %v3728 = vld [vmem:[%s3704 + $0x88] sm:$0xf]
      %v3729 = vld [vmem:[%s3704 + $0x90] sm:$0xf]
      %v3730 = vld [vmem:[%s3704 + $0x94] sm:$0xf]
      %v3731 = vld [vmem:[%s3704 + $0x9c] sm:$0xf]
      %v3732 = vld [vmem:[%s3704 + $0xa0] sm:$0xf]
      %v3733 = vld [vmem:[%s3704 + $0xa8] sm:$0xf]
      %v3734 = vld [vmem:[%s3704 + $0xac] sm:$0xf]
      %v3735 = vld [vmem:[%s3704 + $0xb4] sm:$0xf]
      %v3736 = vld [vmem:[%s3704 + $0xb8] sm:$0xf]
      %v3737 = vld [vmem:[%s3704 + $0x8] sm:$0x1]
      %v3738 = vld [vmem:[%s3704 + $0x14] sm:$0x1]
      %v3739 = vld [vmem:[%s3704 + $0x20] sm:$0x1]
      %v3740 = vld [vmem:[%s3704 + $0x2c] sm:$0x1]
      %v3741 = vld [vmem:[%s3704 + $0x38] sm:$0x1]
      %v3742 = vld [vmem:[%s3704 + $0x44] sm:$0x1]
      %v3743 = vld [vmem:[%s3704 + $0x50] sm:$0x1]
      %v3744 = vld [vmem:[%s3704 + $0x5c] sm:$0x1]
      %v3745 = vld [vmem:[%s3704 + $0x68] sm:$0x1]
      %v3746 = vld [vmem:[%s3704 + $0x74] sm:$0x1]
      %v3747 = vld [vmem:[%s3704 + $0x80] sm:$0x1]
      %v3748 = vld [vmem:[%s3704 + $0x8c] sm:$0x1]
      %v3749 = vld [vmem:[%s3704 + $0x98] sm:$0x1]
      %v3750 = vld [vmem:[%s3704 + $0xa4] sm:$0x1]
      %v3751 = vld [vmem:[%s3704 + $0xb0] sm:$0x1]
      %v3752 = vld [vmem:[%s3704 + $0xbc] sm:$0x1]
      %v3785 = vunpack.c.l.b16 %v3656
      %v3786 = vunpack.c.l.b16 %v3657
      %v3787 = vunpack.c.l.b16 %v3658
      %v3788 = vunpack.c.l.b16 %v3659
      %v3789 = vunpack.c.l.b16 %v3660
      %v3790 = vunpack.c.l.b16 %v3661
      %v3791 = vunpack.c.l.b16 %v3662
      %v3792 = vunpack.c.l.b16 %v3663
      %v3793 = vunpack.c.l.b16 %v3664
      %v3794 = vunpack.c.l.b16 %v3665
      %v3795 = vunpack.c.l.b16 %v3666
      %v3796 = vunpack.c.l.b16 %v3667
      %v3797 = vunpack.c.l.b16 %v3668
      %v3798 = vunpack.c.l.b16 %v3669
      %v3799 = vunpack.c.l.b16 %v3670
      %v3800 = vunpack.c.l.b16 %v3671
      %v3801 = vunpack.c.l.b16 %v3672
      %v3802 = vunpack.c.l.b16 %v3673
      %v3803 = vunpack.c.l.b16 %v3674
      %v3804 = vunpack.c.l.b16 %v3675
      %v3805 = vunpack.c.l.b16 %v3676
      %v3806 = vunpack.c.l.b16 %v3677
      %v3807 = vunpack.c.l.b16 %v3678
      %v3808 = vunpack.c.l.b16 %v3679
      %v3809 = vunpack.c.l.b16 %v3680
      %v3810 = vunpack.c.l.b16 %v3681
      %v3811 = vunpack.c.l.b16 %v3682
      %v3812 = vunpack.c.l.b16 %v3683
      %v3813 = vunpack.c.l.b16 %v3684
      %v3814 = vunpack.c.l.b16 %v3685
      %v3815 = vunpack.c.l.b16 %v3686
      %v3816 = vunpack.c.l.b16 %v3687
      %v3817 = vpack.c.b16 %v3786, %v3785
      %v3818 = vpack.c.b16 %v3788, %v3787
      %v3819 = vpack.c.b16 %v3790, %v3789
      %v3820 = vpack.c.b16 %v3792, %v3791
      %v3821 = vpack.c.b16 %v3794, %v3793
      %v3822 = vpack.c.b16 %v3796, %v3795
      %v3823 = vpack.c.b16 %v3798, %v3797
      %v3824 = vpack.c.b16 %v3800, %v3799
      %v3825 = vpack.c.b16 %v3802, %v3801
      %v3826 = vpack.c.b16 %v3804, %v3803
      %v3827 = vpack.c.b16 %v3806, %v3805
      %v3828 = vpack.c.b16 %v3808, %v3807
      %v3829 = vpack.c.b16 %v3810, %v3809
      %v3830 = vpack.c.b16 %v3812, %v3811
      %v3831 = vpack.c.b16 %v3814, %v3813
      %v3832 = vpack.c.b16 %v3816, %v3815
      %v3849 = vunpack.c.l.b16 %v3688
      %v3850 = vunpack.c.l.b16 %v3689
      %v3851 = vunpack.c.l.b16 %v3690
      %v3852 = vunpack.c.l.b16 %v3691
      %v3853 = vunpack.c.l.b16 %v3692
      %v3854 = vunpack.c.l.b16 %v3693
      %v3855 = vunpack.c.l.b16 %v3694
      %v3856 = vunpack.c.l.b16 %v3695
      %v3857 = vunpack.c.l.b16 %v3696
      %v3858 = vunpack.c.l.b16 %v3697
      %v3859 = vunpack.c.l.b16 %v3698
      %v3860 = vunpack.c.l.b16 %v3699
      %v3861 = vunpack.c.l.b16 %v3700
      %v3862 = vunpack.c.l.b16 %v3701
      %v3863 = vunpack.c.l.b16 %v3702
      %v3864 = vunpack.c.l.b16 %v3703
      %v3865 = vpack.c.b16 %v3849, %v3849
      %v3866 = vpack.c.b16 %v3850, %v3850
      %v3867 = vpack.c.b16 %v3851, %v3851
      %v3868 = vpack.c.b16 %v3852, %v3852
      %v3869 = vpack.c.b16 %v3853, %v3853
      %v3870 = vpack.c.b16 %v3854, %v3854
      %v3871 = vpack.c.b16 %v3855, %v3855
      %v3872 = vpack.c.b16 %v3856, %v3856
      %v3873 = vpack.c.b16 %v3857, %v3857
      %v3874 = vpack.c.b16 %v3858, %v3858
      %v3875 = vpack.c.b16 %v3859, %v3859
      %v3876 = vpack.c.b16 %v3860, %v3860
      %v3877 = vpack.c.b16 %v3861, %v3861
      %v3878 = vpack.c.b16 %v3862, %v3862
      %v3879 = vpack.c.b16 %v3863, %v3863
      %v3880 = vpack.c.b16 %v3864, %v3864
      %v3882 = vshrl.u32 %v3817, 16
      %v3884 = vshll.u32 %v3817, 16
      %v3886 = vrot.slane %v3884, 1
      %v3887 = vor.u32 %v3882, %v3886
      %v3889 = vshll.u32 %v3865, 16
      %v3891 = vrot.slane %v3889, 1
      %v3892 = vsel %vm988, %v3887, %v3891
      %v3894 = vshrl.u32 %v3818, 16
      %v3896 = vshll.u32 %v3818, 16
      %v3898 = vrot.slane %v3896, 1
      %v3899 = vor.u32 %v3894, %v3898
      %v3901 = vshll.u32 %v3866, 16
      %v3903 = vrot.slane %v3901, 1
      %v3904 = vsel %vm988, %v3899, %v3903
      %v3906 = vshrl.u32 %v3819, 16
      %v3908 = vshll.u32 %v3819, 16
      %v3910 = vrot.slane %v3908, 1
      %v3911 = vor.u32 %v3906, %v3910
      %v3913 = vshll.u32 %v3867, 16
      %v3915 = vrot.slane %v3913, 1
      %v3916 = vsel %vm988, %v3911, %v3915
      %v3918 = vshrl.u32 %v3820, 16
      %v3920 = vshll.u32 %v3820, 16
      %v3922 = vrot.slane %v3920, 1
      %v3923 = vor.u32 %v3918, %v3922
      %v3925 = vshll.u32 %v3868, 16
      %v3927 = vrot.slane %v3925, 1
      %v3928 = vsel %vm988, %v3923, %v3927
      %v3930 = vshrl.u32 %v3821, 16
      %v3932 = vshll.u32 %v3821, 16
      %v3934 = vrot.slane %v3932, 1
      %v3935 = vor.u32 %v3930, %v3934
      %v3937 = vshll.u32 %v3869, 16
      %v3939 = vrot.slane %v3937, 1
      %v3940 = vsel %vm988, %v3935, %v3939
      %v3942 = vshrl.u32 %v3822, 16
      %v3944 = vshll.u32 %v3822, 16
      %v3946 = vrot.slane %v3944, 1
      %v3947 = vor.u32 %v3942, %v3946
      %v3949 = vshll.u32 %v3870, 16
      %v3951 = vrot.slane %v3949, 1
      %v3952 = vsel %vm988, %v3947, %v3951
      %v3954 = vshrl.u32 %v3823, 16
      %v3956 = vshll.u32 %v3823, 16
      %v3958 = vrot.slane %v3956, 1
      %v3959 = vor.u32 %v3954, %v3958
      %v3961 = vshll.u32 %v3871, 16
      %v3963 = vrot.slane %v3961, 1
      %v3964 = vsel %vm988, %v3959, %v3963
      %v3966 = vshrl.u32 %v3824, 16
      %v3968 = vshll.u32 %v3824, 16
      %v3970 = vrot.slane %v3968, 1
      %v3971 = vor.u32 %v3966, %v3970
      %v3973 = vshll.u32 %v3872, 16
      %v3975 = vrot.slane %v3973, 1
      %v3976 = vsel %vm988, %v3971, %v3975
      %v3978 = vshrl.u32 %v3825, 16
      %v3980 = vshll.u32 %v3825, 16
      %v3982 = vrot.slane %v3980, 1
      %v3983 = vor.u32 %v3978, %v3982
      %v3985 = vshll.u32 %v3873, 16
      %v3987 = vrot.slane %v3985, 1
      %v3988 = vsel %vm988, %v3983, %v3987
      %v3990 = vshrl.u32 %v3826, 16
      %v3992 = vshll.u32 %v3826, 16
      %v3994 = vrot.slane %v3992, 1
      %v3995 = vor.u32 %v3990, %v3994
      %v3997 = vshll.u32 %v3874, 16
      %v3999 = vrot.slane %v3997, 1
      %v4000 = vsel %vm988, %v3995, %v3999
      %v4002 = vshrl.u32 %v3827, 16
      %v4004 = vshll.u32 %v3827, 16
      %v4006 = vrot.slane %v4004, 1
      %v4007 = vor.u32 %v4002, %v4006
      %v4009 = vshll.u32 %v3875, 16
      %v4011 = vrot.slane %v4009, 1
      %v4012 = vsel %vm988, %v4007, %v4011
      %v4014 = vshrl.u32 %v3828, 16
      %v4016 = vshll.u32 %v3828, 16
      %v4018 = vrot.slane %v4016, 1
      %v4019 = vor.u32 %v4014, %v4018
      %v4021 = vshll.u32 %v3876, 16
      %v4023 = vrot.slane %v4021, 1
      %v4024 = vsel %vm988, %v4019, %v4023
      %v4026 = vshrl.u32 %v3829, 16
      %v4028 = vshll.u32 %v3829, 16
      %v4030 = vrot.slane %v4028, 1
      %v4031 = vor.u32 %v4026, %v4030
      %v4033 = vshll.u32 %v3877, 16
      %v4035 = vrot.slane %v4033, 1
      %v4036 = vsel %vm988, %v4031, %v4035
      %v4038 = vshrl.u32 %v3830, 16
      %v4040 = vshll.u32 %v3830, 16
      %v4042 = vrot.slane %v4040, 1
      %v4043 = vor.u32 %v4038, %v4042
      %v4045 = vshll.u32 %v3878, 16
      %v4047 = vrot.slane %v4045, 1
      %v4048 = vsel %vm988, %v4043, %v4047
      %v4050 = vshrl.u32 %v3831, 16
      %v4052 = vshll.u32 %v3831, 16
      %v4054 = vrot.slane %v4052, 1
      %v4055 = vor.u32 %v4050, %v4054
      %v4057 = vshll.u32 %v3879, 16
      %v4059 = vrot.slane %v4057, 1
      %v4060 = vsel %vm988, %v4055, %v4059
      %v4062 = vshrl.u32 %v3832, 16
      %v4064 = vshll.u32 %v3832, 16
      %v4066 = vrot.slane %v4064, 1
      %v4067 = vor.u32 %v4062, %v4066
      %v4069 = vshll.u32 %v3880, 16
      %v4071 = vrot.slane %v4069, 1
      %v4072 = vsel %vm988, %v4067, %v4071
      %4073 = vrot.lane.b32.xlu0 %v3892, 4
      %v4074 = vpop.permute.xlu0 %4073
      %4075 = vrot.lane.b32.xlu0 %v3904, 4
      %v4076 = vpop.permute.xlu0 %4075
      %4077 = vrot.lane.b32.xlu0 %v3916, 4
      %v4078 = vpop.permute.xlu0 %4077
      %4079 = vrot.lane.b32.xlu0 %v3928, 4
      %v4080 = vpop.permute.xlu0 %4079
      %4081 = vrot.lane.b32.xlu0 %v3940, 4
      %v4082 = vpop.permute.xlu0 %4081
      %4083 = vrot.lane.b32.xlu0 %v3952, 4
      %v4084 = vpop.permute.xlu0 %4083
      %4085 = vrot.lane.b32.xlu0 %v3964, 4
      %v4086 = vpop.permute.xlu0 %4085
      %4087 = vrot.lane.b32.xlu0 %v3976, 4
      %v4088 = vpop.permute.xlu0 %4087
      %4089 = vrot.lane.b32.xlu0 %v3988, 4
      %v4090 = vpop.permute.xlu0 %4089
      %4091 = vrot.lane.b32.xlu0 %v4000, 4
      %v4092 = vpop.permute.xlu0 %4091
      %4093 = vrot.lane.b32.xlu0 %v4012, 4
      %v4094 = vpop.permute.xlu0 %4093
      %4095 = vrot.lane.b32.xlu0 %v4024, 4
      %v4096 = vpop.permute.xlu0 %4095
      %4097 = vrot.lane.b32.xlu0 %v4036, 4
      %v4098 = vpop.permute.xlu0 %4097
      %4099 = vrot.lane.b32.xlu0 %v4048, 4
      %v4100 = vpop.permute.xlu0 %4099
      %4101 = vrot.lane.b32.xlu0 %v4060, 4
      %v4102 = vpop.permute.xlu0 %4101
      %4103 = vrot.lane.b32.xlu0 %v4072, 4
      %v4104 = vpop.permute.xlu0 %4103
      %v4137 = vunpack.c.l.b16 %v3705
      %v4138 = vunpack.c.l.b16 %v3706
      %v4139 = vunpack.c.l.b16 %v3707
      %v4140 = vunpack.c.l.b16 %v3708
      %v4141 = vunpack.c.l.b16 %v3709
      %v4142 = vunpack.c.l.b16 %v3710
      %v4143 = vunpack.c.l.b16 %v3711
      %v4144 = vunpack.c.l.b16 %v3712
      %v4145 = vunpack.c.l.b16 %v3713
      %v4146 = vunpack.c.l.b16 %v3714
      %v4147 = vunpack.c.l.b16 %v3715
      %v4148 = vunpack.c.l.b16 %v3716
      %v4149 = vunpack.c.l.b16 %v3717
      %v4150 = vunpack.c.l.b16 %v3718
      %v4151 = vunpack.c.l.b16 %v3719
      %v4152 = vunpack.c.l.b16 %v3720
      %v4153 = vunpack.c.l.b16 %v3721
      %v4154 = vunpack.c.l.b16 %v3722
      %v4155 = vunpack.c.l.b16 %v3723
      %v4156 = vunpack.c.l.b16 %v3724
      %v4157 = vunpack.c.l.b16 %v3725
      %v4158 = vunpack.c.l.b16 %v3726
      %v4159 = vunpack.c.l.b16 %v3727
      %v4160 = vunpack.c.l.b16 %v3728
      %v4161 = vunpack.c.l.b16 %v3729
      %v4162 = vunpack.c.l.b16 %v3730
      %v4163 = vunpack.c.l.b16 %v3731
      %v4164 = vunpack.c.l.b16 %v3732
      %v4165 = vunpack.c.l.b16 %v3733
      %v4166 = vunpack.c.l.b16 %v3734
      %v4167 = vunpack.c.l.b16 %v3735
      %v4168 = vunpack.c.l.b16 %v3736
      %v4169 = vpack.c.b16 %v4138, %v4137
      %v4170 = vpack.c.b16 %v4140, %v4139
      %v4171 = vpack.c.b16 %v4142, %v4141
      %v4172 = vpack.c.b16 %v4144, %v4143
      %v4173 = vpack.c.b16 %v4146, %v4145
      %v4174 = vpack.c.b16 %v4148, %v4147
      %v4175 = vpack.c.b16 %v4150, %v4149
      %v4176 = vpack.c.b16 %v4152, %v4151
      %v4177 = vpack.c.b16 %v4154, %v4153
      %v4178 = vpack.c.b16 %v4156, %v4155
      %v4179 = vpack.c.b16 %v4158, %v4157
      %v4180 = vpack.c.b16 %v4160, %v4159
      %v4181 = vpack.c.b16 %v4162, %v4161
      %v4182 = vpack.c.b16 %v4164, %v4163
      %v4183 = vpack.c.b16 %v4166, %v4165
      %v4184 = vpack.c.b16 %v4168, %v4167
      %4185 = vrot.lane.b32.xlu0 %v4169, 8
      %v4186 = vpop.permute.xlu0 %4185
      %4187 = vrot.lane.b32.xlu0 %v4170, 8
      %v4188 = vpop.permute.xlu0 %4187
      %4189 = vrot.lane.b32.xlu0 %v4171, 8
      %v4190 = vpop.permute.xlu0 %4189
      %4191 = vrot.lane.b32.xlu0 %v4172, 8
      %v4192 = vpop.permute.xlu0 %4191
      %4193 = vrot.lane.b32.xlu0 %v4173, 8
      %v4194 = vpop.permute.xlu0 %4193
      %4195 = vrot.lane.b32.xlu0 %v4174, 8
      %v4196 = vpop.permute.xlu0 %4195
      %4197 = vrot.lane.b32.xlu0 %v4175, 8
      %v4198 = vpop.permute.xlu0 %4197
      %4199 = vrot.lane.b32.xlu0 %v4176, 8
      %v4200 = vpop.permute.xlu0 %4199
      %4201 = vrot.lane.b32.xlu0 %v4177, 8
      %v4202 = vpop.permute.xlu0 %4201
      %4203 = vrot.lane.b32.xlu0 %v4178, 8
      %v4204 = vpop.permute.xlu0 %4203
      %4205 = vrot.lane.b32.xlu0 %v4179, 8
      %v4206 = vpop.permute.xlu0 %4205
      %4207 = vrot.lane.b32.xlu0 %v4180, 8
      %v4208 = vpop.permute.xlu0 %4207
      %4209 = vrot.lane.b32.xlu0 %v4181, 8
      %v4210 = vpop.permute.xlu0 %4209
      %4211 = vrot.lane.b32.xlu0 %v4182, 8
      %v4212 = vpop.permute.xlu0 %4211
      %4213 = vrot.lane.b32.xlu0 %v4183, 8
      %v4214 = vpop.permute.xlu0 %4213
      %4215 = vrot.lane.b32.xlu0 %v4184, 8
      %v4216 = vpop.permute.xlu0 %4215
      %v4233 = vunpack.c.l.b16 %v3737
      %v4234 = vunpack.c.l.b16 %v3738
      %v4235 = vunpack.c.l.b16 %v3739
      %v4236 = vunpack.c.l.b16 %v3740
      %v4237 = vunpack.c.l.b16 %v3741
      %v4238 = vunpack.c.l.b16 %v3742
      %v4239 = vunpack.c.l.b16 %v3743
      %v4240 = vunpack.c.l.b16 %v3744
      %v4241 = vunpack.c.l.b16 %v3745
      %v4242 = vunpack.c.l.b16 %v3746
      %v4243 = vunpack.c.l.b16 %v3747
      %v4244 = vunpack.c.l.b16 %v3748
      %v4245 = vunpack.c.l.b16 %v3749
      %v4246 = vunpack.c.l.b16 %v3750
      %v4247 = vunpack.c.l.b16 %v3751
      %v4248 = vunpack.c.l.b16 %v3752
      %v4249 = vpack.c.b16 %v4233, %v4233
      %v4250 = vpack.c.b16 %v4234, %v4234
      %v4251 = vpack.c.b16 %v4235, %v4235
      %v4252 = vpack.c.b16 %v4236, %v4236
      %v4253 = vpack.c.b16 %v4237, %v4237
      %v4254 = vpack.c.b16 %v4238, %v4238
      %v4255 = vpack.c.b16 %v4239, %v4239
      %v4256 = vpack.c.b16 %v4240, %v4240
      %v4257 = vpack.c.b16 %v4241, %v4241
      %v4258 = vpack.c.b16 %v4242, %v4242
      %v4259 = vpack.c.b16 %v4243, %v4243
      %v4260 = vpack.c.b16 %v4244, %v4244
      %v4261 = vpack.c.b16 %v4245, %v4245
      %v4262 = vpack.c.b16 %v4246, %v4246
      %v4263 = vpack.c.b16 %v4247, %v4247
      %v4264 = vpack.c.b16 %v4248, %v4248
      %v4266 = vshrl.u32 %v4169, 16
      %v4268 = vshll.u32 %v4169, 16
      %v4270 = vrot.slane %v4268, 1
      %v4271 = vor.u32 %v4266, %v4270
      %v4273 = vshll.u32 %v4249, 16
      %v4275 = vrot.slane %v4273, 1
      %v4276 = vsel %vm988, %v4271, %v4275
      %v4278 = vshrl.u32 %v4170, 16
      %v4280 = vshll.u32 %v4170, 16
      %v4282 = vrot.slane %v4280, 1
      %v4283 = vor.u32 %v4278, %v4282
      %v4285 = vshll.u32 %v4250, 16
      %v4287 = vrot.slane %v4285, 1
      %v4288 = vsel %vm988, %v4283, %v4287
      %v4290 = vshrl.u32 %v4171, 16
      %v4292 = vshll.u32 %v4171, 16
      %v4294 = vrot.slane %v4292, 1
      %v4295 = vor.u32 %v4290, %v4294
      %v4297 = vshll.u32 %v4251, 16
      %v4299 = vrot.slane %v4297, 1
      %v4300 = vsel %vm988, %v4295, %v4299
      %v4302 = vshrl.u32 %v4172, 16
      %v4304 = vshll.u32 %v4172, 16
      %v4306 = vrot.slane %v4304, 1
      %v4307 = vor.u32 %v4302, %v4306
      %v4309 = vshll.u32 %v4252, 16
      %v4311 = vrot.slane %v4309, 1
      %v4312 = vsel %vm988, %v4307, %v4311
      %v4314 = vshrl.u32 %v4173, 16
      %v4316 = vshll.u32 %v4173, 16
      %v4318 = vrot.slane %v4316, 1
      %v4319 = vor.u32 %v4314, %v4318
      %v4321 = vshll.u32 %v4253, 16
      %v4323 = vrot.slane %v4321, 1
      %v4324 = vsel %vm988, %v4319, %v4323
      %v4326 = vshrl.u32 %v4174, 16
      %v4328 = vshll.u32 %v4174, 16
      %v4330 = vrot.slane %v4328, 1
      %v4331 = vor.u32 %v4326, %v4330
      %v4333 = vshll.u32 %v4254, 16
      %v4335 = vrot.slane %v4333, 1
      %v4336 = vsel %vm988, %v4331, %v4335
      %v4338 = vshrl.u32 %v4175, 16
      %v4340 = vshll.u32 %v4175, 16
      %v4342 = vrot.slane %v4340, 1
      %v4343 = vor.u32 %v4338, %v4342
      %v4345 = vshll.u32 %v4255, 16
      %v4347 = vrot.slane %v4345, 1
      %v4348 = vsel %vm988, %v4343, %v4347
      %v4350 = vshrl.u32 %v4176, 16
      %v4352 = vshll.u32 %v4176, 16
      %v4354 = vrot.slane %v4352, 1
      %v4355 = vor.u32 %v4350, %v4354
      %v4357 = vshll.u32 %v4256, 16
      %v4359 = vrot.slane %v4357, 1
      %v4360 = vsel %vm988, %v4355, %v4359
      %v4362 = vshrl.u32 %v4177, 16
      %v4364 = vshll.u32 %v4177, 16
      %v4366 = vrot.slane %v4364, 1
      %v4367 = vor.u32 %v4362, %v4366
      %v4369 = vshll.u32 %v4257, 16
      %v4371 = vrot.slane %v4369, 1
      %v4372 = vsel %vm988, %v4367, %v4371
      %v4374 = vshrl.u32 %v4178, 16
      %v4376 = vshll.u32 %v4178, 16
      %v4378 = vrot.slane %v4376, 1
      %v4379 = vor.u32 %v4374, %v4378
      %v4381 = vshll.u32 %v4258, 16
      %v4383 = vrot.slane %v4381, 1
      %v4384 = vsel %vm988, %v4379, %v4383
      %v4386 = vshrl.u32 %v4179, 16
      %v4388 = vshll.u32 %v4179, 16
      %v4390 = vrot.slane %v4388, 1
      %v4391 = vor.u32 %v4386, %v4390
      %v4393 = vshll.u32 %v4259, 16
      %v4395 = vrot.slane %v4393, 1
      %v4396 = vsel %vm988, %v4391, %v4395
      %v4398 = vshrl.u32 %v4180, 16
      %v4400 = vshll.u32 %v4180, 16
      %v4402 = vrot.slane %v4400, 1
      %v4403 = vor.u32 %v4398, %v4402
      %v4405 = vshll.u32 %v4260, 16
      %v4407 = vrot.slane %v4405, 1
      %v4408 = vsel %vm988, %v4403, %v4407
      %v4410 = vshrl.u32 %v4181, 16
      %v4412 = vshll.u32 %v4181, 16
      %v4414 = vrot.slane %v4412, 1
      %v4415 = vor.u32 %v4410, %v4414
      %v4417 = vshll.u32 %v4261, 16
      %v4419 = vrot.slane %v4417, 1
      %v4420 = vsel %vm988, %v4415, %v4419
      %v4422 = vshrl.u32 %v4182, 16
      %v4424 = vshll.u32 %v4182, 16
      %v4426 = vrot.slane %v4424, 1
      %v4427 = vor.u32 %v4422, %v4426
      %v4429 = vshll.u32 %v4262, 16
      %v4431 = vrot.slane %v4429, 1
      %v4432 = vsel %vm988, %v4427, %v4431
      %v4434 = vshrl.u32 %v4183, 16
      %v4436 = vshll.u32 %v4183, 16
      %v4438 = vrot.slane %v4436, 1
      %v4439 = vor.u32 %v4434, %v4438
      %v4441 = vshll.u32 %v4263, 16
      %v4443 = vrot.slane %v4441, 1
      %v4444 = vsel %vm988, %v4439, %v4443
      %v4446 = vshrl.u32 %v4184, 16
      %v4448 = vshll.u32 %v4184, 16
      %v4450 = vrot.slane %v4448, 1
      %v4451 = vor.u32 %v4446, %v4450
      %v4453 = vshll.u32 %v4264, 16
      %v4455 = vrot.slane %v4453, 1
      %v4456 = vsel %vm988, %v4451, %v4455
      %4457 = vrot.lane.b32.xlu0 %v4276, 12
      %v4458 = vpop.permute.xlu0 %4457
      %4459 = vrot.lane.b32.xlu0 %v4288, 12
      %v4460 = vpop.permute.xlu0 %4459
      %4461 = vrot.lane.b32.xlu0 %v4300, 12
      %v4462 = vpop.permute.xlu0 %4461
      %4463 = vrot.lane.b32.xlu0 %v4312, 12
      %v4464 = vpop.permute.xlu0 %4463
      %4465 = vrot.lane.b32.xlu0 %v4324, 12
      %v4466 = vpop.permute.xlu0 %4465
      %4467 = vrot.lane.b32.xlu0 %v4336, 12
      %v4468 = vpop.permute.xlu0 %4467
      %4469 = vrot.lane.b32.xlu0 %v4348, 12
      %v4470 = vpop.permute.xlu0 %4469
      %4471 = vrot.lane.b32.xlu0 %v4360, 12
      %v4472 = vpop.permute.xlu0 %4471
      %4473 = vrot.lane.b32.xlu0 %v4372, 12
      %v4474 = vpop.permute.xlu0 %4473
      %4475 = vrot.lane.b32.xlu0 %v4384, 12
      %v4476 = vpop.permute.xlu0 %4475
      %4477 = vrot.lane.b32.xlu0 %v4396, 12
      %v4478 = vpop.permute.xlu0 %4477
      %4479 = vrot.lane.b32.xlu0 %v4408, 12
      %v4480 = vpop.permute.xlu0 %4479
      %4481 = vrot.lane.b32.xlu0 %v4420, 12
      %v4482 = vpop.permute.xlu0 %4481
      %4483 = vrot.lane.b32.xlu0 %v4432, 12
      %v4484 = vpop.permute.xlu0 %4483
      %4485 = vrot.lane.b32.xlu0 %v4444, 12
      %v4486 = vpop.permute.xlu0 %4485
      %4487 = vrot.lane.b32.xlu0 %v4456, 12
      %v4488 = vpop.permute.xlu0 %4487
      %v4490 = vsel %vm1597, %v3817, %v4074
      %v4492 = vsel %vm1597, %v3818, %v4076
      %v4494 = vsel %vm1597, %v3819, %v4078
      %v4496 = vsel %vm1597, %v3820, %v4080
      %v4498 = vsel %vm1597, %v3821, %v4082
      %v4500 = vsel %vm1597, %v3822, %v4084
      %v4502 = vsel %vm1597, %v3823, %v4086
      %v4504 = vsel %vm1597, %v3824, %v4088
      %v4506 = vsel %vm1597, %v3825, %v4090
      %v4508 = vsel %vm1597, %v3826, %v4092
      %v4510 = vsel %vm1597, %v3827, %v4094
      %v4512 = vsel %vm1597, %v3828, %v4096
      %v4514 = vsel %vm1597, %v3829, %v4098
      %v4516 = vsel %vm1597, %v3830, %v4100
      %v4518 = vsel %vm1597, %v3831, %v4102
      %v4520 = vsel %vm1597, %v3832, %v4104
      %v4522 = vsel %vm1630, %v4490, %v4186
      %v4524 = vsel %vm1630, %v4492, %v4188
      %v4526 = vsel %vm1630, %v4494, %v4190
      %v4528 = vsel %vm1630, %v4496, %v4192
      %v4530 = vsel %vm1630, %v4498, %v4194
      %v4532 = vsel %vm1630, %v4500, %v4196
      %v4534 = vsel %vm1630, %v4502, %v4198
      %v4536 = vsel %vm1630, %v4504, %v4200
      %v4538 = vsel %vm1630, %v4506, %v4202
      %v4540 = vsel %vm1630, %v4508, %v4204
      %v4542 = vsel %vm1630, %v4510, %v4206
      %v4544 = vsel %vm1630, %v4512, %v4208
      %v4546 = vsel %vm1630, %v4514, %v4210
      %v4548 = vsel %vm1630, %v4516, %v4212
      %v4550 = vsel %vm1630, %v4518, %v4214
      %v4552 = vsel %vm1630, %v4520, %v4216
      %v4554 = vsel %vm1663, %v4522, %v4458
      %v4556 = vsel %vm1663, %v4524, %v4460
      %v4558 = vsel %vm1663, %v4526, %v4462
      %v4560 = vsel %vm1663, %v4528, %v4464
      %v4562 = vsel %vm1663, %v4530, %v4466
      %v4564 = vsel %vm1663, %v4532, %v4468
      %v4566 = vsel %vm1663, %v4534, %v4470
      %v4568 = vsel %vm1663, %v4536, %v4472
      %v4570 = vsel %vm1663, %v4538, %v4474
      %v4572 = vsel %vm1663, %v4540, %v4476
      %v4574 = vsel %vm1663, %v4542, %v4478
      %v4576 = vsel %vm1663, %v4544, %v4480
      %v4578 = vsel %vm1663, %v4546, %v4482
      %v4580 = vsel %vm1663, %v4548, %v4484
      %v4582 = vsel %vm1663, %v4550, %v4486
      %v4584 = vsel %vm1663, %v4552, %v4488
      %s4585 = scalar_lea.vmem %s1, 16
      %v4586 = vld [vmem:[%s4585] sm:$0xf]
      %v4587 = vld [vmem:[%s4585 + $0x4] sm:$0xf]
      %v4590 = vunpack.c.l.b16 %v4586
      %v4591 = vunpack.c.l.b16 %v4587
      %v4592 = vpack.c.b16 %v4591, %v4590
      %v4594 = vsel %vm1707, %v4554, 0
      %v4596 = vsel %vm1707, %v4556, 0
      %v4598 = vsel %vm1707, %v4558, 0
      %v4600 = vsel %vm1707, %v4560, 0
      %v4602 = vsel %vm1707, %v4562, 0
      %v4604 = vsel %vm1707, %v4564, 0
      %v4606 = vsel %vm1707, %v4566, 0
      %v4608 = vsel %vm1707, %v4568, 0
      %v4610 = vsel %vm1707, %v4570, 0
      %v4612 = vsel %vm1707, %v4572, 0
      %v4614 = vsel %vm1707, %v4574, 0
      %v4616 = vsel %vm1707, %v4576, 0
      %v4618 = vsel %vm1707, %v4578, 0
      %v4620 = vsel %vm1707, %v4580, 0
      %v4622 = vsel %vm1707, %v4582, 0
      %v4624 = vsel %vm1707, %v4584, 0
      %4626 = vmatpush.bf16.msra.mxu0 0
      %4627 = vmatpush.bf16.msra.mxu0 0
      %4628 = vmatpush.bf16.msra.mxu0 0
      %4629 = vmatpush.bf16.msra.mxu0 0
      %4630 = vmatpush.bf16.msra.mxu0 0
      %4631 = vmatpush.bf16.msra.mxu0 0
      %4632 = vmatpush.bf16.msra.mxu0 0
      %4633 = vmatpush.bf16.msra.mxu0 %v4592
      %4634 = vmatmul.bf16.gmra.mxu0 %v4594
      %v4635 = vpop.f32.mrf.mxu0
      %v4636 = vadd.f32 %v1699, %v4635
      %v4637 = vpop.f32.mrf.mxu0
      %v4638 = vadd.f32 %v1699, %v4637
      %4639 = vmatmul.bf16.gmra.mxu0 %v4596
      %v4640 = vpop.f32.mrf.mxu0
      %v4641 = vadd.f32 %v1699, %v4640
      %v4642 = vpop.f32.mrf.mxu0
      %v4643 = vadd.f32 %v1699, %v4642
      %4644 = vmatmul.bf16.gmra.mxu0 %v4598
      %v4645 = vpop.f32.mrf.mxu0
      %v4646 = vadd.f32 %v1699, %v4645
      %v4647 = vpop.f32.mrf.mxu0
      %v4648 = vadd.f32 %v1699, %v4647
      %4649 = vmatmul.bf16.gmra.mxu0 %v4600
      %v4650 = vpop.f32.mrf.mxu0
      %v4651 = vadd.f32 %v1699, %v4650
      %v4652 = vpop.f32.mrf.mxu0
      %v4653 = vadd.f32 %v1699, %v4652
      %4654 = vmatmul.bf16.gmra.mxu0 %v4602
      %v4655 = vpop.f32.mrf.mxu0
      %v4656 = vadd.f32 %v1699, %v4655
      %v4657 = vpop.f32.mrf.mxu0
      %v4658 = vadd.f32 %v1699, %v4657
      %4659 = vmatmul.bf16.gmra.mxu0 %v4604
      %v4660 = vpop.f32.mrf.mxu0
      %v4661 = vadd.f32 %v1699, %v4660
      %v4662 = vpop.f32.mrf.mxu0
      %v4663 = vadd.f32 %v1699, %v4662
      %4664 = vmatmul.bf16.gmra.mxu0 %v4606
      %v4665 = vpop.f32.mrf.mxu0
      %v4666 = vadd.f32 %v1699, %v4665
      %v4667 = vpop.f32.mrf.mxu0
      %v4668 = vadd.f32 %v1699, %v4667
      %4669 = vmatmul.bf16.gmra.mxu0 %v4608
      %v4670 = vpop.f32.mrf.mxu0
      %v4671 = vadd.f32 %v1699, %v4670
      %v4672 = vpop.f32.mrf.mxu0
      %v4673 = vadd.f32 %v1699, %v4672
      %4674 = vmatmul.bf16.gmra.mxu0 %v4610
      %v4675 = vpop.f32.mrf.mxu0
      %v4676 = vadd.f32 %v1699, %v4675
      %v4677 = vpop.f32.mrf.mxu0
      %v4678 = vadd.f32 %v1699, %v4677
      %4679 = vmatmul.bf16.gmra.mxu0 %v4612
      %v4680 = vpop.f32.mrf.mxu0
      %v4681 = vadd.f32 %v1699, %v4680
      %v4682 = vpop.f32.mrf.mxu0
      %v4683 = vadd.f32 %v1699, %v4682
      %4684 = vmatmul.bf16.gmra.mxu0 %v4614
      %v4685 = vpop.f32.mrf.mxu0
      %v4686 = vadd.f32 %v1699, %v4685
      %v4687 = vpop.f32.mrf.mxu0
      %v4688 = vadd.f32 %v1699, %v4687
      %4689 = vmatmul.bf16.gmra.mxu0 %v4616
      %v4690 = vpop.f32.mrf.mxu0
      %v4691 = vadd.f32 %v1699, %v4690
      %v4692 = vpop.f32.mrf.mxu0
      %v4693 = vadd.f32 %v1699, %v4692
      %4694 = vmatmul.bf16.gmra.mxu0 %v4618
      %v4695 = vpop.f32.mrf.mxu0
      %v4696 = vadd.f32 %v1699, %v4695
      %v4697 = vpop.f32.mrf.mxu0
      %v4698 = vadd.f32 %v1699, %v4697
      %4699 = vmatmul.bf16.gmra.mxu0 %v4620
      %v4700 = vpop.f32.mrf.mxu0
      %v4701 = vadd.f32 %v1699, %v4700
      %v4702 = vpop.f32.mrf.mxu0
      %v4703 = vadd.f32 %v1699, %v4702
      %4704 = vmatmul.bf16.gmra.mxu0 %v4622
      %v4705 = vpop.f32.mrf.mxu0
      %v4706 = vadd.f32 %v1699, %v4705
      %v4707 = vpop.f32.mrf.mxu0
      %v4708 = vadd.f32 %v1699, %v4707
      %4709 = vmatmul.bf16.gmra.mxu0 %v4624
      %v4710 = vpop.f32.mrf.mxu0
      %v4711 = vadd.f32 %v1699, %v4710
      %v4712 = vpop.f32.mrf.mxu0
      %v4713 = vadd.f32 %v1699, %v4712
      %4714 = vdwg.mxu0
      %s4715 = scalar_lea.vmem %s170, 16
      %4716 = vst.msk [vmem:[%s4715] sm:$0xff] %vm1597, %v4636
      %4717 = vst.msk [vmem:[%s4715 + $0x8] sm:$0xff] %vm1597, %v4638
      %4718 = vst.msk [vmem:[%s4715 + $0x20] sm:$0xff] %vm1597, %v4641
      %4719 = vst.msk [vmem:[%s4715 + $0x28] sm:$0xff] %vm1597, %v4643
      %4720 = vst.msk [vmem:[%s4715 + $0x40] sm:$0xff] %vm1597, %v4646
      %4721 = vst.msk [vmem:[%s4715 + $0x48] sm:$0xff] %vm1597, %v4648
      %4722 = vst.msk [vmem:[%s4715 + $0x60] sm:$0xff] %vm1597, %v4651
      %4723 = vst.msk [vmem:[%s4715 + $0x68] sm:$0xff] %vm1597, %v4653
      %4724 = vst.msk [vmem:[%s4715 + $0x80] sm:$0xff] %vm1597, %v4656
      %4725 = vst.msk [vmem:[%s4715 + $0x88] sm:$0xff] %vm1597, %v4658
      %4726 = vst.msk [vmem:[%s4715 + $0xa0] sm:$0xff] %vm1597, %v4661
      %4727 = vst.msk [vmem:[%s4715 + $0xa8] sm:$0xff] %vm1597, %v4663
      %4728 = vst.msk [vmem:[%s4715 + $0xc0] sm:$0xff] %vm1597, %v4666
      %4729 = vst.msk [vmem:[%s4715 + $0xc8] sm:$0xff] %vm1597, %v4668
      %4730 = vst.msk [vmem:[%s4715 + $0xe0] sm:$0xff] %vm1597, %v4671
      %4731 = vst.msk [vmem:[%s4715 + $0xe8] sm:$0xff] %vm1597, %v4673
      %4732 = vst.msk [vmem:[%s4715 + $0x100] sm:$0xff] %vm1597, %v4676
      %4733 = vst.msk [vmem:[%s4715 + $0x108] sm:$0xff] %vm1597, %v4678
      %4734 = vst.msk [vmem:[%s4715 + $0x120] sm:$0xff] %vm1597, %v4681
      %4735 = vst.msk [vmem:[%s4715 + $0x128] sm:$0xff] %vm1597, %v4683
      %4736 = vst.msk [vmem:[%s4715 + $0x140] sm:$0xff] %vm1597, %v4686
      %4737 = vst.msk [vmem:[%s4715 + $0x148] sm:$0xff] %vm1597, %v4688
      %4738 = vst.msk [vmem:[%s4715 + $0x160] sm:$0xff] %vm1597, %v4691
      %4739 = vst.msk [vmem:[%s4715 + $0x168] sm:$0xff] %vm1597, %v4693
      %4740 = vst.msk [vmem:[%s4715 + $0x180] sm:$0xff] %vm1597, %v4696
      %4741 = vst.msk [vmem:[%s4715 + $0x188] sm:$0xff] %vm1597, %v4698
      %4742 = vst.msk [vmem:[%s4715 + $0x1a0] sm:$0xff] %vm1597, %v4701
      %4743 = vst.msk [vmem:[%s4715 + $0x1a8] sm:$0xff] %vm1597, %v4703
      %4744 = vst.msk [vmem:[%s4715 + $0x1c0] sm:$0xff] %vm1597, %v4706
      %4745 = vst.msk [vmem:[%s4715 + $0x1c8] sm:$0xff] %vm1597, %v4708
      %4746 = vst.msk [vmem:[%s4715 + $0x1e0] sm:$0xff] %vm1597, %v4711
      %4747 = vst.msk [vmem:[%s4715 + $0x1e8] sm:$0xff] %vm1597, %v4713
      %v4748 = vld [vmem:[%s648] sm:$0xf]
      %v4749 = vld [vmem:[%s648 + $0x4] sm:$0xf]
      %v4750 = vld [vmem:[%s648 + $0x8] sm:$0x1]
      %v4751 = vld [vmem:[%s648 + $0xc] sm:$0xf]
      %v4752 = vld [vmem:[%s648 + $0x10] sm:$0xf]
      %v4753 = vld [vmem:[%s648 + $0x14] sm:$0x1]
      %v4754 = vld [vmem:[%s648 + $0x18] sm:$0xf]
      %v4755 = vld [vmem:[%s648 + $0x1c] sm:$0xf]
      %v4756 = vld [vmem:[%s648 + $0x20] sm:$0x1]
      %v4757 = vld [vmem:[%s648 + $0x24] sm:$0xf]
      %v4758 = vld [vmem:[%s648 + $0x28] sm:$0xf]
      %v4759 = vld [vmem:[%s648 + $0x2c] sm:$0x1]
      %v4760 = vld [vmem:[%s648 + $0x30] sm:$0xf]
      %v4761 = vld [vmem:[%s648 + $0x34] sm:$0xf]
      %v4762 = vld [vmem:[%s648 + $0x38] sm:$0x1]
      %v4763 = vld [vmem:[%s648 + $0x3c] sm:$0xf]
      %v4764 = vld [vmem:[%s648 + $0x40] sm:$0xf]
      %v4765 = vld [vmem:[%s648 + $0x44] sm:$0x1]
      %v4766 = vld [vmem:[%s648 + $0x48] sm:$0xf]
      %v4767 = vld [vmem:[%s648 + $0x4c] sm:$0xf]
      %v4768 = vld [vmem:[%s648 + $0x50] sm:$0x1]
      %v4769 = vld [vmem:[%s648 + $0x54] sm:$0xf]
      %v4770 = vld [vmem:[%s648 + $0x58] sm:$0xf]
      %v4771 = vld [vmem:[%s648 + $0x5c] sm:$0x1]
      %v4772 = vld [vmem:[%s648 + $0x60] sm:$0xf]
      %v4773 = vld [vmem:[%s648 + $0x64] sm:$0xf]
      %v4774 = vld [vmem:[%s648 + $0x68] sm:$0x1]
      %v4775 = vld [vmem:[%s648 + $0x6c] sm:$0xf]
      %v4776 = vld [vmem:[%s648 + $0x70] sm:$0xf]
      %v4777 = vld [vmem:[%s648 + $0x74] sm:$0x1]
      %v4778 = vld [vmem:[%s648 + $0x78] sm:$0xf]
      %v4779 = vld [vmem:[%s648 + $0x7c] sm:$0xf]
      %v4780 = vld [vmem:[%s648 + $0x80] sm:$0x1]
      %v4781 = vld [vmem:[%s648 + $0x84] sm:$0xf]
      %v4782 = vld [vmem:[%s648 + $0x88] sm:$0xf]
      %v4783 = vld [vmem:[%s648 + $0x8c] sm:$0x1]
      %v4784 = vld [vmem:[%s648 + $0x90] sm:$0xf]
      %v4785 = vld [vmem:[%s648 + $0x94] sm:$0xf]
      %v4786 = vld [vmem:[%s648 + $0x98] sm:$0x1]
      %v4787 = vld [vmem:[%s648 + $0x9c] sm:$0xf]
      %v4788 = vld [vmem:[%s648 + $0xa0] sm:$0xf]
      %v4789 = vld [vmem:[%s648 + $0xa4] sm:$0x1]
      %v4790 = vld [vmem:[%s648 + $0xa8] sm:$0xf]
      %v4791 = vld [vmem:[%s648 + $0xac] sm:$0xf]
      %v4792 = vld [vmem:[%s648 + $0xb0] sm:$0x1]
      %v4793 = vld [vmem:[%s648 + $0xb4] sm:$0xf]
      %v4794 = vld [vmem:[%s648 + $0xb8] sm:$0xf]
      %v4795 = vld [vmem:[%s648 + $0xbc] sm:$0x1]
      %v4796 = vld [vmem:[%s648] sm:$0xe]
      %v4797 = vld [vmem:[%s648 + $0xc] sm:$0xe]
      %v4798 = vld [vmem:[%s648 + $0x18] sm:$0xe]
      %v4799 = vld [vmem:[%s648 + $0x24] sm:$0xe]
      %v4800 = vld [vmem:[%s648 + $0x30] sm:$0xe]
      %v4801 = vld [vmem:[%s648 + $0x3c] sm:$0xe]
      %v4802 = vld [vmem:[%s648 + $0x48] sm:$0xe]
      %v4803 = vld [vmem:[%s648 + $0x54] sm:$0xe]
      %v4804 = vld [vmem:[%s648 + $0x60] sm:$0xe]
      %v4805 = vld [vmem:[%s648 + $0x6c] sm:$0xe]
      %v4806 = vld [vmem:[%s648 + $0x78] sm:$0xe]
      %v4807 = vld [vmem:[%s648 + $0x84] sm:$0xe]
      %v4808 = vld [vmem:[%s648 + $0x90] sm:$0xe]
      %v4809 = vld [vmem:[%s648 + $0x9c] sm:$0xe]
      %v4810 = vld [vmem:[%s648 + $0xa8] sm:$0xe]
      %v4811 = vld [vmem:[%s648 + $0xb4] sm:$0xe]
      %v4812 = vld [vmem:[%s3704] sm:$0xf]
      %v4813 = vld [vmem:[%s3704 + $0x4] sm:$0xf]
      %v4814 = vld [vmem:[%s3704 + $0x8] sm:$0x1]
      %v4815 = vld [vmem:[%s3704 + $0xc] sm:$0xf]
      %v4816 = vld [vmem:[%s3704 + $0x10] sm:$0xf]
      %v4817 = vld [vmem:[%s3704 + $0x14] sm:$0x1]
      %v4818 = vld [vmem:[%s3704 + $0x18] sm:$0xf]
      %v4819 = vld [vmem:[%s3704 + $0x1c] sm:$0xf]
      %v4820 = vld [vmem:[%s3704 + $0x20] sm:$0x1]
      %v4821 = vld [vmem:[%s3704 + $0x24] sm:$0xf]
      %v4822 = vld [vmem:[%s3704 + $0x28] sm:$0xf]
      %v4823 = vld [vmem:[%s3704 + $0x2c] sm:$0x1]
      %v4824 = vld [vmem:[%s3704 + $0x30] sm:$0xf]
      %v4825 = vld [vmem:[%s3704 + $0x34] sm:$0xf]
      %v4826 = vld [vmem:[%s3704 + $0x38] sm:$0x1]
      %v4827 = vld [vmem:[%s3704 + $0x3c] sm:$0xf]
      %v4828 = vld [vmem:[%s3704 + $0x40] sm:$0xf]
      %v4829 = vld [vmem:[%s3704 + $0x44] sm:$0x1]
      %v4830 = vld [vmem:[%s3704 + $0x48] sm:$0xf]
      %v4831 = vld [vmem:[%s3704 + $0x4c] sm:$0xf]
      %v4832 = vld [vmem:[%s3704 + $0x50] sm:$0x1]
      %v4833 = vld [vmem:[%s3704 + $0x54] sm:$0xf]
      %v4834 = vld [vmem:[%s3704 + $0x58] sm:$0xf]
      %v4835 = vld [vmem:[%s3704 + $0x5c] sm:$0x1]
      %v4836 = vld [vmem:[%s3704 + $0x60] sm:$0xf]
      %v4837 = vld [vmem:[%s3704 + $0x64] sm:$0xf]
      %v4838 = vld [vmem:[%s3704 + $0x68] sm:$0x1]
      %v4839 = vld [vmem:[%s3704 + $0x6c] sm:$0xf]
      %v4840 = vld [vmem:[%s3704 + $0x70] sm:$0xf]
      %v4841 = vld [vmem:[%s3704 + $0x74] sm:$0x1]
      %v4842 = vld [vmem:[%s3704 + $0x78] sm:$0xf]
      %v4843 = vld [vmem:[%s3704 + $0x7c] sm:$0xf]
      %v4844 = vld [vmem:[%s3704 + $0x80] sm:$0x1]
      %v4845 = vld [vmem:[%s3704 + $0x84] sm:$0xf]
      %v4846 = vld [vmem:[%s3704 + $0x88] sm:$0xf]
      %v4847 = vld [vmem:[%s3704 + $0x8c] sm:$0x1]
      %v4848 = vld [vmem:[%s3704 + $0x90] sm:$0xf]
      %v4849 = vld [vmem:[%s3704 + $0x94] sm:$0xf]
      %v4850 = vld [vmem:[%s3704 + $0x98] sm:$0x1]
      %v4851 = vld [vmem:[%s3704 + $0x9c] sm:$0xf]
      %v4852 = vld [vmem:[%s3704 + $0xa0] sm:$0xf]
      %v4853 = vld [vmem:[%s3704 + $0xa4] sm:$0x1]
      %v4854 = vld [vmem:[%s3704 + $0xa8] sm:$0xf]
      %v4855 = vld [vmem:[%s3704 + $0xac] sm:$0xf]
      %v4856 = vld [vmem:[%s3704 + $0xb0] sm:$0x1]
      %v4857 = vld [vmem:[%s3704 + $0xb4] sm:$0xf]
      %v4858 = vld [vmem:[%s3704 + $0xb8] sm:$0xf]
      %v4859 = vld [vmem:[%s3704 + $0xbc] sm:$0x1]
      %v4860 = vld [vmem:[%s3704] sm:$0xe]
      %v4861 = vld [vmem:[%s3704 + $0xc] sm:$0xe]
      %v4862 = vld [vmem:[%s3704 + $0x18] sm:$0xe]
      %v4863 = vld [vmem:[%s3704 + $0x24] sm:$0xe]
      %v4864 = vld [vmem:[%s3704 + $0x30] sm:$0xe]
      %v4865 = vld [vmem:[%s3704 + $0x3c] sm:$0xe]
      %v4866 = vld [vmem:[%s3704 + $0x48] sm:$0xe]
      %v4867 = vld [vmem:[%s3704 + $0x54] sm:$0xe]
      %v4868 = vld [vmem:[%s3704 + $0x60] sm:$0xe]
      %v4869 = vld [vmem:[%s3704 + $0x6c] sm:$0xe]
      %v4870 = vld [vmem:[%s3704 + $0x78] sm:$0xe]
      %v4871 = vld [vmem:[%s3704 + $0x84] sm:$0xe]
      %v4872 = vld [vmem:[%s3704 + $0x90] sm:$0xe]
      %v4873 = vld [vmem:[%s3704 + $0x9c] sm:$0xe]
      %v4874 = vld [vmem:[%s3704 + $0xa8] sm:$0xe]
      %v4875 = vld [vmem:[%s3704 + $0xb4] sm:$0xe]
      %v4924 = vunpack.c.l.b16 %v4748
      %v4925 = vunpack.c.l.b16 %v4749
      %v4926 = vunpack.c.l.b16 %v4750
      %v4927 = vunpack.c.l.b16 %v4751
      %v4928 = vunpack.c.l.b16 %v4752
      %v4929 = vunpack.c.l.b16 %v4753
      %v4930 = vunpack.c.l.b16 %v4754
      %v4931 = vunpack.c.l.b16 %v4755
      %v4932 = vunpack.c.l.b16 %v4756
      %v4933 = vunpack.c.l.b16 %v4757
      %v4934 = vunpack.c.l.b16 %v4758
      %v4935 = vunpack.c.l.b16 %v4759
      %v4936 = vunpack.c.l.b16 %v4760
      %v4937 = vunpack.c.l.b16 %v4761
      %v4938 = vunpack.c.l.b16 %v4762
      %v4939 = vunpack.c.l.b16 %v4763
      %v4940 = vunpack.c.l.b16 %v4764
      %v4941 = vunpack.c.l.b16 %v4765
      %v4942 = vunpack.c.l.b16 %v4766
      %v4943 = vunpack.c.l.b16 %v4767
      %v4944 = vunpack.c.l.b16 %v4768
      %v4945 = vunpack.c.l.b16 %v4769
      %v4946 = vunpack.c.l.b16 %v4770
      %v4947 = vunpack.c.l.b16 %v4771
      %v4948 = vunpack.c.l.b16 %v4772
      %v4949 = vunpack.c.l.b16 %v4773
      %v4950 = vunpack.c.l.b16 %v4774
      %v4951 = vunpack.c.l.b16 %v4775
      %v4952 = vunpack.c.l.b16 %v4776
      %v4953 = vunpack.c.l.b16 %v4777
      %v4954 = vunpack.c.l.b16 %v4778
      %v4955 = vunpack.c.l.b16 %v4779
      %v4956 = vunpack.c.l.b16 %v4780
      %v4957 = vunpack.c.l.b16 %v4781
      %v4958 = vunpack.c.l.b16 %v4782
      %v4959 = vunpack.c.l.b16 %v4783
      %v4960 = vunpack.c.l.b16 %v4784
      %v4961 = vunpack.c.l.b16 %v4785
      %v4962 = vunpack.c.l.b16 %v4786
      %v4963 = vunpack.c.l.b16 %v4787
      %v4964 = vunpack.c.l.b16 %v4788
      %v4965 = vunpack.c.l.b16 %v4789
      %v4966 = vunpack.c.l.b16 %v4790
      %v4967 = vunpack.c.l.b16 %v4791
      %v4968 = vunpack.c.l.b16 %v4792
      %v4969 = vunpack.c.l.b16 %v4793
      %v4970 = vunpack.c.l.b16 %v4794
      %v4971 = vunpack.c.l.b16 %v4795
      %v4972 = vpack.c.b16 %v4925, %v4924
      %v4973 = vpack.c.b16 %v4926, %v4926
      %v4974 = vpack.c.b16 %v4928, %v4927
      %v4975 = vpack.c.b16 %v4929, %v4929
      %v4976 = vpack.c.b16 %v4931, %v4930
      %v4977 = vpack.c.b16 %v4932, %v4932
      %v4978 = vpack.c.b16 %v4934, %v4933
      %v4979 = vpack.c.b16 %v4935, %v4935
      %v4980 = vpack.c.b16 %v4937, %v4936
      %v4981 = vpack.c.b16 %v4938, %v4938
      %v4982 = vpack.c.b16 %v4940, %v4939
      %v4983 = vpack.c.b16 %v4941, %v4941
      %v4984 = vpack.c.b16 %v4943, %v4942
      %v4985 = vpack.c.b16 %v4944, %v4944
      %v4986 = vpack.c.b16 %v4946, %v4945
      %v4987 = vpack.c.b16 %v4947, %v4947
      %v4988 = vpack.c.b16 %v4949, %v4948
      %v4989 = vpack.c.b16 %v4950, %v4950
      %v4990 = vpack.c.b16 %v4952, %v4951
      %v4991 = vpack.c.b16 %v4953, %v4953
      %v4992 = vpack.c.b16 %v4955, %v4954
      %v4993 = vpack.c.b16 %v4956, %v4956
      %v4994 = vpack.c.b16 %v4958, %v4957
      %v4995 = vpack.c.b16 %v4959, %v4959
      %v4996 = vpack.c.b16 %v4961, %v4960
      %v4997 = vpack.c.b16 %v4962, %v4962
      %v4998 = vpack.c.b16 %v4964, %v4963
      %v4999 = vpack.c.b16 %v4965, %v4965
      %v5000 = vpack.c.b16 %v4967, %v4966
      %v5001 = vpack.c.b16 %v4968, %v4968
      %v5002 = vpack.c.b16 %v4970, %v4969
      %v5003 = vpack.c.b16 %v4971, %v4971
      %v5020 = vunpack.c.l.b16 %v4796
      %v5021 = vunpack.c.l.b16 %v4797
      %v5022 = vunpack.c.l.b16 %v4798
      %v5023 = vunpack.c.l.b16 %v4799
      %v5024 = vunpack.c.l.b16 %v4800
      %v5025 = vunpack.c.l.b16 %v4801
      %v5026 = vunpack.c.l.b16 %v4802
      %v5027 = vunpack.c.l.b16 %v4803
      %v5028 = vunpack.c.l.b16 %v4804
      %v5029 = vunpack.c.l.b16 %v4805
      %v5030 = vunpack.c.l.b16 %v4806
      %v5031 = vunpack.c.l.b16 %v4807
      %v5032 = vunpack.c.l.b16 %v4808
      %v5033 = vunpack.c.l.b16 %v4809
      %v5034 = vunpack.c.l.b16 %v4810
      %v5035 = vunpack.c.l.b16 %v4811
      %v5036 = vpack.c.b16 %v4925, %v5020
      %v5037 = vpack.c.b16 %v4928, %v5021
      %v5038 = vpack.c.b16 %v4931, %v5022
      %v5039 = vpack.c.b16 %v4934, %v5023
      %v5040 = vpack.c.b16 %v4937, %v5024
      %v5041 = vpack.c.b16 %v4940, %v5025
      %v5042 = vpack.c.b16 %v4943, %v5026
      %v5043 = vpack.c.b16 %v4946, %v5027
      %v5044 = vpack.c.b16 %v4949, %v5028
      %v5045 = vpack.c.b16 %v4952, %v5029
      %v5046 = vpack.c.b16 %v4955, %v5030
      %v5047 = vpack.c.b16 %v4958, %v5031
      %v5048 = vpack.c.b16 %v4961, %v5032
      %v5049 = vpack.c.b16 %v4964, %v5033
      %v5050 = vpack.c.b16 %v4967, %v5034
      %v5051 = vpack.c.b16 %v4970, %v5035
      %v5053 = vshrl.u32 %v5036, 16
      %v5055 = vshll.u32 %v5036, 16
      %v5057 = vrot.slane %v5055, 1
      %v5058 = vor.u32 %v5053, %v5057
      %v5060 = vshll.u32 %v4973, 16
      %v5062 = vrot.slane %v5060, 1
      %v5063 = vsel %vm988, %v5058, %v5062
      %v5064 = vshrl.u32 %v4973, 16
      %v5067 = vshrl.u32 %v5037, 16
      %v5069 = vshll.u32 %v5037, 16
      %v5071 = vrot.slane %v5069, 1
      %v5072 = vor.u32 %v5067, %v5071
      %v5074 = vshll.u32 %v4975, 16
      %v5076 = vrot.slane %v5074, 1
      %v5077 = vsel %vm988, %v5072, %v5076
      %v5078 = vshrl.u32 %v4975, 16
      %v5081 = vshrl.u32 %v5038, 16
      %v5083 = vshll.u32 %v5038, 16
      %v5085 = vrot.slane %v5083, 1
      %v5086 = vor.u32 %v5081, %v5085
      %v5088 = vshll.u32 %v4977, 16
      %v5090 = vrot.slane %v5088, 1
      %v5091 = vsel %vm988, %v5086, %v5090
      %v5092 = vshrl.u32 %v4977, 16
      %v5095 = vshrl.u32 %v5039, 16
      %v5097 = vshll.u32 %v5039, 16
      %v5099 = vrot.slane %v5097, 1
      %v5100 = vor.u32 %v5095, %v5099
      %v5102 = vshll.u32 %v4979, 16
      %v5104 = vrot.slane %v5102, 1
      %v5105 = vsel %vm988, %v5100, %v5104
      %v5106 = vshrl.u32 %v4979, 16
      %v5109 = vshrl.u32 %v5040, 16
      %v5111 = vshll.u32 %v5040, 16
      %v5113 = vrot.slane %v5111, 1
      %v5114 = vor.u32 %v5109, %v5113
      %v5116 = vshll.u32 %v4981, 16
      %v5118 = vrot.slane %v5116, 1
      %v5119 = vsel %vm988, %v5114, %v5118
      %v5120 = vshrl.u32 %v4981, 16
      %v5123 = vshrl.u32 %v5041, 16
      %v5125 = vshll.u32 %v5041, 16
      %v5127 = vrot.slane %v5125, 1
      %v5128 = vor.u32 %v5123, %v5127
      %v5130 = vshll.u32 %v4983, 16
      %v5132 = vrot.slane %v5130, 1
      %v5133 = vsel %vm988, %v5128, %v5132
      %v5134 = vshrl.u32 %v4983, 16
      %v5137 = vshrl.u32 %v5042, 16
      %v5139 = vshll.u32 %v5042, 16
      %v5141 = vrot.slane %v5139, 1
      %v5142 = vor.u32 %v5137, %v5141
      %v5144 = vshll.u32 %v4985, 16
      %v5146 = vrot.slane %v5144, 1
      %v5147 = vsel %vm988, %v5142, %v5146
      %v5148 = vshrl.u32 %v4985, 16
      %v5151 = vshrl.u32 %v5043, 16
      %v5153 = vshll.u32 %v5043, 16
      %v5155 = vrot.slane %v5153, 1
      %v5156 = vor.u32 %v5151, %v5155
      %v5158 = vshll.u32 %v4987, 16
      %v5160 = vrot.slane %v5158, 1
      %v5161 = vsel %vm988, %v5156, %v5160
      %v5162 = vshrl.u32 %v4987, 16
      %v5165 = vshrl.u32 %v5044, 16
      %v5167 = vshll.u32 %v5044, 16
      %v5169 = vrot.slane %v5167, 1
      %v5170 = vor.u32 %v5165, %v5169
      %v5172 = vshll.u32 %v4989, 16
      %v5174 = vrot.slane %v5172, 1
      %v5175 = vsel %vm988, %v5170, %v5174
      %v5176 = vshrl.u32 %v4989, 16
      %v5179 = vshrl.u32 %v5045, 16
      %v5181 = vshll.u32 %v5045, 16
      %v5183 = vrot.slane %v5181, 1
      %v5184 = vor.u32 %v5179, %v5183
      %v5186 = vshll.u32 %v4991, 16
      %v5188 = vrot.slane %v5186, 1
      %v5189 = vsel %vm988, %v5184, %v5188
      %v5190 = vshrl.u32 %v4991, 16
      %v5193 = vshrl.u32 %v5046, 16
      %v5195 = vshll.u32 %v5046, 16
      %v5197 = vrot.slane %v5195, 1
      %v5198 = vor.u32 %v5193, %v5197
      %v5200 = vshll.u32 %v4993, 16
      %v5202 = vrot.slane %v5200, 1
      %v5203 = vsel %vm988, %v5198, %v5202
      %v5204 = vshrl.u32 %v4993, 16
      %v5207 = vshrl.u32 %v5047, 16
      %v5209 = vshll.u32 %v5047, 16
      %v5211 = vrot.slane %v5209, 1
      %v5212 = vor.u32 %v5207, %v5211
      %v5214 = vshll.u32 %v4995, 16
      %v5216 = vrot.slane %v5214, 1
      %v5217 = vsel %vm988, %v5212, %v5216
      %v5218 = vshrl.u32 %v4995, 16
      %v5221 = vshrl.u32 %v5048, 16
      %v5223 = vshll.u32 %v5048, 16
      %v5225 = vrot.slane %v5223, 1
      %v5226 = vor.u32 %v5221, %v5225
      %v5228 = vshll.u32 %v4997, 16
      %v5230 = vrot.slane %v5228, 1
      %v5231 = vsel %vm988, %v5226, %v5230
      %v5232 = vshrl.u32 %v4997, 16
      %v5235 = vshrl.u32 %v5049, 16
      %v5237 = vshll.u32 %v5049, 16
      %v5239 = vrot.slane %v5237, 1
      %v5240 = vor.u32 %v5235, %v5239
      %v5242 = vshll.u32 %v4999, 16
      %v5244 = vrot.slane %v5242, 1
      %v5245 = vsel %vm988, %v5240, %v5244
      %v5246 = vshrl.u32 %v4999, 16
      %v5249 = vshrl.u32 %v5050, 16
      %v5251 = vshll.u32 %v5050, 16
      %v5253 = vrot.slane %v5251, 1
      %v5254 = vor.u32 %v5249, %v5253
      %v5256 = vshll.u32 %v5001, 16
      %v5258 = vrot.slane %v5256, 1
      %v5259 = vsel %vm988, %v5254, %v5258
      %v5260 = vshrl.u32 %v5001, 16
      %v5263 = vshrl.u32 %v5051, 16
      %v5265 = vshll.u32 %v5051, 16
      %v5267 = vrot.slane %v5265, 1
      %v5268 = vor.u32 %v5263, %v5267
      %v5270 = vshll.u32 %v5003, 16
      %v5272 = vrot.slane %v5270, 1
      %v5273 = vsel %vm988, %v5268, %v5272
      %v5274 = vshrl.u32 %v5003, 16
      %5276 = vrot.lane.b32.xlu0 %v5063, 4
      %v5277 = vpop.permute.xlu0 %5276
      %5278 = vrot.lane.b32.xlu0 %v5064, 4
      %v5279 = vpop.permute.xlu0 %5278
      %5280 = vrot.lane.b32.xlu0 %v5077, 4
      %v5281 = vpop.permute.xlu0 %5280
      %5282 = vrot.lane.b32.xlu0 %v5078, 4
      %v5283 = vpop.permute.xlu0 %5282
      %5284 = vrot.lane.b32.xlu0 %v5091, 4
      %v5285 = vpop.permute.xlu0 %5284
      %5286 = vrot.lane.b32.xlu0 %v5092, 4
      %v5287 = vpop.permute.xlu0 %5286
      %5288 = vrot.lane.b32.xlu0 %v5105, 4
      %v5289 = vpop.permute.xlu0 %5288
      %5290 = vrot.lane.b32.xlu0 %v5106, 4
      %v5291 = vpop.permute.xlu0 %5290
      %5292 = vrot.lane.b32.xlu0 %v5119, 4
      %v5293 = vpop.permute.xlu0 %5292
      %5294 = vrot.lane.b32.xlu0 %v5120, 4
      %v5295 = vpop.permute.xlu0 %5294
      %5296 = vrot.lane.b32.xlu0 %v5133, 4
      %v5297 = vpop.permute.xlu0 %5296
      %5298 = vrot.lane.b32.xlu0 %v5134, 4
      %v5299 = vpop.permute.xlu0 %5298
      %5300 = vrot.lane.b32.xlu0 %v5147, 4
      %v5301 = vpop.permute.xlu0 %5300
      %5302 = vrot.lane.b32.xlu0 %v5148, 4
      %v5303 = vpop.permute.xlu0 %5302
      %5304 = vrot.lane.b32.xlu0 %v5161, 4
      %v5305 = vpop.permute.xlu0 %5304
      %5306 = vrot.lane.b32.xlu0 %v5162, 4
      %v5307 = vpop.permute.xlu0 %5306
      %5308 = vrot.lane.b32.xlu0 %v5175, 4
      %v5309 = vpop.permute.xlu0 %5308
      %5310 = vrot.lane.b32.xlu0 %v5176, 4
      %v5311 = vpop.permute.xlu0 %5310
      %5312 = vrot.lane.b32.xlu0 %v5189, 4
      %v5313 = vpop.permute.xlu0 %5312
      %5314 = vrot.lane.b32.xlu0 %v5190, 4
      %v5315 = vpop.permute.xlu0 %5314
      %5316 = vrot.lane.b32.xlu0 %v5203, 4
      %v5317 = vpop.permute.xlu0 %5316
      %5318 = vrot.lane.b32.xlu0 %v5204, 4
      %v5319 = vpop.permute.xlu0 %5318
      %5320 = vrot.lane.b32.xlu0 %v5217, 4
      %v5321 = vpop.permute.xlu0 %5320
      %5322 = vrot.lane.b32.xlu0 %v5218, 4
      %v5323 = vpop.permute.xlu0 %5322
      %5324 = vrot.lane.b32.xlu0 %v5231, 4
      %v5325 = vpop.permute.xlu0 %5324
      %5326 = vrot.lane.b32.xlu0 %v5232, 4
      %v5327 = vpop.permute.xlu0 %5326
      %5328 = vrot.lane.b32.xlu0 %v5245, 4
      %v5329 = vpop.permute.xlu0 %5328
      %5330 = vrot.lane.b32.xlu0 %v5246, 4
      %v5331 = vpop.permute.xlu0 %5330
      %5332 = vrot.lane.b32.xlu0 %v5259, 4
      %v5333 = vpop.permute.xlu0 %5332
      %5334 = vrot.lane.b32.xlu0 %v5260, 4
      %v5335 = vpop.permute.xlu0 %5334
      %5336 = vrot.lane.b32.xlu0 %v5273, 4
      %v5337 = vpop.permute.xlu0 %5336
      %5338 = vrot.lane.b32.xlu0 %v5274, 4
      %v5339 = vpop.permute.xlu0 %5338
      %v5388 = vunpack.c.l.b16 %v4812
      %v5389 = vunpack.c.l.b16 %v4813
      %v5390 = vunpack.c.l.b16 %v4814
      %v5391 = vunpack.c.l.b16 %v4815
      %v5392 = vunpack.c.l.b16 %v4816
      %v5393 = vunpack.c.l.b16 %v4817
      %v5394 = vunpack.c.l.b16 %v4818
      %v5395 = vunpack.c.l.b16 %v4819
      %v5396 = vunpack.c.l.b16 %v4820
      %v5397 = vunpack.c.l.b16 %v4821
      %v5398 = vunpack.c.l.b16 %v4822
      %v5399 = vunpack.c.l.b16 %v4823
      %v5400 = vunpack.c.l.b16 %v4824
      %v5401 = vunpack.c.l.b16 %v4825
      %v5402 = vunpack.c.l.b16 %v4826
      %v5403 = vunpack.c.l.b16 %v4827
      %v5404 = vunpack.c.l.b16 %v4828
      %v5405 = vunpack.c.l.b16 %v4829
      %v5406 = vunpack.c.l.b16 %v4830
      %v5407 = vunpack.c.l.b16 %v4831
      %v5408 = vunpack.c.l.b16 %v4832
      %v5409 = vunpack.c.l.b16 %v4833
      %v5410 = vunpack.c.l.b16 %v4834
      %v5411 = vunpack.c.l.b16 %v4835
      %v5412 = vunpack.c.l.b16 %v4836
      %v5413 = vunpack.c.l.b16 %v4837
      %v5414 = vunpack.c.l.b16 %v4838
      %v5415 = vunpack.c.l.b16 %v4839
      %v5416 = vunpack.c.l.b16 %v4840
      %v5417 = vunpack.c.l.b16 %v4841
      %v5418 = vunpack.c.l.b16 %v4842
      %v5419 = vunpack.c.l.b16 %v4843
      %v5420 = vunpack.c.l.b16 %v4844
      %v5421 = vunpack.c.l.b16 %v4845
      %v5422 = vunpack.c.l.b16 %v4846
      %v5423 = vunpack.c.l.b16 %v4847
      %v5424 = vunpack.c.l.b16 %v4848
      %v5425 = vunpack.c.l.b16 %v4849
      %v5426 = vunpack.c.l.b16 %v4850
      %v5427 = vunpack.c.l.b16 %v4851
      %v5428 = vunpack.c.l.b16 %v4852
      %v5429 = vunpack.c.l.b16 %v4853
      %v5430 = vunpack.c.l.b16 %v4854
      %v5431 = vunpack.c.l.b16 %v4855
      %v5432 = vunpack.c.l.b16 %v4856
      %v5433 = vunpack.c.l.b16 %v4857
      %v5434 = vunpack.c.l.b16 %v4858
      %v5435 = vunpack.c.l.b16 %v4859
      %v5436 = vpack.c.b16 %v5389, %v5388
      %v5437 = vpack.c.b16 %v5390, %v5390
      %v5438 = vpack.c.b16 %v5392, %v5391
      %v5439 = vpack.c.b16 %v5393, %v5393
      %v5440 = vpack.c.b16 %v5395, %v5394
      %v5441 = vpack.c.b16 %v5396, %v5396
      %v5442 = vpack.c.b16 %v5398, %v5397
      %v5443 = vpack.c.b16 %v5399, %v5399
      %v5444 = vpack.c.b16 %v5401, %v5400
      %v5445 = vpack.c.b16 %v5402, %v5402
      %v5446 = vpack.c.b16 %v5404, %v5403
      %v5447 = vpack.c.b16 %v5405, %v5405
      %v5448 = vpack.c.b16 %v5407, %v5406
      %v5449 = vpack.c.b16 %v5408, %v5408
      %v5450 = vpack.c.b16 %v5410, %v5409
      %v5451 = vpack.c.b16 %v5411, %v5411
      %v5452 = vpack.c.b16 %v5413, %v5412
      %v5453 = vpack.c.b16 %v5414, %v5414
      %v5454 = vpack.c.b16 %v5416, %v5415
      %v5455 = vpack.c.b16 %v5417, %v5417
      %v5456 = vpack.c.b16 %v5419, %v5418
      %v5457 = vpack.c.b16 %v5420, %v5420
      %v5458 = vpack.c.b16 %v5422, %v5421
      %v5459 = vpack.c.b16 %v5423, %v5423
      %v5460 = vpack.c.b16 %v5425, %v5424
      %v5461 = vpack.c.b16 %v5426, %v5426
      %v5462 = vpack.c.b16 %v5428, %v5427
      %v5463 = vpack.c.b16 %v5429, %v5429
      %v5464 = vpack.c.b16 %v5431, %v5430
      %v5465 = vpack.c.b16 %v5432, %v5432
      %v5466 = vpack.c.b16 %v5434, %v5433
      %v5467 = vpack.c.b16 %v5435, %v5435
      %5468 = vrot.lane.b32.xlu0 %v5436, 8
      %v5469 = vpop.permute.xlu0 %5468
      %5470 = vrot.lane.b32.xlu0 %v5437, 8
      %v5471 = vpop.permute.xlu0 %5470
      %5472 = vrot.lane.b32.xlu0 %v5438, 8
      %v5473 = vpop.permute.xlu0 %5472
      %5474 = vrot.lane.b32.xlu0 %v5439, 8
      %v5475 = vpop.permute.xlu0 %5474
      %5476 = vrot.lane.b32.xlu0 %v5440, 8
      %v5477 = vpop.permute.xlu0 %5476
      %5478 = vrot.lane.b32.xlu0 %v5441, 8
      %v5479 = vpop.permute.xlu0 %5478
      %5480 = vrot.lane.b32.xlu0 %v5442, 8
      %v5481 = vpop.permute.xlu0 %5480
      %5482 = vrot.lane.b32.xlu0 %v5443, 8
      %v5483 = vpop.permute.xlu0 %5482
      %5484 = vrot.lane.b32.xlu0 %v5444, 8
      %v5485 = vpop.permute.xlu0 %5484
      %5486 = vrot.lane.b32.xlu0 %v5445, 8
      %v5487 = vpop.permute.xlu0 %5486
      %5488 = vrot.lane.b32.xlu0 %v5446, 8
      %v5489 = vpop.permute.xlu0 %5488
      %5490 = vrot.lane.b32.xlu0 %v5447, 8
      %v5491 = vpop.permute.xlu0 %5490
      %5492 = vrot.lane.b32.xlu0 %v5448, 8
      %v5493 = vpop.permute.xlu0 %5492
      %5494 = vrot.lane.b32.xlu0 %v5449, 8
      %v5495 = vpop.permute.xlu0 %5494
      %5496 = vrot.lane.b32.xlu0 %v5450, 8
      %v5497 = vpop.permute.xlu0 %5496
      %5498 = vrot.lane.b32.xlu0 %v5451, 8
      %v5499 = vpop.permute.xlu0 %5498
      %5500 = vrot.lane.b32.xlu0 %v5452, 8
      %v5501 = vpop.permute.xlu0 %5500
      %5502 = vrot.lane.b32.xlu0 %v5453, 8
      %v5503 = vpop.permute.xlu0 %5502
      %5504 = vrot.lane.b32.xlu0 %v5454, 8
      %v5505 = vpop.permute.xlu0 %5504
      %5506 = vrot.lane.b32.xlu0 %v5455, 8
      %v5507 = vpop.permute.xlu0 %5506
      %5508 = vrot.lane.b32.xlu0 %v5456, 8
      %v5509 = vpop.permute.xlu0 %5508
      %5510 = vrot.lane.b32.xlu0 %v5457, 8
      %v5511 = vpop.permute.xlu0 %5510
      %5512 = vrot.lane.b32.xlu0 %v5458, 8
      %v5513 = vpop.permute.xlu0 %5512
      %5514 = vrot.lane.b32.xlu0 %v5459, 8
      %v5515 = vpop.permute.xlu0 %5514
      %5516 = vrot.lane.b32.xlu0 %v5460, 8
      %v5517 = vpop.permute.xlu0 %5516
      %5518 = vrot.lane.b32.xlu0 %v5461, 8
      %v5519 = vpop.permute.xlu0 %5518
      %5520 = vrot.lane.b32.xlu0 %v5462, 8
      %v5521 = vpop.permute.xlu0 %5520
      %5522 = vrot.lane.b32.xlu0 %v5463, 8
      %v5523 = vpop.permute.xlu0 %5522
      %5524 = vrot.lane.b32.xlu0 %v5464, 8
      %v5525 = vpop.permute.xlu0 %5524
      %5526 = vrot.lane.b32.xlu0 %v5465, 8
      %v5527 = vpop.permute.xlu0 %5526
      %5528 = vrot.lane.b32.xlu0 %v5466, 8
      %v5529 = vpop.permute.xlu0 %5528
      %5530 = vrot.lane.b32.xlu0 %v5467, 8
      %v5531 = vpop.permute.xlu0 %5530
      %v5548 = vunpack.c.l.b16 %v4860
      %v5549 = vunpack.c.l.b16 %v4861
      %v5550 = vunpack.c.l.b16 %v4862
      %v5551 = vunpack.c.l.b16 %v4863
      %v5552 = vunpack.c.l.b16 %v4864
      %v5553 = vunpack.c.l.b16 %v4865
      %v5554 = vunpack.c.l.b16 %v4866
      %v5555 = vunpack.c.l.b16 %v4867
      %v5556 = vunpack.c.l.b16 %v4868
      %v5557 = vunpack.c.l.b16 %v4869
      %v5558 = vunpack.c.l.b16 %v4870
      %v5559 = vunpack.c.l.b16 %v4871
      %v5560 = vunpack.c.l.b16 %v4872
      %v5561 = vunpack.c.l.b16 %v4873
      %v5562 = vunpack.c.l.b16 %v4874
      %v5563 = vunpack.c.l.b16 %v4875
      %v5564 = vpack.c.b16 %v5389, %v5548
      %v5565 = vpack.c.b16 %v5392, %v5549
      %v5566 = vpack.c.b16 %v5395, %v5550
      %v5567 = vpack.c.b16 %v5398, %v5551
      %v5568 = vpack.c.b16 %v5401, %v5552
      %v5569 = vpack.c.b16 %v5404, %v5553
      %v5570 = vpack.c.b16 %v5407, %v5554
      %v5571 = vpack.c.b16 %v5410, %v5555
      %v5572 = vpack.c.b16 %v5413, %v5556
      %v5573 = vpack.c.b16 %v5416, %v5557
      %v5574 = vpack.c.b16 %v5419, %v5558
      %v5575 = vpack.c.b16 %v5422, %v5559
      %v5576 = vpack.c.b16 %v5425, %v5560
      %v5577 = vpack.c.b16 %v5428, %v5561
      %v5578 = vpack.c.b16 %v5431, %v5562
      %v5579 = vpack.c.b16 %v5434, %v5563
      %v5581 = vshrl.u32 %v5564, 16
      %v5583 = vshll.u32 %v5564, 16
      %v5585 = vrot.slane %v5583, 1
      %v5586 = vor.u32 %v5581, %v5585
      %v5588 = vshll.u32 %v5437, 16
      %v5590 = vrot.slane %v5588, 1
      %v5591 = vsel %vm988, %v5586, %v5590
      %v5592 = vshrl.u32 %v5437, 16
      %v5595 = vshrl.u32 %v5565, 16
      %v5597 = vshll.u32 %v5565, 16
      %v5599 = vrot.slane %v5597, 1
      %v5600 = vor.u32 %v5595, %v5599
      %v5602 = vshll.u32 %v5439, 16
      %v5604 = vrot.slane %v5602, 1
      %v5605 = vsel %vm988, %v5600, %v5604
      %v5606 = vshrl.u32 %v5439, 16
      %v5609 = vshrl.u32 %v5566, 16
      %v5611 = vshll.u32 %v5566, 16
      %v5613 = vrot.slane %v5611, 1
      %v5614 = vor.u32 %v5609, %v5613
      %v5616 = vshll.u32 %v5441, 16
      %v5618 = vrot.slane %v5616, 1
      %v5619 = vsel %vm988, %v5614, %v5618
      %v5620 = vshrl.u32 %v5441, 16
      %v5623 = vshrl.u32 %v5567, 16
      %v5625 = vshll.u32 %v5567, 16
      %v5627 = vrot.slane %v5625, 1
      %v5628 = vor.u32 %v5623, %v5627
      %v5630 = vshll.u32 %v5443, 16
      %v5632 = vrot.slane %v5630, 1
      %v5633 = vsel %vm988, %v5628, %v5632
      %v5634 = vshrl.u32 %v5443, 16
      %v5637 = vshrl.u32 %v5568, 16
      %v5639 = vshll.u32 %v5568, 16
      %v5641 = vrot.slane %v5639, 1
      %v5642 = vor.u32 %v5637, %v5641
      %v5644 = vshll.u32 %v5445, 16
      %v5646 = vrot.slane %v5644, 1
      %v5647 = vsel %vm988, %v5642, %v5646
      %v5648 = vshrl.u32 %v5445, 16
      %v5651 = vshrl.u32 %v5569, 16
      %v5653 = vshll.u32 %v5569, 16
      %v5655 = vrot.slane %v5653, 1
      %v5656 = vor.u32 %v5651, %v5655
      %v5658 = vshll.u32 %v5447, 16
      %v5660 = vrot.slane %v5658, 1
      %v5661 = vsel %vm988, %v5656, %v5660
      %v5662 = vshrl.u32 %v5447, 16
      %v5665 = vshrl.u32 %v5570, 16
      %v5667 = vshll.u32 %v5570, 16
      %v5669 = vrot.slane %v5667, 1
      %v5670 = vor.u32 %v5665, %v5669
      %v5672 = vshll.u32 %v5449, 16
      %v5674 = vrot.slane %v5672, 1
      %v5675 = vsel %vm988, %v5670, %v5674
      %v5676 = vshrl.u32 %v5449, 16
      %v5679 = vshrl.u32 %v5571, 16
      %v5681 = vshll.u32 %v5571, 16
      %v5683 = vrot.slane %v5681, 1
      %v5684 = vor.u32 %v5679, %v5683
      %v5686 = vshll.u32 %v5451, 16
      %v5688 = vrot.slane %v5686, 1
      %v5689 = vsel %vm988, %v5684, %v5688
      %v5690 = vshrl.u32 %v5451, 16
      %v5693 = vshrl.u32 %v5572, 16
      %v5695 = vshll.u32 %v5572, 16
      %v5697 = vrot.slane %v5695, 1
      %v5698 = vor.u32 %v5693, %v5697
      %v5700 = vshll.u32 %v5453, 16
      %v5702 = vrot.slane %v5700, 1
      %v5703 = vsel %vm988, %v5698, %v5702
      %v5704 = vshrl.u32 %v5453, 16
      %v5707 = vshrl.u32 %v5573, 16
      %v5709 = vshll.u32 %v5573, 16
      %v5711 = vrot.slane %v5709, 1
      %v5712 = vor.u32 %v5707, %v5711
      %v5714 = vshll.u32 %v5455, 16
      %v5716 = vrot.slane %v5714, 1
      %v5717 = vsel %vm988, %v5712, %v5716
      %v5718 = vshrl.u32 %v5455, 16
      %v5721 = vshrl.u32 %v5574, 16
      %v5723 = vshll.u32 %v5574, 16
      %v5725 = vrot.slane %v5723, 1
      %v5726 = vor.u32 %v5721, %v5725
      %v5728 = vshll.u32 %v5457, 16
      %v5730 = vrot.slane %v5728, 1
      %v5731 = vsel %vm988, %v5726, %v5730
      %v5732 = vshrl.u32 %v5457, 16
      %v5735 = vshrl.u32 %v5575, 16
      %v5737 = vshll.u32 %v5575, 16
      %v5739 = vrot.slane %v5737, 1
      %v5740 = vor.u32 %v5735, %v5739
      %v5742 = vshll.u32 %v5459, 16
      %v5744 = vrot.slane %v5742, 1
      %v5745 = vsel %vm988, %v5740, %v5744
      %v5746 = vshrl.u32 %v5459, 16
      %v5749 = vshrl.u32 %v5576, 16
      %v5751 = vshll.u32 %v5576, 16
      %v5753 = vrot.slane %v5751, 1
      %v5754 = vor.u32 %v5749, %v5753
      %v5756 = vshll.u32 %v5461, 16
      %v5758 = vrot.slane %v5756, 1
      %v5759 = vsel %vm988, %v5754, %v5758
      %v5760 = vshrl.u32 %v5461, 16
      %v5763 = vshrl.u32 %v5577, 16
      %v5765 = vshll.u32 %v5577, 16
      %v5767 = vrot.slane %v5765, 1
      %v5768 = vor.u32 %v5763, %v5767
      %v5770 = vshll.u32 %v5463, 16
      %v5772 = vrot.slane %v5770, 1
      %v5773 = vsel %vm988, %v5768, %v5772
      %v5774 = vshrl.u32 %v5463, 16
      %v5777 = vshrl.u32 %v5578, 16
      %v5779 = vshll.u32 %v5578, 16
      %v5781 = vrot.slane %v5779, 1
      %v5782 = vor.u32 %v5777, %v5781
      %v5784 = vshll.u32 %v5465, 16
      %v5786 = vrot.slane %v5784, 1
      %v5787 = vsel %vm988, %v5782, %v5786
      %v5788 = vshrl.u32 %v5465, 16
      %v5791 = vshrl.u32 %v5579, 16
      %v5793 = vshll.u32 %v5579, 16
      %v5795 = vrot.slane %v5793, 1
      %v5796 = vor.u32 %v5791, %v5795
      %v5798 = vshll.u32 %v5467, 16
      %v5800 = vrot.slane %v5798, 1
      %v5801 = vsel %vm988, %v5796, %v5800
      %v5802 = vshrl.u32 %v5467, 16
      %5804 = vrot.lane.b32.xlu0 %v5591, 12
      %v5805 = vpop.permute.xlu0 %5804
      %5806 = vrot.lane.b32.xlu0 %v5592, 12
      %v5807 = vpop.permute.xlu0 %5806
      %5808 = vrot.lane.b32.xlu0 %v5605, 12
      %v5809 = vpop.permute.xlu0 %5808
      %5810 = vrot.lane.b32.xlu0 %v5606, 12
      %v5811 = vpop.permute.xlu0 %5810
      %5812 = vrot.lane.b32.xlu0 %v5619, 12
      %v5813 = vpop.permute.xlu0 %5812
      %5814 = vrot.lane.b32.xlu0 %v5620, 12
      %v5815 = vpop.permute.xlu0 %5814
      %5816 = vrot.lane.b32.xlu0 %v5633, 12
      %v5817 = vpop.permute.xlu0 %5816
      %5818 = vrot.lane.b32.xlu0 %v5634, 12
      %v5819 = vpop.permute.xlu0 %5818
      %5820 = vrot.lane.b32.xlu0 %v5647, 12
      %v5821 = vpop.permute.xlu0 %5820
      %5822 = vrot.lane.b32.xlu0 %v5648, 12
      %v5823 = vpop.permute.xlu0 %5822
      %5824 = vrot.lane.b32.xlu0 %v5661, 12
      %v5825 = vpop.permute.xlu0 %5824
      %5826 = vrot.lane.b32.xlu0 %v5662, 12
      %v5827 = vpop.permute.xlu0 %5826
      %5828 = vrot.lane.b32.xlu0 %v5675, 12
      %v5829 = vpop.permute.xlu0 %5828
      %5830 = vrot.lane.b32.xlu0 %v5676, 12
      %v5831 = vpop.permute.xlu0 %5830
      %5832 = vrot.lane.b32.xlu0 %v5689, 12
      %v5833 = vpop.permute.xlu0 %5832
      %5834 = vrot.lane.b32.xlu0 %v5690, 12
      %v5835 = vpop.permute.xlu0 %5834
      %5836 = vrot.lane.b32.xlu0 %v5703, 12
      %v5837 = vpop.permute.xlu0 %5836
      %5838 = vrot.lane.b32.xlu0 %v5704, 12
      %v5839 = vpop.permute.xlu0 %5838
      %5840 = vrot.lane.b32.xlu0 %v5717, 12
      %v5841 = vpop.permute.xlu0 %5840
      %5842 = vrot.lane.b32.xlu0 %v5718, 12
      %v5843 = vpop.permute.xlu0 %5842
      %5844 = vrot.lane.b32.xlu0 %v5731, 12
      %v5845 = vpop.permute.xlu0 %5844
      %5846 = vrot.lane.b32.xlu0 %v5732, 12
      %v5847 = vpop.permute.xlu0 %5846
      %5848 = vrot.lane.b32.xlu0 %v5745, 12
      %v5849 = vpop.permute.xlu0 %5848
      %5850 = vrot.lane.b32.xlu0 %v5746, 12
      %v5851 = vpop.permute.xlu0 %5850
      %5852 = vrot.lane.b32.xlu0 %v5759, 12
      %v5853 = vpop.permute.xlu0 %5852
      %5854 = vrot.lane.b32.xlu0 %v5760, 12
      %v5855 = vpop.permute.xlu0 %5854
      %5856 = vrot.lane.b32.xlu0 %v5773, 12
      %v5857 = vpop.permute.xlu0 %5856
      %5858 = vrot.lane.b32.xlu0 %v5774, 12
      %v5859 = vpop.permute.xlu0 %5858
      %5860 = vrot.lane.b32.xlu0 %v5787, 12
      %v5861 = vpop.permute.xlu0 %5860
      %5862 = vrot.lane.b32.xlu0 %v5788, 12
      %v5863 = vpop.permute.xlu0 %5862
      %5864 = vrot.lane.b32.xlu0 %v5801, 12
      %v5865 = vpop.permute.xlu0 %5864
      %5866 = vrot.lane.b32.xlu0 %v5802, 12
      %v5867 = vpop.permute.xlu0 %5866
      %v5870 = vsel %vm1597, %v4972, %v5277
      %v5872 = vsel %vm1597, %v4973, %v5279
      %v5875 = vsel %vm1597, %v4974, %v5281
      %v5877 = vsel %vm1597, %v4975, %v5283
      %v5880 = vsel %vm1597, %v4976, %v5285
      %v5882 = vsel %vm1597, %v4977, %v5287
      %v5885 = vsel %vm1597, %v4978, %v5289
      %v5887 = vsel %vm1597, %v4979, %v5291
      %v5890 = vsel %vm1597, %v4980, %v5293
      %v5892 = vsel %vm1597, %v4981, %v5295
      %v5895 = vsel %vm1597, %v4982, %v5297
      %v5897 = vsel %vm1597, %v4983, %v5299
      %v5900 = vsel %vm1597, %v4984, %v5301
      %v5902 = vsel %vm1597, %v4985, %v5303
      %v5905 = vsel %vm1597, %v4986, %v5305
      %v5907 = vsel %vm1597, %v4987, %v5307
      %v5910 = vsel %vm1597, %v4988, %v5309
      %v5912 = vsel %vm1597, %v4989, %v5311
      %v5915 = vsel %vm1597, %v4990, %v5313
      %v5917 = vsel %vm1597, %v4991, %v5315
      %v5920 = vsel %vm1597, %v4992, %v5317
      %v5922 = vsel %vm1597, %v4993, %v5319
      %v5925 = vsel %vm1597, %v4994, %v5321
      %v5927 = vsel %vm1597, %v4995, %v5323
      %v5930 = vsel %vm1597, %v4996, %v5325
      %v5932 = vsel %vm1597, %v4997, %v5327
      %v5935 = vsel %vm1597, %v4998, %v5329
      %v5937 = vsel %vm1597, %v4999, %v5331
      %v5940 = vsel %vm1597, %v5000, %v5333
      %v5942 = vsel %vm1597, %v5001, %v5335
      %v5945 = vsel %vm1597, %v5002, %v5337
      %v5947 = vsel %vm1597, %v5003, %v5339
      %v5949 = vsel %vm1630, %v5870, %v5469
      %v5951 = vsel %vm1630, %v5872, %v5471
      %v5953 = vsel %vm1630, %v5875, %v5473
      %v5955 = vsel %vm1630, %v5877, %v5475
      %v5957 = vsel %vm1630, %v5880, %v5477
      %v5959 = vsel %vm1630, %v5882, %v5479
      %v5961 = vsel %vm1630, %v5885, %v5481
      %v5963 = vsel %vm1630, %v5887, %v5483
      %v5965 = vsel %vm1630, %v5890, %v5485
      %v5967 = vsel %vm1630, %v5892, %v5487
      %v5969 = vsel %vm1630, %v5895, %v5489
      %v5971 = vsel %vm1630, %v5897, %v5491
      %v5973 = vsel %vm1630, %v5900, %v5493
      %v5975 = vsel %vm1630, %v5902, %v5495
      %v5977 = vsel %vm1630, %v5905, %v5497
      %v5979 = vsel %vm1630, %v5907, %v5499
      %v5981 = vsel %vm1630, %v5910, %v5501
      %v5983 = vsel %vm1630, %v5912, %v5503
      %v5985 = vsel %vm1630, %v5915, %v5505
      %v5987 = vsel %vm1630, %v5917, %v5507
      %v5989 = vsel %vm1630, %v5920, %v5509
      %v5991 = vsel %vm1630, %v5922, %v5511
      %v5993 = vsel %vm1630, %v5925, %v5513
      %v5995 = vsel %vm1630, %v5927, %v5515
      %v5997 = vsel %vm1630, %v5930, %v5517
      %v5999 = vsel %vm1630, %v5932, %v5519
      %v6001 = vsel %vm1630, %v5935, %v5521
      %v6003 = vsel %vm1630, %v5937, %v5523
      %v6005 = vsel %vm1630, %v5940, %v5525
      %v6007 = vsel %vm1630, %v5942, %v5527
      %v6009 = vsel %vm1630, %v5945, %v5529
      %v6011 = vsel %vm1630, %v5947, %v5531
      %v6013 = vsel %vm1663, %v5949, %v5805
      %v6015 = vsel %vm1663, %v5951, %v5807
      %v6017 = vsel %vm1663, %v5953, %v5809
      %v6019 = vsel %vm1663, %v5955, %v5811
      %v6021 = vsel %vm1663, %v5957, %v5813
      %v6023 = vsel %vm1663, %v5959, %v5815
      %v6025 = vsel %vm1663, %v5961, %v5817
      %v6027 = vsel %vm1663, %v5963, %v5819
      %v6029 = vsel %vm1663, %v5965, %v5821
      %v6031 = vsel %vm1663, %v5967, %v5823
      %v6033 = vsel %vm1663, %v5969, %v5825
      %v6035 = vsel %vm1663, %v5971, %v5827
      %v6037 = vsel %vm1663, %v5973, %v5829
      %v6039 = vsel %vm1663, %v5975, %v5831
      %v6041 = vsel %vm1663, %v5977, %v5833
      %v6043 = vsel %vm1663, %v5979, %v5835
      %v6045 = vsel %vm1663, %v5981, %v5837
      %v6047 = vsel %vm1663, %v5983, %v5839
      %v6049 = vsel %vm1663, %v5985, %v5841
      %v6051 = vsel %vm1663, %v5987, %v5843
      %v6053 = vsel %vm1663, %v5989, %v5845
      %v6055 = vsel %vm1663, %v5991, %v5847
      %v6057 = vsel %vm1663, %v5993, %v5849
      %v6059 = vsel %vm1663, %v5995, %v5851
      %v6061 = vsel %vm1663, %v5997, %v5853
      %v6063 = vsel %vm1663, %v5999, %v5855
      %v6065 = vsel %vm1663, %v6001, %v5857
      %v6067 = vsel %vm1663, %v6003, %v5859
      %v6069 = vsel %vm1663, %v6005, %v5861
      %v6071 = vsel %vm1663, %v6007, %v5863
      %v6073 = vsel %vm1663, %v6009, %v5865
      %v6075 = vsel %vm1663, %v6011, %v5867
      %s6076 = scalar_lea.vmem %s1, 24
      %v6077 = vld [vmem:[%s6076] sm:$0xf]
      %v6078 = vld [vmem:[%s6076 + $0x4] sm:$0xf]
      %v6079 = vshrl.u32 %v6013, 16
      %v6081 = vshll.u32 %v6013, 16
      %v6083 = vrot.slane %v6081, 1
      %v6084 = vor.u32 %v6079, %v6083
      %v6085 = vshll.u32 %v6015, 16
      %v6087 = vrot.slane %v6085, 1
      %v6088 = vsel %vm988, %v6084, %v6087
      %v6089 = vshrl.u32 %v6017, 16
      %v6091 = vshll.u32 %v6017, 16
      %v6093 = vrot.slane %v6091, 1
      %v6094 = vor.u32 %v6089, %v6093
      %v6095 = vshll.u32 %v6019, 16
      %v6097 = vrot.slane %v6095, 1
      %v6098 = vsel %vm988, %v6094, %v6097
      %v6099 = vshrl.u32 %v6021, 16
      %v6101 = vshll.u32 %v6021, 16
      %v6103 = vrot.slane %v6101, 1
      %v6104 = vor.u32 %v6099, %v6103
      %v6105 = vshll.u32 %v6023, 16
      %v6107 = vrot.slane %v6105, 1
      %v6108 = vsel %vm988, %v6104, %v6107
      %v6109 = vshrl.u32 %v6025, 16
      %v6111 = vshll.u32 %v6025, 16
      %v6113 = vrot.slane %v6111, 1
      %v6114 = vor.u32 %v6109, %v6113
      %v6115 = vshll.u32 %v6027, 16
      %v6117 = vrot.slane %v6115, 1
      %v6118 = vsel %vm988, %v6114, %v6117
      %v6119 = vshrl.u32 %v6029, 16
      %v6121 = vshll.u32 %v6029, 16
      %v6123 = vrot.slane %v6121, 1
      %v6124 = vor.u32 %v6119, %v6123
      %v6125 = vshll.u32 %v6031, 16
      %v6127 = vrot.slane %v6125, 1
      %v6128 = vsel %vm988, %v6124, %v6127
      %v6129 = vshrl.u32 %v6033, 16
      %v6131 = vshll.u32 %v6033, 16
      %v6133 = vrot.slane %v6131, 1
      %v6134 = vor.u32 %v6129, %v6133
      %v6135 = vshll.u32 %v6035, 16
      %v6137 = vrot.slane %v6135, 1
      %v6138 = vsel %vm988, %v6134, %v6137
      %v6139 = vshrl.u32 %v6037, 16
      %v6141 = vshll.u32 %v6037, 16
      %v6143 = vrot.slane %v6141, 1
      %v6144 = vor.u32 %v6139, %v6143
      %v6145 = vshll.u32 %v6039, 16
      %v6147 = vrot.slane %v6145, 1
      %v6148 = vsel %vm988, %v6144, %v6147
      %v6149 = vshrl.u32 %v6041, 16
      %v6151 = vshll.u32 %v6041, 16
      %v6153 = vrot.slane %v6151, 1
      %v6154 = vor.u32 %v6149, %v6153
      %v6155 = vshll.u32 %v6043, 16
      %v6157 = vrot.slane %v6155, 1
      %v6158 = vsel %vm988, %v6154, %v6157
      %v6159 = vshrl.u32 %v6045, 16
      %v6161 = vshll.u32 %v6045, 16
      %v6163 = vrot.slane %v6161, 1
      %v6164 = vor.u32 %v6159, %v6163
      %v6165 = vshll.u32 %v6047, 16
      %v6167 = vrot.slane %v6165, 1
      %v6168 = vsel %vm988, %v6164, %v6167
      %v6169 = vshrl.u32 %v6049, 16
      %v6171 = vshll.u32 %v6049, 16
      %v6173 = vrot.slane %v6171, 1
      %v6174 = vor.u32 %v6169, %v6173
      %v6175 = vshll.u32 %v6051, 16
      %v6177 = vrot.slane %v6175, 1
      %v6178 = vsel %vm988, %v6174, %v6177
      %v6179 = vshrl.u32 %v6053, 16
      %v6181 = vshll.u32 %v6053, 16
      %v6183 = vrot.slane %v6181, 1
      %v6184 = vor.u32 %v6179, %v6183
      %v6185 = vshll.u32 %v6055, 16
      %v6187 = vrot.slane %v6185, 1
      %v6188 = vsel %vm988, %v6184, %v6187
      %v6189 = vshrl.u32 %v6057, 16
      %v6191 = vshll.u32 %v6057, 16
      %v6193 = vrot.slane %v6191, 1
      %v6194 = vor.u32 %v6189, %v6193
      %v6195 = vshll.u32 %v6059, 16
      %v6197 = vrot.slane %v6195, 1
      %v6198 = vsel %vm988, %v6194, %v6197
      %v6199 = vshrl.u32 %v6061, 16
      %v6201 = vshll.u32 %v6061, 16
      %v6203 = vrot.slane %v6201, 1
      %v6204 = vor.u32 %v6199, %v6203
      %v6205 = vshll.u32 %v6063, 16
      %v6207 = vrot.slane %v6205, 1
      %v6208 = vsel %vm988, %v6204, %v6207
      %v6209 = vshrl.u32 %v6065, 16
      %v6211 = vshll.u32 %v6065, 16
      %v6213 = vrot.slane %v6211, 1
      %v6214 = vor.u32 %v6209, %v6213
      %v6215 = vshll.u32 %v6067, 16
      %v6217 = vrot.slane %v6215, 1
      %v6218 = vsel %vm988, %v6214, %v6217
      %v6219 = vshrl.u32 %v6069, 16
      %v6221 = vshll.u32 %v6069, 16
      %v6223 = vrot.slane %v6221, 1
      %v6224 = vor.u32 %v6219, %v6223
      %v6225 = vshll.u32 %v6071, 16
      %v6227 = vrot.slane %v6225, 1
      %v6228 = vsel %vm988, %v6224, %v6227
      %v6229 = vshrl.u32 %v6073, 16
      %v6231 = vshll.u32 %v6073, 16
      %v6233 = vrot.slane %v6231, 1
      %v6234 = vor.u32 %v6229, %v6233
      %v6235 = vshll.u32 %v6075, 16
      %v6237 = vrot.slane %v6235, 1
      %v6238 = vsel %vm988, %v6234, %v6237
      %v6241 = vunpack.c.l.b16 %v6077
      %v6242 = vunpack.c.l.b16 %v6078
      %v6243 = vpack.c.b16 %v6242, %v6241
      %v6246 = vsel %vm1707, %v6088, 0
      %v6249 = vsel %vm1707, %v6098, 0
      %v6252 = vsel %vm1707, %v6108, 0
      %v6255 = vsel %vm1707, %v6118, 0
      %v6258 = vsel %vm1707, %v6128, 0
      %v6261 = vsel %vm1707, %v6138, 0
      %v6264 = vsel %vm1707, %v6148, 0
      %v6267 = vsel %vm1707, %v6158, 0
      %v6270 = vsel %vm1707, %v6168, 0
      %v6273 = vsel %vm1707, %v6178, 0
      %v6276 = vsel %vm1707, %v6188, 0
      %v6279 = vsel %vm1707, %v6198, 0
      %v6282 = vsel %vm1707, %v6208, 0
      %v6285 = vsel %vm1707, %v6218, 0
      %v6288 = vsel %vm1707, %v6228, 0
      %v6291 = vsel %vm1707, %v6238, 0
      %6293 = vmatpush.bf16.msra.mxu0 0
      %6294 = vmatpush.bf16.msra.mxu0 0
      %6295 = vmatpush.bf16.msra.mxu0 0
      %6296 = vmatpush.bf16.msra.mxu0 0
      %6297 = vmatpush.bf16.msra.mxu0 0
      %6298 = vmatpush.bf16.msra.mxu0 0
      %6299 = vmatpush.bf16.msra.mxu0 0
      %6300 = vmatpush.bf16.msra.mxu0 %v6243
      %6301 = vmatmul.bf16.gmra.mxu0 %v6246
      %v6302 = vpop.f32.mrf.mxu0
      %v6303 = vadd.f32 %v1699, %v6302
      %v6304 = vpop.f32.mrf.mxu0
      %v6305 = vadd.f32 %v1699, %v6304
      %6306 = vmatmul.bf16.gmra.mxu0 %v6249
      %v6307 = vpop.f32.mrf.mxu0
      %v6308 = vadd.f32 %v1699, %v6307
      %v6309 = vpop.f32.mrf.mxu0
      %v6310 = vadd.f32 %v1699, %v6309
      %6311 = vmatmul.bf16.gmra.mxu0 %v6252
      %v6312 = vpop.f32.mrf.mxu0
      %v6313 = vadd.f32 %v1699, %v6312
      %v6314 = vpop.f32.mrf.mxu0
      %v6315 = vadd.f32 %v1699, %v6314
      %6316 = vmatmul.bf16.gmra.mxu0 %v6255
      %v6317 = vpop.f32.mrf.mxu0
      %v6318 = vadd.f32 %v1699, %v6317
      %v6319 = vpop.f32.mrf.mxu0
      %v6320 = vadd.f32 %v1699, %v6319
      %6321 = vmatmul.bf16.gmra.mxu0 %v6258
      %v6322 = vpop.f32.mrf.mxu0
      %v6323 = vadd.f32 %v1699, %v6322
      %v6324 = vpop.f32.mrf.mxu0
      %v6325 = vadd.f32 %v1699, %v6324
      %6326 = vmatmul.bf16.gmra.mxu0 %v6261
      %v6327 = vpop.f32.mrf.mxu0
      %v6328 = vadd.f32 %v1699, %v6327
      %v6329 = vpop.f32.mrf.mxu0
      %v6330 = vadd.f32 %v1699, %v6329
      %6331 = vmatmul.bf16.gmra.mxu0 %v6264
      %v6332 = vpop.f32.mrf.mxu0
      %v6333 = vadd.f32 %v1699, %v6332
      %v6334 = vpop.f32.mrf.mxu0
      %v6335 = vadd.f32 %v1699, %v6334
      %6336 = vmatmul.bf16.gmra.mxu0 %v6267
      %v6337 = vpop.f32.mrf.mxu0
      %v6338 = vadd.f32 %v1699, %v6337
      %v6339 = vpop.f32.mrf.mxu0
      %v6340 = vadd.f32 %v1699, %v6339
      %6341 = vmatmul.bf16.gmra.mxu0 %v6270
      %v6342 = vpop.f32.mrf.mxu0
      %v6343 = vadd.f32 %v1699, %v6342
      %v6344 = vpop.f32.mrf.mxu0
      %v6345 = vadd.f32 %v1699, %v6344
      %6346 = vmatmul.bf16.gmra.mxu0 %v6273
      %v6347 = vpop.f32.mrf.mxu0
      %v6348 = vadd.f32 %v1699, %v6347
      %v6349 = vpop.f32.mrf.mxu0
      %v6350 = vadd.f32 %v1699, %v6349
      %6351 = vmatmul.bf16.gmra.mxu0 %v6276
      %v6352 = vpop.f32.mrf.mxu0
      %v6353 = vadd.f32 %v1699, %v6352
      %v6354 = vpop.f32.mrf.mxu0
      %v6355 = vadd.f32 %v1699, %v6354
      %6356 = vmatmul.bf16.gmra.mxu0 %v6279
      %v6357 = vpop.f32.mrf.mxu0
      %v6358 = vadd.f32 %v1699, %v6357
      %v6359 = vpop.f32.mrf.mxu0
      %v6360 = vadd.f32 %v1699, %v6359
      %6361 = vmatmul.bf16.gmra.mxu0 %v6282
      %v6362 = vpop.f32.mrf.mxu0
      %v6363 = vadd.f32 %v1699, %v6362
      %v6364 = vpop.f32.mrf.mxu0
      %v6365 = vadd.f32 %v1699, %v6364
      %6366 = vmatmul.bf16.gmra.mxu0 %v6285
      %v6367 = vpop.f32.mrf.mxu0
      %v6368 = vadd.f32 %v1699, %v6367
      %v6369 = vpop.f32.mrf.mxu0
      %v6370 = vadd.f32 %v1699, %v6369
      %6371 = vmatmul.bf16.gmra.mxu0 %v6288
      %v6372 = vpop.f32.mrf.mxu0
      %v6373 = vadd.f32 %v1699, %v6372
      %v6374 = vpop.f32.mrf.mxu0
      %v6375 = vadd.f32 %v1699, %v6374
      %6376 = vmatmul.bf16.gmra.mxu0 %v6291
      %v6377 = vpop.f32.mrf.mxu0
      %v6378 = vadd.f32 %v1699, %v6377
      %v6379 = vpop.f32.mrf.mxu0
      %v6380 = vadd.f32 %v1699, %v6379
      %6381 = vdwg.mxu0
      %6414 = vrot.lane.b32.xlu0 %v6303, 4
      %v6415 = vpop.permute.xlu0 %6414
      %6416 = vrot.lane.b32.xlu0 %v6305, 4
      %v6417 = vpop.permute.xlu0 %6416
      %6418 = vrot.lane.b32.xlu0 %v6308, 4
      %v6419 = vpop.permute.xlu0 %6418
      %6420 = vrot.lane.b32.xlu0 %v6310, 4
      %v6421 = vpop.permute.xlu0 %6420
      %6422 = vrot.lane.b32.xlu0 %v6313, 4
      %v6423 = vpop.permute.xlu0 %6422
      %6424 = vrot.lane.b32.xlu0 %v6315, 4
      %v6425 = vpop.permute.xlu0 %6424
      %6426 = vrot.lane.b32.xlu0 %v6318, 4
      %v6427 = vpop.permute.xlu0 %6426
      %6428 = vrot.lane.b32.xlu0 %v6320, 4
      %v6429 = vpop.permute.xlu0 %6428
      %6430 = vrot.lane.b32.xlu0 %v6323, 4
      %v6431 = vpop.permute.xlu0 %6430
      %6432 = vrot.lane.b32.xlu0 %v6325, 4
      %v6433 = vpop.permute.xlu0 %6432
      %6434 = vrot.lane.b32.xlu0 %v6328, 4
      %v6435 = vpop.permute.xlu0 %6434
      %6436 = vrot.lane.b32.xlu0 %v6330, 4
      %v6437 = vpop.permute.xlu0 %6436
      %6438 = vrot.lane.b32.xlu0 %v6333, 4
      %v6439 = vpop.permute.xlu0 %6438
      %6440 = vrot.lane.b32.xlu0 %v6335, 4
      %v6441 = vpop.permute.xlu0 %6440
      %6442 = vrot.lane.b32.xlu0 %v6338, 4
      %v6443 = vpop.permute.xlu0 %6442
      %6444 = vrot.lane.b32.xlu0 %v6340, 4
      %v6445 = vpop.permute.xlu0 %6444
      %6446 = vrot.lane.b32.xlu0 %v6343, 4
      %v6447 = vpop.permute.xlu0 %6446
      %6448 = vrot.lane.b32.xlu0 %v6345, 4
      %v6449 = vpop.permute.xlu0 %6448
      %6450 = vrot.lane.b32.xlu0 %v6348, 4
      %v6451 = vpop.permute.xlu0 %6450
      %6452 = vrot.lane.b32.xlu0 %v6350, 4
      %v6453 = vpop.permute.xlu0 %6452
      %6454 = vrot.lane.b32.xlu0 %v6353, 4
      %v6455 = vpop.permute.xlu0 %6454
      %6456 = vrot.lane.b32.xlu0 %v6355, 4
      %v6457 = vpop.permute.xlu0 %6456
      %6458 = vrot.lane.b32.xlu0 %v6358, 4
      %v6459 = vpop.permute.xlu0 %6458
      %6460 = vrot.lane.b32.xlu0 %v6360, 4
      %v6461 = vpop.permute.xlu0 %6460
      %6462 = vrot.lane.b32.xlu0 %v6363, 4
      %v6463 = vpop.permute.xlu0 %6462
      %6464 = vrot.lane.b32.xlu0 %v6365, 4
      %v6465 = vpop.permute.xlu0 %6464
      %6466 = vrot.lane.b32.xlu0 %v6368, 4
      %v6467 = vpop.permute.xlu0 %6466
      %6468 = vrot.lane.b32.xlu0 %v6370, 4
      %v6469 = vpop.permute.xlu0 %6468
      %6470 = vrot.lane.b32.xlu0 %v6373, 4
      %v6471 = vpop.permute.xlu0 %6470
      %6472 = vrot.lane.b32.xlu0 %v6375, 4
      %v6473 = vpop.permute.xlu0 %6472
      %6474 = vrot.lane.b32.xlu0 %v6378, 4
      %v6475 = vpop.permute.xlu0 %6474
      %6476 = vrot.lane.b32.xlu0 %v6380, 4
      %v6477 = vpop.permute.xlu0 %6476
      %6510 = vst.msk [vmem:[%s4715] sm:$0xff] %vm3623, %v6415
      %6511 = vst.msk [vmem:[%s4715 + $0x8] sm:$0xff] %vm3623, %v6417
      %6512 = vst.msk [vmem:[%s4715 + $0x20] sm:$0xff] %vm3623, %v6419
      %6513 = vst.msk [vmem:[%s4715 + $0x28] sm:$0xff] %vm3623, %v6421
      %6514 = vst.msk [vmem:[%s4715 + $0x40] sm:$0xff] %vm3623, %v6423
      %6515 = vst.msk [vmem:[%s4715 + $0x48] sm:$0xff] %vm3623, %v6425
      %6516 = vst.msk [vmem:[%s4715 + $0x60] sm:$0xff] %vm3623, %v6427
      %6517 = vst.msk [vmem:[%s4715 + $0x68] sm:$0xff] %vm3623, %v6429
      %6518 = vst.msk [vmem:[%s4715 + $0x80] sm:$0xff] %vm3623, %v6431
      %6519 = vst.msk [vmem:[%s4715 + $0x88] sm:$0xff] %vm3623, %v6433
      %6520 = vst.msk [vmem:[%s4715 + $0xa0] sm:$0xff] %vm3623, %v6435
      %6521 = vst.msk [vmem:[%s4715 + $0xa8] sm:$0xff] %vm3623, %v6437
      %6522 = vst.msk [vmem:[%s4715 + $0xc0] sm:$0xff] %vm3623, %v6439
      %6523 = vst.msk [vmem:[%s4715 + $0xc8] sm:$0xff] %vm3623, %v6441
      %6524 = vst.msk [vmem:[%s4715 + $0xe0] sm:$0xff] %vm3623, %v6443
      %6525 = vst.msk [vmem:[%s4715 + $0xe8] sm:$0xff] %vm3623, %v6445
      %6526 = vst.msk [vmem:[%s4715 + $0x100] sm:$0xff] %vm3623, %v6447
      %6527 = vst.msk [vmem:[%s4715 + $0x108] sm:$0xff] %vm3623, %v6449
      %6528 = vst.msk [vmem:[%s4715 + $0x120] sm:$0xff] %vm3623, %v6451
      %6529 = vst.msk [vmem:[%s4715 + $0x128] sm:$0xff] %vm3623, %v6453
      %6530 = vst.msk [vmem:[%s4715 + $0x140] sm:$0xff] %vm3623, %v6455
      %6531 = vst.msk [vmem:[%s4715 + $0x148] sm:$0xff] %vm3623, %v6457
      %6532 = vst.msk [vmem:[%s4715 + $0x160] sm:$0xff] %vm3623, %v6459
      %6533 = vst.msk [vmem:[%s4715 + $0x168] sm:$0xff] %vm3623, %v6461
      %6534 = vst.msk [vmem:[%s4715 + $0x180] sm:$0xff] %vm3623, %v6463
      %6535 = vst.msk [vmem:[%s4715 + $0x188] sm:$0xff] %vm3623, %v6465
      %6536 = vst.msk [vmem:[%s4715 + $0x1a0] sm:$0xff] %vm3623, %v6467
      %6537 = vst.msk [vmem:[%s4715 + $0x1a8] sm:$0xff] %vm3623, %v6469
      %6538 = vst.msk [vmem:[%s4715 + $0x1c0] sm:$0xff] %vm3623, %v6471
      %6539 = vst.msk [vmem:[%s4715 + $0x1c8] sm:$0xff] %vm3623, %v6473
      %6540 = vst.msk [vmem:[%s4715 + $0x1e0] sm:$0xff] %vm3623, %v6475
      %6541 = vst.msk [vmem:[%s4715 + $0x1e8] sm:$0xff] %vm3623, %v6477
      %p6542 = scmp.lt.s32.totalorder %s14, 1
      %s6543 = scalar_select %p6542, %s14, 1
      %s6544 = smul.addr %s6543, 64
      %s6545 = smul.addr %s6544, 8
      %s6546 = scalar_lea.vmem %s3, %s6545
      // Predicated region
      $region33: #{upsample_forward.1} parent=31 // pred_check
        %p6547 = pneg %p100
      $region34: #{upsample_forward.1} parent=31 // pred_check_branch
        %6549 = sbr.rel (%p6547) target = $region36
      $region35: #{upsample_forward.1} parent=31 // pred_region
        _
      $region36: #{upsample_forward.1} parent=31 // pred_fallthru
        _
    $region32: #{upsample_forward.1} parent=5 // pred_fallthru
      _
    %p6550 = scmp.le.s32.totalorder 2, %s9
    // Predicated region
    $region37: #{upsample_forward.1} parent=5 // pred_check
      %p6551 = pneg %p6550
    $region38: #{upsample_forward.1} parent=5 // pred_check_branch
      %6553 = sbr.rel (%p6551) target = $region40
    $region39: #{upsample_forward.1} parent=5 // pred_region
      %s6554 = ssub.s32 %s9, 2
      // Predicated region
      $region41: #{upsample_forward.1} parent=39 // pred_check
        %p6555 = pneg %p106
      $region42: #{upsample_forward.1} parent=39 // pred_check_branch
        %6557 = sbr.rel (%p6555) target = $region44
      $region43: #{upsample_forward.1} parent=39 // pred_region
        %p6558 = scmp.lt.s32.totalorder %s15, 1
        %s6559 = scalar_select %p6558, %s15, 1
        %s6560 = smul.addr %s6559, 64
        %s6561 = smul.addr %s6560, 8
        %s6562 = scalar_lea.vmem %s3, %s6561
      $region44: #{upsample_forward.1} parent=39 // pred_fallthru
        _
    $region40: #{upsample_forward.1} parent=5 // pred_fallthru
      _
  $region6: #{upsample_forward.1} parent=0 // loop_footer
    %s13 = sadd.s32 1, %s9
  $region7: #{upsample_forward.1} parent=0 // loop_footer_branch
    %8 = sbr.rel target = $region3
  $region8: #{upsample_forward.1} parent=0 // loop_exit
    _

</llo_original>
